<compile_context>
chip_gen: v7x
topology: tpu7x:2x2x1
jax: 0.10.0
libtpu: 0.0.40
codegen_flags: <defaults>
</compile_context>

<pallas_src>
import jax
import jax.numpy as jnp
from jax.experimental import pallas as pl
from jax.experimental.pallas import tpu as pltpu

# Token tile (rows per grid step).  This is the knob that sets arithmetic
# intensity for the weight stream (FLOP per weight byte == TM).  256 reaches
# the v5e MXU/HBM balance point (~240 FLOP/B) and is safe inside v7x's 64 MiB
# VMEM; bump to 512 on v6e (128 MiB VMEM, ~640 FLOP/B balance) if the
# deployment token count amortizes the per-expert padding.
TM = 256
# ffn chunk streamed per reduction step (weights tiled along ffn).
TF = 512


def _grouped_mlp_kernel(group_ids_ref, tile_valid_ref,    # scalar prefetch (SMEM)
                        x_ref, w1_ref, w2_ref, roww_ref,   # inputs (VMEM tiles)
                        o_ref,                             # output tile
                        acc_ref):                          # f32 VMEM accumulator
    t = pl.program_id(0)
    k = pl.program_id(1)
    nk = pl.num_programs(1)
    valid = tile_valid_ref[t] != 0

    @pl.when(k == 0)
    def _init():
        acc_ref[...] = jnp.zeros_like(acc_ref)

    @pl.when(valid)
    def _compute():
        # x_ref: (TM, hidden) bf16; w1_ref: (hidden, tf) bf16; w2_ref: (tf, hidden) bf16
        h = jnp.dot(x_ref[...], w1_ref[...], preferred_element_type=jnp.float32)
        # TODO(synk): switch to exact erf GELU if the target NeoX config uses
        # torch.nn.functional.gelu's default (erf) instead of the tanh approximation.
        h = jax.nn.gelu(h, approximate=True).astype(w2_ref.dtype)
        acc_ref[...] += jnp.dot(h, w2_ref[...], preferred_element_type=jnp.float32)

    @pl.when(k == nk - 1)
    def _store():
        # Router weight fused at the store.  Padding rows carry weight 0 and
        # invalid slack tiles have a zero accumulator, so every row of
        # out_padded is well defined (no garbage VMEM written back).
        o_ref[...] = (acc_ref[...] * roww_ref[...]).astype(o_ref.dtype)


def grouped_mlp(x_padded, group_ids, tile_valid, row_w, w1, w2):
    """Pallas grouped GEMM: per-row-tile expert selected via scalar prefetch,
    ffn streamed as a reduction axis with a f32 VMEM accumulator, router
    weight applied at the final store."""
    P, hidden = x_padded.shape
    E, _, ffn = w1.shape
    assert P % TM == 0
    nt = P // TM
    tf = min(TF, ffn)
    assert ffn % tf == 0, "ffn must be a multiple of the ffn tile"
    nf = ffn // tf

    # VMEM budget: double-buffered streamed tiles + resident f32 accumulator +
    # the gelu / second-matmul intermediates materialized inside the body.
    bpe = jnp.dtype(x_padded.dtype).itemsize
    vmem_need = 2 * (TM * hidden * bpe            # x tile
                     + hidden * tf * bpe          # w1 chunk
                     + tf * hidden * bpe          # w2 chunk
                     + TM * 4                     # router-weight column
                     + TM * hidden * bpe)         # out tile
    vmem_need += TM * hidden * 4                  # f32 accumulator scratch
    vmem_need += TM * tf * 4                      # gelu input/output (f32)
    vmem_need += TM * tf * bpe                    # gelu output cast to bf16
    vmem_need += TM * hidden * 4                  # 2nd matmul f32 result pre-accumulate
    vmem_need += 8 << 20                          # compiler-internal headroom
    try:
        vmem_cap = pltpu.get_tpu_info().vmem_capacity_bytes
    except Exception:                             # pragma: no cover - conservative fallback
        vmem_cap = 64 << 20                       # v7x physical per-TC VMEM (smallest)
    vmem_limit = int(min(max(vmem_need, 32 << 20), int(0.85 * vmem_cap)))

    return pl.pallas_call(
        _grouped_mlp_kernel,
        out_shape=jax.ShapeDtypeStruct((P, hidden), x_padded.dtype),
        grid_spec=pltpu.PrefetchScalarGridSpec(
            num_scalar_prefetch=2,
            grid=(nt, nf),
            in_specs=[
                # x tile is re-used across the ffn axis (block index ignores k).
                pl.BlockSpec((TM, hidden), lambda t, k, gids, valid: (t, 0)),
                # Weight chunks: expert via scalar prefetch; squeezed expert dim
                # (kernel sees 2-D refs).  For invalid slack tiles the k index is
                # frozen to 0 so they do not stream the whole expert's weights.
                pl.BlockSpec((None, hidden, tf),
                             lambda t, k, gids, valid: (gids[t], 0, k * valid[t])),
                pl.BlockSpec((None, tf, hidden),
                             lambda t, k, gids, valid: (gids[t], k * valid[t], 0)),
                # Per-row router weight column (fused at the store).
                pl.BlockSpec((TM, 1), lambda t, k, gids, valid: (t, 0)),
            ],
            out_specs=pl.BlockSpec((TM, hidden), lambda t, k, gids, valid: (t, 0)),
            scratch_shapes=[pltpu.VMEM((TM, hidden), jnp.float32)],
        ),
        compiler_params=pltpu.CompilerParams(
            dimension_semantics=("parallel", "arbitrary"),
            vmem_limit_bytes=vmem_limit),
    )(group_ids, tile_valid, x_padded, w1, w2, row_w)


def parallel_dropless_mlp_forward(x, expert_weights, expert_indices, w1_bf16, w2_bf16):
    """Equivalent of ParallelDroplessMLP.forward (world_size=1, mlp_type='regular').

    w1_bf16 / w2_bf16 are expected to already be stored in bf16 (the dtype cast
    is a full extra HBM pass and is hoisted out of the hot path)."""
    sl, bs, hidden = x.shape
    E = w1_bf16.shape[0]
    top_k = expert_indices.shape[-1]
    T0 = sl * bs
    T = T0 * top_k

    x_flat = x.reshape(T0, hidden).astype(jnp.bfloat16)        # bf16 for the MXU
    flat_w = expert_weights.reshape(-1).astype(jnp.float32)    # [sl*bs*top_k]
    flat_e = expert_indices.reshape(-1).astype(jnp.int32)      # [sl*bs*top_k]

    # ---- indices_and_bins: megablocks.ops.sort / histogram / inclusive_cumsum
    indices = jnp.argsort(flat_e, stable=True).astype(jnp.int32)  # sorted positions
    bin_ids = flat_e[indices]                                     # expert id per sorted row
    tokens_per_expert = jnp.zeros((E,), jnp.int32).at[flat_e].add(1)
    bins_excl = jnp.cumsum(tokens_per_expert) - tokens_per_expert  # exclusive cumsum

    # ---- pad each expert group to a multiple of TM so every row tile is single-expert
    padded_counts = ((tokens_per_expert + TM - 1) // TM) * TM
    padded_ends = jnp.cumsum(padded_counts)
    padded_starts = padded_ends - padded_counts
    total_padded = padded_ends[-1]
    P = (pl.cdiv(T, TM) + E) * TM  # static upper bound on padded rows

    rank = jnp.arange(T, dtype=jnp.int32) - bins_excl[bin_ids]
    padded_pos = padded_starts[bin_ids] + rank                   # padded row per sorted row

    # ---- megablocks.ops.gather: replicate tokens into sorted, expert-grouped order.
    # Padding rows map to token 0; their router weight is 0 so their outputs are zeroed.
    # TODO(synk): fuse this gather into the kernel DMA (manual make_async_copy row
    # gather from HBM) to remove one full pass over the P x hidden activation matrix.
    src_rows = jnp.zeros((P,), jnp.int32).at[padded_pos].set(
        (indices // top_k).astype(jnp.int32))
    x_gathered = x_flat[src_rows]

    # per-padded-row router weight (fused into the kernel's final store)
    w_sorted = flat_w[indices]
    row_w = jnp.zeros((P,), jnp.float32).at[padded_pos].set(w_sorted)[:, None]

    # per-row-tile expert id + validity flag (scalar-prefetched into SMEM)
    nt = P // TM
    tile_starts = jnp.arange(nt, dtype=jnp.int32) * TM
    group_ids = jnp.minimum(
        jnp.searchsorted(padded_ends, tile_starts, side='right'),
        E - 1).astype(jnp.int32)
    tile_valid = (tile_starts < total_padded).astype(jnp.int32)

    # ---- expert computation (Pallas kernel), bf16 in / bf16 out, f32 accumulate,
    # router weight applied in-kernel.
    out_padded = grouped_mlp(x_gathered, group_ids, tile_valid, row_w,
                             w1_bf16, w2_bf16)

    # ---- megablocks.ops.scatter: replaced by an inverse-permutation gather plus a
    # dense sum over the top_k axis (no serialized scatter-add, no extra weight pass).
    inv = jnp.zeros((T,), jnp.int32).at[indices].set(jnp.arange(T, dtype=jnp.int32))
    out_flat = out_padded[padded_pos[inv]].astype(jnp.float32)   # [T, hidden], pre-weighted
    y = out_flat.reshape(T0, top_k, hidden).sum(axis=1)
    return y.reshape(sl, bs, hidden).astype(x.dtype)


def reference_forward(x, expert_weights, expert_indices, w1, w2):
    """Pure-JAX f32 reference of the same semantics (dense per-token expert apply)."""
    sl, bs, hidden = x.shape
    T0 = sl * bs
    top_k = expert_indices.shape[-1]
    x_flat = x.reshape(T0, hidden).astype(jnp.float32)
    y = jnp.zeros((T0, hidden), jnp.float32)
    hp = jax.lax.Precision.HIGHEST
    for k in range(top_k):
        e = expert_indices[:, k]
        h = jax.nn.gelu(
            jnp.einsum('th,thf->tf', x_flat, w1[e], precision=hp),
            approximate=True)
        o = jnp.einsum('tf,tfh->th', h, w2[e], precision=hp)
        y = y + expert_weights[:, k].astype(jnp.float32)[:, None] * o
    return y.reshape(sl, bs, hidden)


if __name__ == "__main__":
    sl, bs, hidden, ffn = 8, 2, 128, 512
    num_experts, top_k = 4, 2
    T0 = sl * bs

    key = jax.random.PRNGKey(0)
    k_x, k_w1, k_w2, k_router = jax.random.split(key, 4)

    x = (0.1 * jax.random.normal(k_x, (sl, bs, hidden))).astype(jnp.float32)
    w1 = (jax.random.normal(k_w1, (num_experts, hidden, ffn)) /
          jnp.sqrt(hidden)).astype(jnp.float32)
    w2 = (jax.random.normal(k_w2, (num_experts, ffn, hidden)) /
          jnp.sqrt(ffn)).astype(jnp.float32)

    # synthetic router outputs: top-k experts per token + softmax'd weights
    logits = jax.random.normal(k_router, (T0, num_experts))
    top_vals, expert_indices = jax.lax.top_k(logits, top_k)
    expert_weights = jax.nn.softmax(top_vals, axis=-1).astype(jnp.float32)
    expert_indices = expert_indices.astype(jnp.int32)

    # one-time weight cast (hoisted out of the forward hot path)
    w1_bf16 = w1.astype(jnp.bfloat16)
    w2_bf16 = w2.astype(jnp.bfloat16)

    fwd = jax.jit(parallel_dropless_mlp_forward)
    out = fwd(x, expert_weights, expert_indices, w1_bf16, w2_bf16)
    out = jax.block_until_ready(out)

    ref = reference_forward(x, expert_weights, expert_indices, w1, w2)
    assert out.shape == x.shape
    # tolerance sized for bf16 inputs / f32 accumulation vs. a pure-f32 reference
    assert jnp.allclose(out, ref, rtol=2e-2, atol=2e-2), (
        f"max abs diff {jnp.max(jnp.abs(out - ref))}")

    print("KERNEL_OK")
</pallas_src>

<mosaic_0001>
module attributes {stable_mosaic.version = 11 : i64} {
  func.func private @main(%arg0: i32) attributes {dimension_semantics = [#tpu.dimension_semantics<core_parallel>], iteration_bounds = array<i64: 2>, tpu.core_type = #tpu.core_type<sc_scalar_subcore>, window_params = []} {
    return
  }
}

module attributes {stable_mosaic.version = 11 : i64} {
  func.func private @main(%arg0: i32) attributes {dimension_semantics = [#tpu.dimension_semantics<core_parallel>], iteration_bounds = array<i64: 2>, tpu.core_type = #tpu.core_type<sc_scalar_subcore>, window_params = []} {
    return
  }
}

module attributes {stable_mosaic.version = 11 : i64} {
  func.func @_grouped_mlp_kernel(%arg0: i32, %arg1: i32, %arg2: memref<5xi32, #tpu.memory_space<smem>>, %arg3: memref<5xi32, #tpu.memory_space<smem>>, %arg4: memref<256x128xbf16, #tpu.memory_space<vmem>>, %arg5: memref<1x128x512xbf16, #tpu.memory_space<vmem>>, %arg6: memref<1x512x128xbf16, #tpu.memory_space<vmem>>, %arg7: memref<256x1xf32, #tpu.memory_space<vmem>>, %arg8: memref<256x128xbf16, #tpu.memory_space<vmem>>, %arg9: memref<256x128xf32, #tpu.memory_space<vmem>>) attributes {dimension_semantics = [#tpu.dimension_semantics<parallel>, #tpu.dimension_semantics<arbitrary>], iteration_bounds = array<i64: 5, 1>, scalar_prefetch = 2 : i64, scratch_operands = 1 : i64, tpu.core_type = #tpu.core_type<tc>, window_params = [{transform_indices = @transform_0, window_bounds = array<i64: 256, 128>}, {transform_indices = @transform_1, window_bounds = array<i64: 1, 128, 512>}, {transform_indices = @transform_2, window_bounds = array<i64: 1, 512, 128>}, {transform_indices = @transform_3, window_bounds = array<i64: 256, 1>}, {transform_indices = @transform_4, window_bounds = array<i64: 256, 128>}]} {
    %0 = arith.index_cast %arg0 : i32 to index
    %1 = memref.load %arg3[%0] : memref<5xi32, #tpu.memory_space<smem>>
    %c0_i32 = arith.constant 0 : i32
    %2 = arith.cmpi ne, %1, %c0_i32 : i32
    %c0_i32_0 = arith.constant 0 : i32
    %3 = arith.cmpi eq, %arg1, %c0_i32_0 : i32
    %4 = arith.extui %3 : i1 to i32
    %c0_i32_1 = arith.constant 0 : i32
    %5 = arith.cmpi ne, %4, %c0_i32_1 : i32
    scf.if %5 {
      %cst = arith.constant 0.000000e+00 : f32
      %11 = vector.broadcast %cst : f32 to vector<256x128xf32>
      %c0 = arith.constant 0 : index
      %c0_5 = arith.constant 0 : index
      %12 = vector.load %arg9[%c0, %c0_5] : memref<256x128xf32, #tpu.memory_space<vmem>>, vector<256x128xf32>
      tpu.vector_store %arg9[%c0, %c0_5], %11 {strides = array<i32>} : memref<256x128xf32, #tpu.memory_space<vmem>>, vector<256x128xf32>,
    } else {
    }
    %6 = arith.extui %2 : i1 to i32
    %c0_i32_2 = arith.constant 0 : i32
    %7 = arith.cmpi ne, %6, %c0_i32_2 : i32
    scf.if %7 {
      %c0 = arith.constant 0 : index
      %c0_5 = arith.constant 0 : index
      %11 = vector.load %arg4[%c0, %c0_5] : memref<256x128xbf16, #tpu.memory_space<vmem>>, vector<256x128xbf16>
      %c0_6 = arith.constant 0 : index
      %c0_7 = arith.constant 0 : index
      %c0_8 = arith.constant 0 : index
      %12 = vector.load %arg5[%c0_6, %c0_7, %c0_8] : memref<1x128x512xbf16, #tpu.memory_space<vmem>>, vector<1x128x512xbf16>
      %13 = vector.shape_cast %12 : vector<1x128x512xbf16> to vector<128x512xbf16>
      %cst = arith.constant dense<0.000000e+00> : vector<256x512xf32>
      %14 = tpu.matmul %11, %13, %cst {dimension_numbers = #tpu.dot_dimension_numbers<[1], [0], [0], [1], [0, 0, 1, 1], [], []>} : vector<256x128xbf16>, vector<128x512xbf16>, vector<256x512xf32> -> vector<256x512xf32>
      %15 = arith.mulf %14, %14 : vector<256x512xf32>
      %16 = arith.mulf %14, %15 : vector<256x512xf32>
      %cst_9 = arith.constant 4.471500e-02 : f32
      %17 = vector.broadcast %cst_9 : f32 to vector<256x512xf32>
      %18 = arith.mulf %17, %16 : vector<256x512xf32>
      %19 = arith.addf %14, %18 : vector<256x512xf32>
      %cst_10 = arith.constant 0.797884583 : f32
      %20 = vector.broadcast %cst_10 : f32 to vector<256x512xf32>
      %21 = arith.mulf %20, %19 : vector<256x512xf32>
      %22 = math.tanh %21 : vector<256x512xf32>
      %cst_11 = arith.constant 1.000000e+00 : f32
      %23 = vector.broadcast %cst_11 : f32 to vector<256x512xf32>
      %24 = arith.addf %23, %22 : vector<256x512xf32>
      %cst_12 = arith.constant 5.000000e-01 : f32
      %25 = vector.broadcast %cst_12 : f32 to vector<256x512xf32>
      %26 = arith.mulf %25, %24 : vector<256x512xf32>
      %27 = arith.mulf %14, %26 : vector<256x512xf32>
      %28 = arith.truncf %27 : vector<256x512xf32> to vector<256x512xbf16>
      %c0_13 = arith.constant 0 : index
      %c0_14 = arith.constant 0 : index
      %29 = vector.load %arg9[%c0_13, %c0_14] : memref<256x128xf32, #tpu.memory_space<vmem>>, vector<256x128xf32>
      %c0_15 = arith.constant 0 : index
      %c0_16 = arith.constant 0 : index
      %c0_17 = arith.constant 0 : index
      %30 = vector.load %arg6[%c0_15, %c0_16, %c0_17] : memref<1x512x128xbf16, #tpu.memory_space<vmem>>, vector<1x512x128xbf16>
      %31 = vector.shape_cast %30 : vector<1x512x128xbf16> to vector<512x128xbf16>
      %cst_18 = arith.constant dense<0.000000e+00> : vector<256x128xf32>
      %32 = tpu.matmul %28, %31, %cst_18 {dimension_numbers = #tpu.dot_dimension_numbers<[1], [0], [0], [1], [0, 0, 1, 1], [], []>} : vector<256x512xbf16>, vector<512x128xbf16>, vector<256x128xf32> -> vector<256x128xf32>
      %33 = arith.addf %29, %32 : vector<256x128xf32>
      %c0_19 = arith.constant 0 : index
      %c0_20 = arith.constant 0 : index
      %34 = vector.load %arg9[%c0_19, %c0_20] : memref<256x128xf32, #tpu.memory_space<vmem>>, vector<256x128xf32>
      tpu.vector_store %arg9[%c0_19, %c0_20], %33 {strides = array<i32>} : memref<256x128xf32, #tpu.memory_space<vmem>>, vector<256x128xf32>,
    } else {
    }
    %c0_i32_3 = arith.constant 0 : i32
    %8 = arith.cmpi eq, %arg1, %c0_i32_3 : i32
    %9 = arith.extui %8 : i1 to i32
    %c0_i32_4 = arith.constant 0 : i32
    %10 = arith.cmpi ne, %9, %c0_i32_4 : i32
    scf.if %10 {
      %c0 = arith.constant 0 : index
      %c0_5 = arith.constant 0 : index
      %11 = vector.load %arg9[%c0, %c0_5] : memref<256x128xf32, #tpu.memory_space<vmem>>, vector<256x128xf32>
      %c0_6 = arith.constant 0 : index
      %c0_7 = arith.constant 0 : index
      %12 = vector.load %arg7[%c0_6, %c0_7] : memref<256x1xf32, #tpu.memory_space<vmem>>, vector<256x1xf32>
      %13 = vector.broadcast %12 : vector<256x1xf32> to vector<256x128xf32>
      %14 = arith.mulf %11, %13 : vector<256x128xf32>
      %15 = arith.truncf %14 : vector<256x128xf32> to vector<256x128xbf16>
      %c0_8 = arith.constant 0 : index
      %c0_9 = arith.constant 0 : index
      %16 = vector.load %arg8[%c0_8, %c0_9] : memref<256x128xbf16, #tpu.memory_space<vmem>>, vector<256x128xbf16>
      tpu.vector_store %arg8[%c0_8, %c0_9], %15 {strides = array<i32>} : memref<256x128xbf16, #tpu.memory_space<vmem>>, vector<256x128xbf16>,
    } else {
    }
    return
  }
  func.func @transform_0(%arg0: i32, %arg1: i32, %arg2: memref<5xi32, #tpu.memory_space<smem>>, %arg3: memref<5xi32, #tpu.memory_space<smem>>) -> (i32, i32) {
    %c0_i32 = arith.constant 0 : i32
    %c0_i32_0 = arith.constant 0 : i32
    return %arg0, %c0_i32 : i32, i32
  }
  func.func @transform_1(%arg0: i32, %arg1: i32, %arg2: memref<5xi32, #tpu.memory_space<smem>>, %arg3: memref<5xi32, #tpu.memory_space<smem>>) -> (i32, i32, i32) {
    %0 = arith.index_cast %arg0 : i32 to index
    %1 = memref.load %arg2[%0] : memref<5xi32, #tpu.memory_space<smem>>
    %2 = arith.index_cast %arg0 : i32 to index
    %3 = memref.load %arg3[%2] : memref<5xi32, #tpu.memory_space<smem>>
    %4 = arith.muli %arg1, %3 : i32
    %c0_i32 = arith.constant 0 : i32
    %c0_i32_0 = arith.constant 0 : i32
    return %1, %c0_i32, %4 : i32, i32, i32
  }
  func.func @transform_2(%arg0: i32, %arg1: i32, %arg2: memref<5xi32, #tpu.memory_space<smem>>, %arg3: memref<5xi32, #tpu.memory_space<smem>>) -> (i32, i32, i32) {
    %0 = arith.index_cast %arg0 : i32 to index
    %1 = memref.load %arg2[%0] : memref<5xi32, #tpu.memory_space<smem>>
    %2 = arith.index_cast %arg0 : i32 to index
    %3 = memref.load %arg3[%2] : memref<5xi32, #tpu.memory_space<smem>>
    %4 = arith.muli %arg1, %3 : i32
    %c0_i32 = arith.constant 0 : i32
    %c0_i32_0 = arith.constant 0 : i32
    return %1, %4, %c0_i32 : i32, i32, i32
  }
  func.func @transform_3(%arg0: i32, %arg1: i32, %arg2: memref<5xi32, #tpu.memory_space<smem>>, %arg3: memref<5xi32, #tpu.memory_space<smem>>) -> (i32, i32) {
    %c0_i32 = arith.constant 0 : i32
    %c0_i32_0 = arith.constant 0 : i32
    return %arg0, %c0_i32 : i32, i32
  }
  func.func @transform_4(%arg0: i32, %arg1: i32, %arg2: memref<5xi32, #tpu.memory_space<smem>>, %arg3: memref<5xi32, #tpu.memory_space<smem>>) -> (i32, i32) {
    %c0_i32 = arith.constant 0 : i32
    %c0_i32_0 = arith.constant 0 : i32
    return %arg0, %c0_i32 : i32, i32
  }
}

</mosaic_0001>

<llo_original>
// kernel: custom-call
$region0: #{custom-call}
  %s0 = inlined_call_operand.vmem [shape: u32[5], index: 0, kind: output, shape index: {}]

// kernel: parallel_dropless_mlp_forward.1
$region0: #{parallel_dropless_mlp_forward.1}
  #allocation0 [shape = 'u32[]', space=smem, size = 0x4, offset = 0x4, fixed_abs, tag = 'smem constant byte address 0x4 - core index']
  #allocation1 [shape = 'u32[144,128]{1,0:T(1,128)}', space=vmem, size = 0x12000, scoped, tag = 'internal scratch']
  #allocation2 [shape = 'f32[256,128]{1,0:T(8,128)}', space=vmem, size = 0x20000, scoped, tag = 'scratch operand']
  #allocation3 [shape = 's32[1]{0}', space=sflag, size = 0x4, scoped, tag = 'scoped memory for parallel_dropless_mlp_forward.1']
  #allocation4 [shape = 'u8[512]{0}', space=smem, size = 0x200, scoped, tag = 'prefetched SMEM operand 0']
  #allocation5 [shape = 'u8[512]{0}', space=smem, size = 0x200, scoped, tag = 'prefetched SMEM operand 1']
  %s0 = inlined_call_operand.vmem [shape: s32[5], index: 0, kind: input, shape index: {}]
  %s1 = inlined_call_operand.vmem [shape: s32[5], index: 1, kind: input, shape index: {}]
  %s2 = inlined_call_operand.vmem [shape: bf16[1280,128], index: 2, kind: input, shape index: {}]
  %s3 = inlined_call_operand.vmem [shape: bf16[4,128,512], index: 3, kind: input, shape index: {}]
  %s4 = inlined_call_operand.vmem [shape: bf16[4,512,128], index: 4, kind: input, shape index: {}]
  %s5 = inlined_call_operand.vmem [shape: f32[1280,1], index: 5, kind: input, shape index: {}]
  %s6 = inlined_call_operand.vmem [shape: bf16[1280,128], index: 6, kind: output, shape index: {}]
  %s7 = sld [smem:[#allocation0]]
  $region61: #{parallel_dropless_mlp_forward.1} parent=0
    _
  %s9 = ssub.s32 1, %s7
  %s10 = scalar_select 0, %s9, %s7
  %s11 = sshll.u32 %s0, 4
  %s12 = int_to_ptr.vmem [resolvable:$true] %s11
  %14 = dma.vmem_to_smem %s12, 16, [#allocation4], [#allocation3]
  %s15 = sshll.u32 %s1, 4
  %s16 = int_to_ptr.vmem [resolvable:$true] %s15
  %18 = dma.vmem_to_smem %s16, 16, [#allocation5], [#allocation3]
  %19 = dma.done [#allocation3], 32
  %20 = sfence
  loop: start=0, step=1, limit=7
  $region2: #{parallel_dropless_mlp_forward.1} parent=0 // loop_pre_header
    _
  $region3: #{parallel_dropless_mlp_forward.1} parent=0 // loop_header
    %s22 = sphi 0, %s26
    %p23 = scmp.ge.s32.totalorder %s22, 7
    %s29 = sphi 0, %s41
    %s30 = sphi 0, %s37
    %s31 = sphi 0, %s29
    %s32 = sphi 0, %s30
    %s33 = sphi 0, %s31
    %s34 = sphi 0, %s32
    %s44 = sphi 0, %s46
    %s47 = sphi 0, %s44
    %s48 = sphi 0, %s47
    %s64 = sphi 0, %s48
    %s78 = sphi 0, %s80
    %s81 = sphi 0, %s78
    %s82 = sphi 0, %s81
    %s98 = sphi 0, %s82
    %s112 = sphi 0, %s114
    %s115 = sphi 0, %s112
    %s116 = sphi 0, %s115
    %s132 = sphi 0, %s116
    %s138 = sphi 0, %s140
    %s141 = sphi 0, %s138
    %s142 = sphi 0, %s141
    %s158 = sphi 0, %s142
    %s164 = sphi 0, %s166
    %s167 = sphi 0, %s164
    %s168 = sphi 0, %s167
    %s184 = sphi 0, %s168
  $region4: #{parallel_dropless_mlp_forward.1} parent=0 // loop_header_branch
    %25 = sbr.rel (%p23) target = $region8
  $region5: #{parallel_dropless_mlp_forward.1} parent=0 // loop_body
    %s27 = ssub.s32 %s22, 1
    %s28 = ssub.s32 %s22, 2
    %s35 = sadd.s32 1, %s30
    %p36 = scmp.ge.s32.totalorder %s35, 1
    %s37 = scalar_select %p36, 0, %s35
    %s38 = sadd.s32 1, %s29
    %s39 = scalar_select %p36, %s38, %s29
    %p40 = scmp.ge.s32.totalorder %s39, 5
    %s41 = scalar_select %p40, 0, %s39
    %s42 = ssub.s32 %s29, %s41
    %p43 = scmp.eq.s32.totalorder %s42, 0
    %s45 = sadd.s32 %s44, 1
    %s46 = scalar_select %p43, %s44, %s45
    %p49 = pneg %p43
    %p50 = scmp.eq.s32.totalorder %s22, 4
    %p51 = por %p49, %p50
    %p52 = scmp.ne.s32.totalorder %s44, %s47
    %p53 = scmp.eq.s32.totalorder %s22, 0
    %p54 = por %p52, %p53
    %p55 = scmp.ne.s32.totalorder %s44, %s47
    %p56 = scmp.eq.s32.totalorder %s27, 4
    %p57 = por %p55, %p56
    %p58 = scmp.ne.s32.totalorder %s47, %s48
    %p59 = scmp.eq.s32.totalorder %s27, 0
    %p60 = por %p58, %p59
    %p61 = scmp.ne.s32.totalorder %s47, %s48
    %p62 = scmp.eq.s32.totalorder %s28, 4
    %p63 = por %p61, %p62
    %p65 = scmp.ne.s32.totalorder %s48, %s64
    %p66 = scmp.eq.s32.totalorder %s28, 0
    %p67 = por %p65, %p66
    %s68 = sld [smem:[#allocation4 + %s29]]
    %s69 = sld [smem:[#allocation5 + %s29]]
    %s70 = smul.u32 %s30, %s69
    %s71 = sld [smem:[#allocation4 + %s41]]
    %s72 = sld [smem:[#allocation5 + %s41]]
    %s73 = smul.u32 %s37, %s72
    %s74 = ssub.s32 %s68, %s71
    %s75 = ssub.s32 %s70, %s73
    %s76 = sor.u32 %s74, %s75
    %p77 = scmp.eq.s32.totalorder %s76, 0
    %s79 = sadd.s32 %s78, 1
    %s80 = scalar_select %p77, %s78, %s79
    %p83 = pneg %p77
    %p84 = scmp.eq.s32.totalorder %s22, 4
    %p85 = por %p83, %p84
    %p86 = scmp.ne.s32.totalorder %s78, %s81
    %p87 = scmp.eq.s32.totalorder %s22, 0
    %p88 = por %p86, %p87
    %p89 = scmp.ne.s32.totalorder %s78, %s81
    %p90 = scmp.eq.s32.totalorder %s27, 4
    %p91 = por %p89, %p90
    %p92 = scmp.ne.s32.totalorder %s81, %s82
    %p93 = scmp.eq.s32.totalorder %s27, 0
    %p94 = por %p92, %p93
    %p95 = scmp.ne.s32.totalorder %s81, %s82
    %p96 = scmp.eq.s32.totalorder %s28, 4
    %p97 = por %p95, %p96
    %p99 = scmp.ne.s32.totalorder %s82, %s98
    %p100 = scmp.eq.s32.totalorder %s28, 0
    %p101 = por %p99, %p100
    %s102 = sld [smem:[#allocation4 + %s29]]
    %s103 = sld [smem:[#allocation5 + %s29]]
    %s104 = smul.u32 %s30, %s103
    %s105 = sld [smem:[#allocation4 + %s41]]
    %s106 = sld [smem:[#allocation5 + %s41]]
    %s107 = smul.u32 %s37, %s106
    %s108 = ssub.s32 %s102, %s105
    %s109 = ssub.s32 %s104, %s107
    %s110 = sor.u32 %s108, %s109
    %p111 = scmp.eq.s32.totalorder %s110, 0
    %s113 = sadd.s32 %s112, 1
    %s114 = scalar_select %p111, %s112, %s113
    %p117 = pneg %p111
    %p118 = scmp.eq.s32.totalorder %s22, 4
    %p119 = por %p117, %p118
    %p120 = scmp.ne.s32.totalorder %s112, %s115
    %p121 = scmp.eq.s32.totalorder %s22, 0
    %p122 = por %p120, %p121
    %p123 = scmp.ne.s32.totalorder %s112, %s115
    %p124 = scmp.eq.s32.totalorder %s27, 4
    %p125 = por %p123, %p124
    %p126 = scmp.ne.s32.totalorder %s115, %s116
    %p127 = scmp.eq.s32.totalorder %s27, 0
    %p128 = por %p126, %p127
    %p129 = scmp.ne.s32.totalorder %s115, %s116
    %p130 = scmp.eq.s32.totalorder %s28, 4
    %p131 = por %p129, %p130
    %p133 = scmp.ne.s32.totalorder %s116, %s132
    %p134 = scmp.eq.s32.totalorder %s28, 0
    %p135 = por %p133, %p134
    %s136 = ssub.s32 %s29, %s41
    %p137 = scmp.eq.s32.totalorder %s136, 0
    %s139 = sadd.s32 %s138, 1
    %s140 = scalar_select %p137, %s138, %s139
    %p143 = pneg %p137
    %p144 = scmp.eq.s32.totalorder %s22, 4
    %p145 = por %p143, %p144
    %p146 = scmp.ne.s32.totalorder %s138, %s141
    %p147 = scmp.eq.s32.totalorder %s22, 0
    %p148 = por %p146, %p147
    %p149 = scmp.ne.s32.totalorder %s138, %s141
    %p150 = scmp.eq.s32.totalorder %s27, 4
    %p151 = por %p149, %p150
    %p152 = scmp.ne.s32.totalorder %s141, %s142
    %p153 = scmp.eq.s32.totalorder %s27, 0
    %p154 = por %p152, %p153
    %p155 = scmp.ne.s32.totalorder %s141, %s142
    %p156 = scmp.eq.s32.totalorder %s28, 4
    %p157 = por %p155, %p156
    %p159 = scmp.ne.s32.totalorder %s142, %s158
    %p160 = scmp.eq.s32.totalorder %s28, 0
    %p161 = por %p159, %p160
    %s162 = ssub.s32 %s29, %s41
    %p163 = scmp.eq.s32.totalorder %s162, 0
    %s165 = sadd.s32 %s164, 1
    %s166 = scalar_select %p163, %s164, %s165
    %p169 = pneg %p163
    %p170 = scmp.eq.s32.totalorder %s22, 4
    %p171 = por %p169, %p170
    %p172 = scmp.ne.s32.totalorder %s164, %s167
    %p173 = scmp.eq.s32.totalorder %s22, 0
    %p174 = por %p172, %p173
    %p175 = scmp.ne.s32.totalorder %s164, %s167
    %p176 = scmp.eq.s32.totalorder %s27, 4
    %p177 = por %p175, %p176
    %p178 = scmp.ne.s32.totalorder %s167, %s168
    %p179 = scmp.eq.s32.totalorder %s27, 0
    %p180 = por %p178, %p179
    %p181 = scmp.ne.s32.totalorder %s167, %s168
    %p182 = scmp.eq.s32.totalorder %s28, 4
    %p183 = por %p181, %p182
    %p185 = scmp.ne.s32.totalorder %s168, %s184
    %p186 = scmp.eq.s32.totalorder %s28, 0
    %p187 = por %p185, %p186
    %p188 = scmp.le.s32.totalorder 1, %s22
    %p189 = scmp.lt.s32.totalorder %s22, 6
    %p190 = pnand %p188, %p189
    %p191 = pneg %p190
    // Predicated region
    $region9: #{parallel_dropless_mlp_forward.1} parent=5 // pred_check
      _
    $region10: #{parallel_dropless_mlp_forward.1} parent=5 // pred_check_branch
      %193 = sbr.rel (%p190) target = $region12
    $region11: #{parallel_dropless_mlp_forward.1} parent=5 // pred_region
      %s194 = ssub.s32 %s22, 1
    $region12: #{parallel_dropless_mlp_forward.1} parent=5 // pred_fallthru
      _
    %p195 = scmp.lt.s32.totalorder %s22, 5
    // Predicated region
    $region13: #{parallel_dropless_mlp_forward.1} parent=5 // pred_check
      %p196 = pneg %p195
    $region14: #{parallel_dropless_mlp_forward.1} parent=5 // pred_check_branch
      %198 = sbr.rel (%p196) target = $region16
    $region15: #{parallel_dropless_mlp_forward.1} parent=5 // pred_region
      // Predicated region
      $region17: #{parallel_dropless_mlp_forward.1} parent=15 // pred_check
        %p199 = pneg %p54
      $region18: #{parallel_dropless_mlp_forward.1} parent=15 // pred_check_branch
        %201 = sbr.rel (%p199) target = $region20
      $region19: #{parallel_dropless_mlp_forward.1} parent=15 // pred_region
        %s202 = smul.u32 32, %s29
        %p203 = scmp.lt.s32.totalorder %s202, 159
        %s204 = scalar_select %p203, %s202, 159
        %s205 = smul.addr %s204, 4
        %s206 = scalar_lea.vmem %s2, %s205
        %s207 = smul.u32 32, %s29
      $region20: #{parallel_dropless_mlp_forward.1} parent=15 // pred_fallthru
        _
      // Predicated region
      $region21: #{parallel_dropless_mlp_forward.1} parent=15 // pred_check
        %p208 = pneg %p88
      $region22: #{parallel_dropless_mlp_forward.1} parent=15 // pred_check_branch
        %210 = sbr.rel (%p208) target = $region24
      $region23: #{parallel_dropless_mlp_forward.1} parent=15 // pred_region
        %s211 = sld [smem:[#allocation4 + %s29]]
        %s212 = sld [smem:[#allocation5 + %s29]]
        %s213 = smul.u32 %s30, %s212
        %s214 = smul.u32 4, %s213
        %p215 = scmp.lt.s32.totalorder %s211, 3
        %s216 = scalar_select %p215, %s211, 3
        %p217 = scmp.lt.s32.totalorder %s214, 3
        %s218 = scalar_select %p217, %s214, 3
        %s219 = smul.addr %s216, 64
        %s220 = sadd.s32 %s218, %s219
        %s221 = smul.addr %s220, 4
        %s222 = scalar_lea.vmem %s3, %s221
        %s223 = sld [smem:[#allocation4 + %s29]]
        %s224 = sld [smem:[#allocation5 + %s29]]
        %s225 = smul.u32 %s30, %s224
        %s226 = smul.u32 4, %s225
      $region24: #{parallel_dropless_mlp_forward.1} parent=15 // pred_fallthru
        _
      // Predicated region
      $region25: #{parallel_dropless_mlp_forward.1} parent=15 // pred_check
        %p227 = pneg %p122
      $region26: #{parallel_dropless_mlp_forward.1} parent=15 // pred_check_branch
        %229 = sbr.rel (%p227) target = $region28
      $region27: #{parallel_dropless_mlp_forward.1} parent=15 // pred_region
        %s230 = sld [smem:[#allocation4 + %s29]]
        %s231 = sld [smem:[#allocation5 + %s29]]
        %s232 = smul.u32 %s30, %s231
        %s233 = smul.u32 64, %s232
        %p234 = scmp.lt.s32.totalorder %s230, 3
        %s235 = scalar_select %p234, %s230, 3
        %p236 = scmp.lt.s32.totalorder %s233, 63
        %s237 = scalar_select %p236, %s233, 63
        %s238 = smul.addr %s235, 64
        %s239 = sadd.s32 %s237, %s238
        %s240 = smul.addr %s239, 4
        %s241 = scalar_lea.vmem %s4, %s240
        %s242 = sld [smem:[#allocation4 + %s29]]
        %s243 = sld [smem:[#allocation5 + %s29]]
        %s244 = smul.u32 %s30, %s243
        %s245 = smul.u32 64, %s244
      $region28: #{parallel_dropless_mlp_forward.1} parent=15 // pred_fallthru
        _
      // Predicated region
      $region29: #{parallel_dropless_mlp_forward.1} parent=15 // pred_check
        %p246 = pneg %p148
      $region30: #{parallel_dropless_mlp_forward.1} parent=15 // pred_check_branch
        %248 = sbr.rel (%p246) target = $region32
      $region31: #{parallel_dropless_mlp_forward.1} parent=15 // pred_region
        %s249 = smul.u32 32, %s29
        %p250 = scmp.lt.s32.totalorder %s249, 159
        %s251 = scalar_select %p250, %s249, 159
        %s252 = smul.addr %s251, 8
        %s253 = scalar_lea.vmem %s5, %s252
        %s254 = smul.u32 32, %s29
      $region32: #{parallel_dropless_mlp_forward.1} parent=15 // pred_fallthru
        _
    $region16: #{parallel_dropless_mlp_forward.1} parent=5 // pred_fallthru
      _
    %p255 = scmp.le.s32.totalorder 1, %s22
    %p256 = scmp.lt.s32.totalorder %s22, 6
    %p257 = pnand %p255, %p256
    %p258 = pneg %p257
    // Predicated region
    $region33: #{parallel_dropless_mlp_forward.1} parent=5 // pred_check
      _
    $region34: #{parallel_dropless_mlp_forward.1} parent=5 // pred_check_branch
      %260 = sbr.rel (%p257) target = $region36
    $region35: #{parallel_dropless_mlp_forward.1} parent=5 // pred_region
      %s261 = ssub.s32 %s22, 1
      %s262 = smul.u32 32, %s31
      %p263 = scmp.lt.s32.totalorder %s262, 159
      %s264 = scalar_select %p263, %s262, 159
      %s265 = smul.addr %s264, 4
      %s266 = scalar_lea.vmem %s2, %s265
      %p267 = pneg %p60
      %p268 = pneg %p57
      %s269 = sld [smem:[#allocation4 + %s31]]
      %s270 = sld [smem:[#allocation5 + %s31]]
      %s271 = smul.u32 %s32, %s270
      %s272 = smul.u32 4, %s271
      %p273 = scmp.lt.s32.totalorder %s269, 3
      %s274 = scalar_select %p273, %s269, 3
      %p275 = scmp.lt.s32.totalorder %s272, 3
      %s276 = scalar_select %p275, %s272, 3
      %s277 = smul.addr %s274, 64
      %s278 = sadd.s32 %s276, %s277
      %s279 = smul.addr %s278, 4
      %s280 = scalar_lea.vmem %s3, %s279
      %p281 = pneg %p94
      %p282 = pneg %p91
      %s283 = sld [smem:[#allocation4 + %s31]]
      %s284 = sld [smem:[#allocation5 + %s31]]
      %s285 = smul.u32 %s32, %s284
      %s286 = smul.u32 64, %s285
      %p287 = scmp.lt.s32.totalorder %s283, 3
      %s288 = scalar_select %p287, %s283, 3
      %p289 = scmp.lt.s32.totalorder %s286, 63
      %s290 = scalar_select %p289, %s286, 63
      %s291 = smul.addr %s288, 64
      %s292 = sadd.s32 %s290, %s291
      %s293 = smul.addr %s292, 4
      %s294 = scalar_lea.vmem %s4, %s293
      %p295 = pneg %p128
      %p296 = pneg %p125
      %s297 = smul.u32 32, %s31
      %p298 = scmp.lt.s32.totalorder %s297, 159
      %s299 = scalar_select %p298, %s297, 159
      %s300 = smul.addr %s299, 8
      %s301 = scalar_lea.vmem %s5, %s300
      %p302 = pneg %p154
      %p303 = pneg %p151
      %p304 = pneg %p180
      %p305 = pneg %p177
      %s306 = smul.u32 32, %s31
      %p307 = scmp.lt.s32.totalorder %s306, 159
      %s308 = scalar_select %p307, %s306, 159
      %s309 = smul.addr %s308, 4
      %s310 = scalar_lea.vmem %s6, %s309
      %s311 = smul.u32 32, %s31
      %p312 = scmp.lt.s32.totalorder %s311, 159
      %s313 = scalar_select %p312, %s311, 159
      %s314 = smul.addr %s313, 4
      %s315 = scalar_lea.vmem %s2, %s314
      %s316 = smul.u32 32, %s31
      %s317 = sld [smem:[#allocation4 + %s31]]
      %s318 = sld [smem:[#allocation5 + %s31]]
      %s319 = smul.u32 %s32, %s318
      %s320 = smul.u32 4, %s319
      %p321 = scmp.lt.s32.totalorder %s317, 3
      %s322 = scalar_select %p321, %s317, 3
      %p323 = scmp.lt.s32.totalorder %s320, 3
      %s324 = scalar_select %p323, %s320, 3
      %s325 = smul.addr %s322, 64
      %s326 = sadd.s32 %s324, %s325
      %s327 = smul.addr %s326, 4
      %s328 = scalar_lea.vmem %s3, %s327
      %s329 = sld [smem:[#allocation4 + %s31]]
      %s330 = sld [smem:[#allocation5 + %s31]]
      %s331 = smul.u32 %s32, %s330
      %s332 = smul.u32 4, %s331
      %s333 = sld [smem:[#allocation4 + %s31]]
      %s334 = sld [smem:[#allocation5 + %s31]]
      %s335 = smul.u32 %s32, %s334
      %s336 = smul.u32 64, %s335
      %p337 = scmp.lt.s32.totalorder %s333, 3
      %s338 = scalar_select %p337, %s333, 3
      %p339 = scmp.lt.s32.totalorder %s336, 63
      %s340 = scalar_select %p339, %s336, 63
      %s341 = smul.addr %s338, 64
      %s342 = sadd.s32 %s340, %s341
      %s343 = smul.addr %s342, 4
      %s344 = scalar_lea.vmem %s4, %s343
      %s345 = sld [smem:[#allocation4 + %s31]]
      %s346 = sld [smem:[#allocation5 + %s31]]
      %s347 = smul.u32 %s32, %s346
      %s348 = smul.u32 64, %s347
      %s349 = smul.u32 32, %s31
      %p350 = scmp.lt.s32.totalorder %s349, 159
      %s351 = scalar_select %p350, %s349, 159
      %s352 = smul.addr %s351, 8
      %s353 = scalar_lea.vmem %s5, %s352
      %s354 = smul.u32 32, %s31
      %s355 = smul.u32 32, %s31
      %p356 = scmp.lt.s32.totalorder %s355, 159
      %s357 = scalar_select %p356, %s355, 159
      %s358 = smul.addr %s357, 4
      %s359 = scalar_lea.vmem %s6, %s358
      %s360 = smul.u32 32, %s31
      %s362 = sld [smem:[#allocation5 + %s31]]
      %p363 = scmp.ne.s32.totalorder %s362, 0
      %p364 = scmp.eq.s32.totalorder %s32, 0
      // Predicated region
      $region37: #{parallel_dropless_mlp_forward.1} parent=35 // pred_check
        %p365 = pneg %p364
      $region38: #{parallel_dropless_mlp_forward.1} parent=35 // pred_check_branch
        %367 = sbr.rel (%p365) target = $region40
      $region39: #{parallel_dropless_mlp_forward.1} parent=35 // pred_region
        %368 = vst [vmem:[#allocation2] sm:$0xff] 0.0
        %369 = vst [vmem:[#allocation2 + $0x8] sm:$0xff] 0.0
        %370 = vst [vmem:[#allocation2 + $0x10] sm:$0xff] 0.0
        %371 = vst [vmem:[#allocation2 + $0x18] sm:$0xff] 0.0
        %372 = vst [vmem:[#allocation2 + $0x20] sm:$0xff] 0.0
        %373 = vst [vmem:[#allocation2 + $0x28] sm:$0xff] 0.0
        %374 = vst [vmem:[#allocation2 + $0x30] sm:$0xff] 0.0
        %375 = vst [vmem:[#allocation2 + $0x38] sm:$0xff] 0.0
        %376 = vst [vmem:[#allocation2 + $0x40] sm:$0xff] 0.0
        %377 = vst [vmem:[#allocation2 + $0x48] sm:$0xff] 0.0
        %378 = vst [vmem:[#allocation2 + $0x50] sm:$0xff] 0.0
        %379 = vst [vmem:[#allocation2 + $0x58] sm:$0xff] 0.0
        %380 = vst [vmem:[#allocation2 + $0x60] sm:$0xff] 0.0
        %381 = vst [vmem:[#allocation2 + $0x68] sm:$0xff] 0.0
        %382 = vst [vmem:[#allocation2 + $0x70] sm:$0xff] 0.0
        %383 = vst [vmem:[#allocation2 + $0x78] sm:$0xff] 0.0
        %384 = vst [vmem:[#allocation2 + $0x80] sm:$0xff] 0.0
        %385 = vst [vmem:[#allocation2 + $0x88] sm:$0xff] 0.0
        %386 = vst [vmem:[#allocation2 + $0x90] sm:$0xff] 0.0
        %387 = vst [vmem:[#allocation2 + $0x98] sm:$0xff] 0.0
        %388 = vst [vmem:[#allocation2 + $0xa0] sm:$0xff] 0.0
        %389 = vst [vmem:[#allocation2 + $0xa8] sm:$0xff] 0.0
        %390 = vst [vmem:[#allocation2 + $0xb0] sm:$0xff] 0.0
        %391 = vst [vmem:[#allocation2 + $0xb8] sm:$0xff] 0.0
        %392 = vst [vmem:[#allocation2 + $0xc0] sm:$0xff] 0.0
        %393 = vst [vmem:[#allocation2 + $0xc8] sm:$0xff] 0.0
        %394 = vst [vmem:[#allocation2 + $0xd0] sm:$0xff] 0.0
        %395 = vst [vmem:[#allocation2 + $0xd8] sm:$0xff] 0.0
        %396 = vst [vmem:[#allocation2 + $0xe0] sm:$0xff] 0.0
        %397 = vst [vmem:[#allocation2 + $0xe8] sm:$0xff] 0.0
        %398 = vst [vmem:[#allocation2 + $0xf0] sm:$0xff] 0.0
        %399 = vst [vmem:[#allocation2 + $0xf8] sm:$0xff] 0.0
      $region40: #{parallel_dropless_mlp_forward.1} parent=35 // pred_fallthru
        _
      // Predicated region
      $region41: #{parallel_dropless_mlp_forward.1} parent=35 // pred_check
        %p400 = pneg %p363
      $region42: #{parallel_dropless_mlp_forward.1} parent=35 // pred_check_branch
        %402 = sbr.rel (%p400) target = $region44
      $region43: #{parallel_dropless_mlp_forward.1} parent=35 // pred_region
        %v403 = vld [vmem:[%s315] sm:$0xf]
        %v404 = vld [vmem:[%s315 + $0x4] sm:$0xf]
        %v405 = vld [vmem:[%s315 + $0x8] sm:$0xf]
        %v406 = vld [vmem:[%s315 + $0xc] sm:$0xf]
        %v407 = vld [vmem:[%s315 + $0x10] sm:$0xf]
        %v408 = vld [vmem:[%s315 + $0x14] sm:$0xf]
        %v409 = vld [vmem:[%s315 + $0x18] sm:$0xf]
        %v410 = vld [vmem:[%s315 + $0x1c] sm:$0xf]
        %v411 = vld [vmem:[%s315 + $0x20] sm:$0xf]
        %v412 = vld [vmem:[%s315 + $0x24] sm:$0xf]
        %v413 = vld [vmem:[%s315 + $0x28] sm:$0xf]
        %v414 = vld [vmem:[%s315 + $0x2c] sm:$0xf]
        %v415 = vld [vmem:[%s315 + $0x30] sm:$0xf]
        %v416 = vld [vmem:[%s315 + $0x34] sm:$0xf]
        %v417 = vld [vmem:[%s315 + $0x38] sm:$0xf]
        %v418 = vld [vmem:[%s315 + $0x3c] sm:$0xf]
        %v419 = vld [vmem:[%s315 + $0x40] sm:$0xf]
        %v420 = vld [vmem:[%s315 + $0x44] sm:$0xf]
        %v421 = vld [vmem:[%s315 + $0x48] sm:$0xf]
        %v422 = vld [vmem:[%s315 + $0x4c] sm:$0xf]
        %v423 = vld [vmem:[%s315 + $0x50] sm:$0xf]
        %v424 = vld [vmem:[%s315 + $0x54] sm:$0xf]
        %v425 = vld [vmem:[%s315 + $0x58] sm:$0xf]
        %v426 = vld [vmem:[%s315 + $0x5c] sm:$0xf]
        %v427 = vld [vmem:[%s315 + $0x60] sm:$0xf]
        %v428 = vld [vmem:[%s315 + $0x64] sm:$0xf]
        %v429 = vld [vmem:[%s315 + $0x68] sm:$0xf]
        %v430 = vld [vmem:[%s315 + $0x6c] sm:$0xf]
        %v431 = vld [vmem:[%s315 + $0x70] sm:$0xf]
        %v432 = vld [vmem:[%s315 + $0x74] sm:$0xf]
        %v433 = vld [vmem:[%s315 + $0x78] sm:$0xf]
        %v434 = vld [vmem:[%s315 + $0x7c] sm:$0xf]
        %v435 = vld [vmem:[%s328] sm:$0xff]
        %v436 = vld [vmem:[%s328 + $0x8] sm:$0xff]
        %v437 = vld [vmem:[%s328 + $0x10] sm:$0xff]
        %v438 = vld [vmem:[%s328 + $0x18] sm:$0xff]
        %v439 = vld [vmem:[%s328 + $0x20] sm:$0xff]
        %v440 = vld [vmem:[%s328 + $0x28] sm:$0xff]
        %v441 = vld [vmem:[%s328 + $0x30] sm:$0xff]
        %v442 = vld [vmem:[%s328 + $0x38] sm:$0xff]
        %v443 = vld [vmem:[%s328 + $0x40] sm:$0xff]
        %v444 = vld [vmem:[%s328 + $0x48] sm:$0xff]
        %v445 = vld [vmem:[%s328 + $0x50] sm:$0xff]
        %v446 = vld [vmem:[%s328 + $0x58] sm:$0xff]
        %v447 = vld [vmem:[%s328 + $0x60] sm:$0xff]
        %v448 = vld [vmem:[%s328 + $0x68] sm:$0xff]
        %v449 = vld [vmem:[%s328 + $0x70] sm:$0xff]
        %v450 = vld [vmem:[%s328 + $0x78] sm:$0xff]
        %v451 = vld [vmem:[%s328 + $0x80] sm:$0xff]
        %v452 = vld [vmem:[%s328 + $0x88] sm:$0xff]
        %v453 = vld [vmem:[%s328 + $0x90] sm:$0xff]
        %v454 = vld [vmem:[%s328 + $0x98] sm:$0xff]
        %v455 = vld [vmem:[%s328 + $0xa0] sm:$0xff]
        %v456 = vld [vmem:[%s328 + $0xa8] sm:$0xff]
        %v457 = vld [vmem:[%s328 + $0xb0] sm:$0xff]
        %v458 = vld [vmem:[%s328 + $0xb8] sm:$0xff]
        %v459 = vld [vmem:[%s328 + $0xc0] sm:$0xff]
        %v460 = vld [vmem:[%s328 + $0xc8] sm:$0xff]
        %v461 = vld [vmem:[%s328 + $0xd0] sm:$0xff]
        %v462 = vld [vmem:[%s328 + $0xd8] sm:$0xff]
        %v463 = vld [vmem:[%s328 + $0xe0] sm:$0xff]
        %v464 = vld [vmem:[%s328 + $0xe8] sm:$0xff]
        %v465 = vld [vmem:[%s328 + $0xf0] sm:$0xff]
        %v466 = vld [vmem:[%s328 + $0xf8] sm:$0xff]
        %v499 = vunpack.c.l.b16 %v403
        %v500 = vunpack.c.l.b16 %v404
        %v501 = vunpack.c.l.b16 %v405
        %v502 = vunpack.c.l.b16 %v406
        %v503 = vunpack.c.l.b16 %v407
        %v504 = vunpack.c.l.b16 %v408
        %v505 = vunpack.c.l.b16 %v409
        %v506 = vunpack.c.l.b16 %v410
        %v507 = vunpack.c.l.b16 %v411
        %v508 = vunpack.c.l.b16 %v412
        %v509 = vunpack.c.l.b16 %v413
        %v510 = vunpack.c.l.b16 %v414
        %v511 = vunpack.c.l.b16 %v415
        %v512 = vunpack.c.l.b16 %v416
        %v513 = vunpack.c.l.b16 %v417
        %v514 = vunpack.c.l.b16 %v418
        %v515 = vunpack.c.l.b16 %v419
        %v516 = vunpack.c.l.b16 %v420
        %v517 = vunpack.c.l.b16 %v421
        %v518 = vunpack.c.l.b16 %v422
        %v519 = vunpack.c.l.b16 %v423
        %v520 = vunpack.c.l.b16 %v424
        %v521 = vunpack.c.l.b16 %v425
        %v522 = vunpack.c.l.b16 %v426
        %v523 = vunpack.c.l.b16 %v427
        %v524 = vunpack.c.l.b16 %v428
        %v525 = vunpack.c.l.b16 %v429
        %v526 = vunpack.c.l.b16 %v430
        %v527 = vunpack.c.l.b16 %v431
        %v528 = vunpack.c.l.b16 %v432
        %v529 = vunpack.c.l.b16 %v433
        %v530 = vunpack.c.l.b16 %v434
        %v531 = vpack.c.b16 %v500, %v499
        %v532 = vpack.c.b16 %v502, %v501
        %v533 = vpack.c.b16 %v504, %v503
        %v534 = vpack.c.b16 %v506, %v505
        %v535 = vpack.c.b16 %v508, %v507
        %v536 = vpack.c.b16 %v510, %v509
        %v537 = vpack.c.b16 %v512, %v511
        %v538 = vpack.c.b16 %v514, %v513
        %v539 = vpack.c.b16 %v516, %v515
        %v540 = vpack.c.b16 %v518, %v517
        %v541 = vpack.c.b16 %v520, %v519
        %v542 = vpack.c.b16 %v522, %v521
        %v543 = vpack.c.b16 %v524, %v523
        %v544 = vpack.c.b16 %v526, %v525
        %v545 = vpack.c.b16 %v528, %v527
        %v546 = vpack.c.b16 %v530, %v529
        %v595 = vunpack.c.l.b16 %v435
        %v596 = vunpack.c.h.b16 %v435
        %v597 = vunpack.c.l.b16 %v436
        %v598 = vunpack.c.h.b16 %v436
        %v599 = vunpack.c.l.b16 %v437
        %v600 = vunpack.c.h.b16 %v437
        %v601 = vunpack.c.l.b16 %v438
        %v602 = vunpack.c.h.b16 %v438
        %v603 = vunpack.c.l.b16 %v439
        %v604 = vunpack.c.h.b16 %v439
        %v605 = vunpack.c.l.b16 %v440
        %v606 = vunpack.c.h.b16 %v440
        %v607 = vunpack.c.l.b16 %v441
        %v608 = vunpack.c.h.b16 %v441
        %v609 = vunpack.c.l.b16 %v442
        %v610 = vunpack.c.h.b16 %v442
        %v611 = vunpack.c.l.b16 %v443
        %v612 = vunpack.c.h.b16 %v443
        %v613 = vunpack.c.l.b16 %v444
        %v614 = vunpack.c.h.b16 %v444
        %v615 = vunpack.c.l.b16 %v445
        %v616 = vunpack.c.h.b16 %v445
        %v617 = vunpack.c.l.b16 %v446
        %v618 = vunpack.c.h.b16 %v446
        %v619 = vunpack.c.l.b16 %v447
        %v620 = vunpack.c.h.b16 %v447
        %v621 = vunpack.c.l.b16 %v448
        %v622 = vunpack.c.h.b16 %v448
        %v623 = vunpack.c.l.b16 %v449
        %v624 = vunpack.c.h.b16 %v449
        %v625 = vunpack.c.l.b16 %v450
        %v626 = vunpack.c.h.b16 %v450
        %v627 = vunpack.c.l.b16 %v451
        %v628 = vunpack.c.h.b16 %v451
        %v629 = vunpack.c.l.b16 %v452
        %v630 = vunpack.c.h.b16 %v452
        %v631 = vunpack.c.l.b16 %v453
        %v632 = vunpack.c.h.b16 %v453
        %v633 = vunpack.c.l.b16 %v454
        %v634 = vunpack.c.h.b16 %v454
        %v635 = vunpack.c.l.b16 %v455
        %v636 = vunpack.c.h.b16 %v455
        %v637 = vunpack.c.l.b16 %v456
        %v638 = vunpack.c.h.b16 %v456
        %v639 = vunpack.c.l.b16 %v457
        %v640 = vunpack.c.h.b16 %v457
        %v641 = vunpack.c.l.b16 %v458
        %v642 = vunpack.c.h.b16 %v458
        %v643 = vunpack.c.l.b16 %v459
        %v644 = vunpack.c.h.b16 %v459
        %v645 = vunpack.c.l.b16 %v460
        %v646 = vunpack.c.h.b16 %v460
        %v647 = vunpack.c.l.b16 %v461
        %v648 = vunpack.c.h.b16 %v461
        %v649 = vunpack.c.l.b16 %v462
        %v650 = vunpack.c.h.b16 %v462
        %v651 = vunpack.c.l.b16 %v463
        %v652 = vunpack.c.h.b16 %v463
        %v653 = vunpack.c.l.b16 %v464
        %v654 = vunpack.c.h.b16 %v464
        %v655 = vunpack.c.l.b16 %v465
        %v656 = vunpack.c.h.b16 %v465
        %v657 = vunpack.c.l.b16 %v466
        %v658 = vunpack.c.h.b16 %v466
        %v659 = vpack.c.b16 %v599, %v595
        %v660 = vpack.c.b16 %v600, %v596
        %v661 = vpack.c.b16 %v601, %v597
        %v662 = vpack.c.b16 %v602, %v598
        %v663 = vpack.c.b16 %v607, %v603
        %v664 = vpack.c.b16 %v608, %v604
        %v665 = vpack.c.b16 %v609, %v605
        %v666 = vpack.c.b16 %v610, %v606
        %v667 = vpack.c.b16 %v615, %v611
        %v668 = vpack.c.b16 %v616, %v612
        %v669 = vpack.c.b16 %v617, %v613
        %v670 = vpack.c.b16 %v618, %v614
        %v671 = vpack.c.b16 %v623, %v619
        %v672 = vpack.c.b16 %v624, %v620
        %v673 = vpack.c.b16 %v625, %v621
        %v674 = vpack.c.b16 %v626, %v622
        %v675 = vpack.c.b16 %v631, %v627
        %v676 = vpack.c.b16 %v632, %v628
        %v677 = vpack.c.b16 %v633, %v629
        %v678 = vpack.c.b16 %v634, %v630
        %v679 = vpack.c.b16 %v639, %v635
        %v680 = vpack.c.b16 %v640, %v636
        %v681 = vpack.c.b16 %v641, %v637
        %v682 = vpack.c.b16 %v642, %v638
        %v683 = vpack.c.b16 %v647, %v643
        %v684 = vpack.c.b16 %v648, %v644
        %v685 = vpack.c.b16 %v649, %v645
        %v686 = vpack.c.b16 %v650, %v646
        %v687 = vpack.c.b16 %v655, %v651
        %v688 = vpack.c.b16 %v656, %v652
        %v689 = vpack.c.b16 %v657, %v653
        %v690 = vpack.c.b16 %v658, %v654
        %723 = vmatprep.subr.bf16.mxu0 %v660
        %724 = vmatpush1.bf16.msra.mxu0 %v659
        %725 = vmatprep.subr.bf16.mxu0 %v664
        %726 = vmatpush1.bf16.msra.mxu0 %v663
        %727 = vmatprep.subr.bf16.mxu0 %v668
        %728 = vmatpush1.bf16.msra.mxu0 %v667
        %729 = vmatprep.subr.bf16.mxu0 %v672
        %730 = vmatpush1.bf16.msra.mxu0 %v671
        %731 = vmatprep.subr.bf16.mxu0 %v676
        %732 = vmatpush1.bf16.msra.mxu0 %v675
        %733 = vmatprep.subr.bf16.mxu0 %v680
        %734 = vmatpush1.bf16.msra.mxu0 %v679
        %735 = vmatprep.subr.bf16.mxu0 %v684
        %736 = vmatpush1.bf16.msra.mxu0 %v683
        %737 = vmatprep.subr.bf16.mxu0 %v688
        %738 = vmatpush1.bf16.msra.mxu0 %v687
        %739 = vmatprep.subr.bf16.mxu0 0
        %740 = vmatpush1.bf16.msra.mxu0 0
        %741 = vmatprep.subr.bf16.mxu0 0
        %742 = vmatpush1.bf16.msra.mxu0 0
        %743 = vmatprep.subr.bf16.mxu0 0
        %744 = vmatpush1.bf16.msra.mxu0 0
        %745 = vmatprep.subr.bf16.mxu0 0
        %746 = vmatpush1.bf16.msra.mxu0 0
        %747 = vmatprep.subr.bf16.mxu0 0
        %748 = vmatpush1.bf16.msra.mxu0 0
        %749 = vmatprep.subr.bf16.mxu0 0
        %750 = vmatpush1.bf16.msra.mxu0 0
        %751 = vmatprep.subr.bf16.mxu0 0
        %752 = vmatpush1.bf16.msra.mxu0 0
        %753 = vmatprep.subr.bf16.mxu0 0
        %754 = vmatpush1.bf16.msra.mxu0 0
        %755 = vmatprep.mubr.bf16.mxu0 0
        %756 = vmatmul.mubr.bf16.gmra.mrb[0].mxu0 %v531
        %v757 = vpop.f32.mrb[0].mxu0
        %v758 = vadd.f32 0.0, %v757
        %v759 = vpop.f32.mrb[0].mxu0
        %v760 = vadd.f32 0.0, %v759
        %v761 = vpop.f32.mrb[0].mxu0
        %v762 = vadd.f32 0.0, %v761
        %v763 = vpop.f32.mrb[0].mxu0
        %v764 = vadd.f32 0.0, %v763
        %765 = vmatprep.mubr.bf16.mxu0 0
        %766 = vmatmul.mubr.bf16.gmra.mrb[0].mxu0 %v532
        %v767 = vpop.f32.mrb[0].mxu0
        %v768 = vadd.f32 0.0, %v767
        %v769 = vpop.f32.mrb[0].mxu0
        %v770 = vadd.f32 0.0, %v769
        %v771 = vpop.f32.mrb[0].mxu0
        %v772 = vadd.f32 0.0, %v771
        %v773 = vpop.f32.mrb[0].mxu0
        %v774 = vadd.f32 0.0, %v773
        %775 = vmatprep.mubr.bf16.mxu0 0
        %776 = vmatmul.mubr.bf16.gmra.mrb[0].mxu0 %v533
        %v777 = vpop.f32.mrb[0].mxu0
        %v778 = vadd.f32 0.0, %v777
        %v779 = vpop.f32.mrb[0].mxu0
        %v780 = vadd.f32 0.0, %v779
        %v781 = vpop.f32.mrb[0].mxu0
        %v782 = vadd.f32 0.0, %v781
        %v783 = vpop.f32.mrb[0].mxu0
        %v784 = vadd.f32 0.0, %v783
        %785 = vmatprep.mubr.bf16.mxu0 0
        %786 = vmatmul.mubr.bf16.gmra.mrb[0].mxu0 %v534
        %v787 = vpop.f32.mrb[0].mxu0
        %v788 = vadd.f32 0.0, %v787
        %v789 = vpop.f32.mrb[0].mxu0
        %v790 = vadd.f32 0.0, %v789
        %v791 = vpop.f32.mrb[0].mxu0
        %v792 = vadd.f32 0.0, %v791
        %v793 = vpop.f32.mrb[0].mxu0
        %v794 = vadd.f32 0.0, %v793
        %795 = vmatprep.mubr.bf16.mxu0 0
        %796 = vmatmul.mubr.bf16.gmra.mrb[0].mxu0 %v535
        %v797 = vpop.f32.mrb[0].mxu0
        %v798 = vadd.f32 0.0, %v797
        %v799 = vpop.f32.mrb[0].mxu0
        %v800 = vadd.f32 0.0, %v799
        %v801 = vpop.f32.mrb[0].mxu0
        %v802 = vadd.f32 0.0, %v801
        %v803 = vpop.f32.mrb[0].mxu0
        %v804 = vadd.f32 0.0, %v803
        %805 = vmatprep.mubr.bf16.mxu0 0
        %806 = vmatmul.mubr.bf16.gmra.mrb[0].mxu0 %v536
        %v807 = vpop.f32.mrb[0].mxu0
        %v808 = vadd.f32 0.0, %v807
        %v809 = vpop.f32.mrb[0].mxu0
        %v810 = vadd.f32 0.0, %v809
        %v811 = vpop.f32.mrb[0].mxu0
        %v812 = vadd.f32 0.0, %v811
        %v813 = vpop.f32.mrb[0].mxu0
        %v814 = vadd.f32 0.0, %v813
        %815 = vmatprep.mubr.bf16.mxu0 0
        %816 = vmatmul.mubr.bf16.gmra.mrb[0].mxu0 %v537
        %v817 = vpop.f32.mrb[0].mxu0
        %v818 = vadd.f32 0.0, %v817
        %v819 = vpop.f32.mrb[0].mxu0
        %v820 = vadd.f32 0.0, %v819
        %v821 = vpop.f32.mrb[0].mxu0
        %v822 = vadd.f32 0.0, %v821
        %v823 = vpop.f32.mrb[0].mxu0
        %v824 = vadd.f32 0.0, %v823
        %825 = vmatprep.mubr.bf16.mxu0 0
        %826 = vmatmul.mubr.bf16.gmra.mrb[0].mxu0 %v538
        %v827 = vpop.f32.mrb[0].mxu0
        %v828 = vadd.f32 0.0, %v827
        %v829 = vpop.f32.mrb[0].mxu0
        %v830 = vadd.f32 0.0, %v829
        %v831 = vpop.f32.mrb[0].mxu0
        %v832 = vadd.f32 0.0, %v831
        %v833 = vpop.f32.mrb[0].mxu0
        %v834 = vadd.f32 0.0, %v833
        %835 = vmatprep.mubr.bf16.mxu0 0
        %836 = vmatmul.mubr.bf16.gmra.mrb[0].mxu0 %v539
        %v837 = vpop.f32.mrb[0].mxu0
        %v838 = vadd.f32 0.0, %v837
        %v839 = vpop.f32.mrb[0].mxu0
        %v840 = vadd.f32 0.0, %v839
        %v841 = vpop.f32.mrb[0].mxu0
        %v842 = vadd.f32 0.0, %v841
        %v843 = vpop.f32.mrb[0].mxu0
        %v844 = vadd.f32 0.0, %v843
        %845 = vmatprep.mubr.bf16.mxu0 0
        %846 = vmatmul.mubr.bf16.gmra.mrb[0].mxu0 %v540
        %v847 = vpop.f32.mrb[0].mxu0
        %v848 = vadd.f32 0.0, %v847
        %v849 = vpop.f32.mrb[0].mxu0
        %v850 = vadd.f32 0.0, %v849
        %v851 = vpop.f32.mrb[0].mxu0
        %v852 = vadd.f32 0.0, %v851
        %v853 = vpop.f32.mrb[0].mxu0
        %v854 = vadd.f32 0.0, %v853
        %855 = vmatprep.mubr.bf16.mxu0 0
        %856 = vmatmul.mubr.bf16.gmra.mrb[0].mxu0 %v541
        %v857 = vpop.f32.mrb[0].mxu0
        %v858 = vadd.f32 0.0, %v857
        %v859 = vpop.f32.mrb[0].mxu0
        %v860 = vadd.f32 0.0, %v859
        %v861 = vpop.f32.mrb[0].mxu0
        %v862 = vadd.f32 0.0, %v861
        %v863 = vpop.f32.mrb[0].mxu0
        %v864 = vadd.f32 0.0, %v863
        %865 = vmatprep.mubr.bf16.mxu0 0
        %866 = vmatmul.mubr.bf16.gmra.mrb[0].mxu0 %v542
        %v867 = vpop.f32.mrb[0].mxu0
        %v868 = vadd.f32 0.0, %v867
        %v869 = vpop.f32.mrb[0].mxu0
        %v870 = vadd.f32 0.0, %v869
        %v871 = vpop.f32.mrb[0].mxu0
        %v872 = vadd.f32 0.0, %v871
        %v873 = vpop.f32.mrb[0].mxu0
        %v874 = vadd.f32 0.0, %v873
        %875 = vmatprep.mubr.bf16.mxu0 0
        %876 = vmatmul.mubr.bf16.gmra.mrb[0].mxu0 %v543
        %v877 = vpop.f32.mrb[0].mxu0
        %v878 = vadd.f32 0.0, %v877
        %v879 = vpop.f32.mrb[0].mxu0
        %v880 = vadd.f32 0.0, %v879
        %v881 = vpop.f32.mrb[0].mxu0
        %v882 = vadd.f32 0.0, %v881
        %v883 = vpop.f32.mrb[0].mxu0
        %v884 = vadd.f32 0.0, %v883
        %885 = vmatprep.mubr.bf16.mxu0 0
        %886 = vmatmul.mubr.bf16.gmra.mrb[0].mxu0 %v544
        %v887 = vpop.f32.mrb[0].mxu0
        %v888 = vadd.f32 0.0, %v887
        %v889 = vpop.f32.mrb[0].mxu0
        %v890 = vadd.f32 0.0, %v889
        %v891 = vpop.f32.mrb[0].mxu0
        %v892 = vadd.f32 0.0, %v891
        %v893 = vpop.f32.mrb[0].mxu0
        %v894 = vadd.f32 0.0, %v893
        %895 = vmatprep.mubr.bf16.mxu0 0
        %896 = vmatmul.mubr.bf16.gmra.mrb[0].mxu0 %v545
        %v897 = vpop.f32.mrb[0].mxu0
        %v898 = vadd.f32 0.0, %v897
        %v899 = vpop.f32.mrb[0].mxu0
        %v900 = vadd.f32 0.0, %v899
        %v901 = vpop.f32.mrb[0].mxu0
        %v902 = vadd.f32 0.0, %v901
        %v903 = vpop.f32.mrb[0].mxu0
        %v904 = vadd.f32 0.0, %v903
        %905 = vmatprep.mubr.bf16.mxu0 0
        %906 = vmatmul.mubr.bf16.gmra.mrb[0].mxu0 %v546
        %v907 = vpop.f32.mrb[0].mxu0
        %v908 = vadd.f32 0.0, %v907
        %v909 = vpop.f32.mrb[0].mxu0
        %v910 = vadd.f32 0.0, %v909
        %v911 = vpop.f32.mrb[0].mxu0
        %v912 = vadd.f32 0.0, %v911
        %v913 = vpop.f32.mrb[0].mxu0
        %v914 = vadd.f32 0.0, %v913
        %915 = vdwg.mxu0
        %916 = vmatprep.subr.bf16.mxu0 %v662
        %917 = vmatpush1.bf16.msra.mxu0 %v661
        %918 = vmatprep.subr.bf16.mxu0 %v666
        %919 = vmatpush1.bf16.msra.mxu0 %v665
        %920 = vmatprep.subr.bf16.mxu0 %v670
        %921 = vmatpush1.bf16.msra.mxu0 %v669
        %922 = vmatprep.subr.bf16.mxu0 %v674
        %923 = vmatpush1.bf16.msra.mxu0 %v673
        %924 = vmatprep.subr.bf16.mxu0 %v678
        %925 = vmatpush1.bf16.msra.mxu0 %v677
        %926 = vmatprep.subr.bf16.mxu0 %v682
        %927 = vmatpush1.bf16.msra.mxu0 %v681
        %928 = vmatprep.subr.bf16.mxu0 %v686
        %929 = vmatpush1.bf16.msra.mxu0 %v685
        %930 = vmatprep.subr.bf16.mxu0 %v690
        %931 = vmatpush1.bf16.msra.mxu0 %v689
        %932 = vmatprep.subr.bf16.mxu0 0
        %933 = vmatpush1.bf16.msra.mxu0 0
        %934 = vmatprep.subr.bf16.mxu0 0
        %935 = vmatpush1.bf16.msra.mxu0 0
        %936 = vmatprep.subr.bf16.mxu0 0
        %937 = vmatpush1.bf16.msra.mxu0 0
        %938 = vmatprep.subr.bf16.mxu0 0
        %939 = vmatpush1.bf16.msra.mxu0 0
        %940 = vmatprep.subr.bf16.mxu0 0
        %941 = vmatpush1.bf16.msra.mxu0 0
        %942 = vmatprep.subr.bf16.mxu0 0
        %943 = vmatpush1.bf16.msra.mxu0 0
        %944 = vmatprep.subr.bf16.mxu0 0
        %945 = vmatpush1.bf16.msra.mxu0 0
        %946 = vmatprep.subr.bf16.mxu0 0
        %947 = vmatpush1.bf16.msra.mxu0 0
        %948 = vmatprep.mubr.bf16.mxu0 0
        %949 = vmatmul.mubr.bf16.gmra.mrb[0].mxu0 %v531
        %v950 = vpop.f32.mrb[0].mxu0
        %v951 = vadd.f32 0.0, %v950
        %v952 = vpop.f32.mrb[0].mxu0
        %v953 = vadd.f32 0.0, %v952
        %v954 = vpop.f32.mrb[0].mxu0
        %v955 = vadd.f32 0.0, %v954
        %v956 = vpop.f32.mrb[0].mxu0
        %v957 = vadd.f32 0.0, %v956
        %958 = vmatprep.mubr.bf16.mxu0 0
        %959 = vmatmul.mubr.bf16.gmra.mrb[0].mxu0 %v532
        %v960 = vpop.f32.mrb[0].mxu0
        %v961 = vadd.f32 0.0, %v960
        %v962 = vpop.f32.mrb[0].mxu0
        %v963 = vadd.f32 0.0, %v962
        %v964 = vpop.f32.mrb[0].mxu0
        %v965 = vadd.f32 0.0, %v964
        %v966 = vpop.f32.mrb[0].mxu0
        %v967 = vadd.f32 0.0, %v966
        %968 = vmatprep.mubr.bf16.mxu0 0
        %969 = vmatmul.mubr.bf16.gmra.mrb[0].mxu0 %v533
        %v970 = vpop.f32.mrb[0].mxu0
        %v971 = vadd.f32 0.0, %v970
        %v972 = vpop.f32.mrb[0].mxu0
        %v973 = vadd.f32 0.0, %v972
        %v974 = vpop.f32.mrb[0].mxu0
        %v975 = vadd.f32 0.0, %v974
        %v976 = vpop.f32.mrb[0].mxu0
        %v977 = vadd.f32 0.0, %v976
        %978 = vmatprep.mubr.bf16.mxu0 0
        %979 = vmatmul.mubr.bf16.gmra.mrb[0].mxu0 %v534
        %v980 = vpop.f32.mrb[0].mxu0
        %v981 = vadd.f32 0.0, %v980
        %v982 = vpop.f32.mrb[0].mxu0
        %v983 = vadd.f32 0.0, %v982
        %v984 = vpop.f32.mrb[0].mxu0
        %v985 = vadd.f32 0.0, %v984
        %v986 = vpop.f32.mrb[0].mxu0
        %v987 = vadd.f32 0.0, %v986
        %988 = vmatprep.mubr.bf16.mxu0 0
        %989 = vmatmul.mubr.bf16.gmra.mrb[0].mxu0 %v535
        %v990 = vpop.f32.mrb[0].mxu0
        %v991 = vadd.f32 0.0, %v990
        %v992 = vpop.f32.mrb[0].mxu0
        %v993 = vadd.f32 0.0, %v992
        %v994 = vpop.f32.mrb[0].mxu0
        %v995 = vadd.f32 0.0, %v994
        %v996 = vpop.f32.mrb[0].mxu0
        %v997 = vadd.f32 0.0, %v996
        %998 = vmatprep.mubr.bf16.mxu0 0
        %999 = vmatmul.mubr.bf16.gmra.mrb[0].mxu0 %v536
        %v1000 = vpop.f32.mrb[0].mxu0
        %v1001 = vadd.f32 0.0, %v1000
        %v1002 = vpop.f32.mrb[0].mxu0
        %v1003 = vadd.f32 0.0, %v1002
        %v1004 = vpop.f32.mrb[0].mxu0
        %v1005 = vadd.f32 0.0, %v1004
        %v1006 = vpop.f32.mrb[0].mxu0
        %v1007 = vadd.f32 0.0, %v1006
        %1008 = vmatprep.mubr.bf16.mxu0 0
        %1009 = vmatmul.mubr.bf16.gmra.mrb[0].mxu0 %v537
        %v1010 = vpop.f32.mrb[0].mxu0
        %v1011 = vadd.f32 0.0, %v1010
        %v1012 = vpop.f32.mrb[0].mxu0
        %v1013 = vadd.f32 0.0, %v1012
        %v1014 = vpop.f32.mrb[0].mxu0
        %v1015 = vadd.f32 0.0, %v1014
        %v1016 = vpop.f32.mrb[0].mxu0
        %v1017 = vadd.f32 0.0, %v1016
        %1018 = vmatprep.mubr.bf16.mxu0 0
        %1019 = vmatmul.mubr.bf16.gmra.mrb[0].mxu0 %v538
        %v1020 = vpop.f32.mrb[0].mxu0
        %v1021 = vadd.f32 0.0, %v1020
        %v1022 = vpop.f32.mrb[0].mxu0
        %v1023 = vadd.f32 0.0, %v1022
        %v1024 = vpop.f32.mrb[0].mxu0
        %v1025 = vadd.f32 0.0, %v1024
        %v1026 = vpop.f32.mrb[0].mxu0
        %v1027 = vadd.f32 0.0, %v1026
        %1028 = vmatprep.mubr.bf16.mxu0 0
        %1029 = vmatmul.mubr.bf16.gmra.mrb[0].mxu0 %v539
        %v1030 = vpop.f32.mrb[0].mxu0
        %v1031 = vadd.f32 0.0, %v1030
        %v1032 = vpop.f32.mrb[0].mxu0
        %v1033 = vadd.f32 0.0, %v1032
        %v1034 = vpop.f32.mrb[0].mxu0
        %v1035 = vadd.f32 0.0, %v1034
        %v1036 = vpop.f32.mrb[0].mxu0
        %v1037 = vadd.f32 0.0, %v1036
        %1038 = vmatprep.mubr.bf16.mxu0 0
        %1039 = vmatmul.mubr.bf16.gmra.mrb[0].mxu0 %v540
        %v1040 = vpop.f32.mrb[0].mxu0
        %v1041 = vadd.f32 0.0, %v1040
        %v1042 = vpop.f32.mrb[0].mxu0
        %v1043 = vadd.f32 0.0, %v1042
        %v1044 = vpop.f32.mrb[0].mxu0
        %v1045 = vadd.f32 0.0, %v1044
        %v1046 = vpop.f32.mrb[0].mxu0
        %v1047 = vadd.f32 0.0, %v1046
        %1048 = vmatprep.mubr.bf16.mxu0 0
        %1049 = vmatmul.mubr.bf16.gmra.mrb[0].mxu0 %v541
        %v1050 = vpop.f32.mrb[0].mxu0
        %v1051 = vadd.f32 0.0, %v1050
        %v1052 = vpop.f32.mrb[0].mxu0
        %v1053 = vadd.f32 0.0, %v1052
        %v1054 = vpop.f32.mrb[0].mxu0
        %v1055 = vadd.f32 0.0, %v1054
        %v1056 = vpop.f32.mrb[0].mxu0
        %v1057 = vadd.f32 0.0, %v1056
        %1058 = vmatprep.mubr.bf16.mxu0 0
        %1059 = vmatmul.mubr.bf16.gmra.mrb[0].mxu0 %v542
        %v1060 = vpop.f32.mrb[0].mxu0
        %v1061 = vadd.f32 0.0, %v1060
        %v1062 = vpop.f32.mrb[0].mxu0
        %v1063 = vadd.f32 0.0, %v1062
        %v1064 = vpop.f32.mrb[0].mxu0
        %v1065 = vadd.f32 0.0, %v1064
        %v1066 = vpop.f32.mrb[0].mxu0
        %v1067 = vadd.f32 0.0, %v1066
        %1068 = vmatprep.mubr.bf16.mxu0 0
        %1069 = vmatmul.mubr.bf16.gmra.mrb[0].mxu0 %v543
        %v1070 = vpop.f32.mrb[0].mxu0
        %v1071 = vadd.f32 0.0, %v1070
        %v1072 = vpop.f32.mrb[0].mxu0
        %v1073 = vadd.f32 0.0, %v1072
        %v1074 = vpop.f32.mrb[0].mxu0
        %v1075 = vadd.f32 0.0, %v1074
        %v1076 = vpop.f32.mrb[0].mxu0
        %v1077 = vadd.f32 0.0, %v1076
        %1078 = vmatprep.mubr.bf16.mxu0 0
        %1079 = vmatmul.mubr.bf16.gmra.mrb[0].mxu0 %v544
        %v1080 = vpop.f32.mrb[0].mxu0
        %v1081 = vadd.f32 0.0, %v1080
        %v1082 = vpop.f32.mrb[0].mxu0
        %v1083 = vadd.f32 0.0, %v1082
        %v1084 = vpop.f32.mrb[0].mxu0
        %v1085 = vadd.f32 0.0, %v1084
        %v1086 = vpop.f32.mrb[0].mxu0
        %v1087 = vadd.f32 0.0, %v1086
        %1088 = vmatprep.mubr.bf16.mxu0 0
        %1089 = vmatmul.mubr.bf16.gmra.mrb[0].mxu0 %v545
        %v1090 = vpop.f32.mrb[0].mxu0
        %v1091 = vadd.f32 0.0, %v1090
        %v1092 = vpop.f32.mrb[0].mxu0
        %v1093 = vadd.f32 0.0, %v1092
        %v1094 = vpop.f32.mrb[0].mxu0
        %v1095 = vadd.f32 0.0, %v1094
        %v1096 = vpop.f32.mrb[0].mxu0
        %v1097 = vadd.f32 0.0, %v1096
        %1098 = vmatprep.mubr.bf16.mxu0 0
        %1099 = vmatmul.mubr.bf16.gmra.mrb[0].mxu0 %v546
        %v1100 = vpop.f32.mrb[0].mxu0
        %v1101 = vadd.f32 0.0, %v1100
        %v1102 = vpop.f32.mrb[0].mxu0
        %v1103 = vadd.f32 0.0, %v1102
        %v1104 = vpop.f32.mrb[0].mxu0
        %v1105 = vadd.f32 0.0, %v1104
        %v1106 = vpop.f32.mrb[0].mxu0
        %v1107 = vadd.f32 0.0, %v1106
        %1108 = vdwg.mxu0
        %v1109 = vmul.f32 %v758, %v758
        %v1110 = vmul.f32 %v760, %v760
        %v1111 = vmul.f32 %v951, %v951
        %v1112 = vmul.f32 %v953, %v953
        %v1113 = vmul.f32 %v762, %v762
        %v1114 = vmul.f32 %v764, %v764
        %v1115 = vmul.f32 %v955, %v955
        %v1116 = vmul.f32 %v957, %v957
        %v1117 = vmul.f32 %v768, %v768
        %v1118 = vmul.f32 %v770, %v770
        %v1119 = vmul.f32 %v961, %v961
        %v1120 = vmul.f32 %v963, %v963
        %v1121 = vmul.f32 %v772, %v772
        %v1122 = vmul.f32 %v774, %v774
        %v1123 = vmul.f32 %v965, %v965
        %v1124 = vmul.f32 %v967, %v967
        %v1125 = vmul.f32 %v778, %v778
        %v1126 = vmul.f32 %v780, %v780
        %v1127 = vmul.f32 %v971, %v971
        %v1128 = vmul.f32 %v973, %v973
        %v1129 = vmul.f32 %v782, %v782
        %v1130 = vmul.f32 %v784, %v784
        %v1131 = vmul.f32 %v975, %v975
        %v1132 = vmul.f32 %v977, %v977
        %v1133 = vmul.f32 %v788, %v788
        %v1134 = vmul.f32 %v790, %v790
        %v1135 = vmul.f32 %v981, %v981
        %v1136 = vmul.f32 %v983, %v983
        %v1137 = vmul.f32 %v792, %v792
        %v1138 = vmul.f32 %v794, %v794
        %v1139 = vmul.f32 %v985, %v985
        %v1140 = vmul.f32 %v987, %v987
        %v1141 = vmul.f32 %v798, %v798
        %v1142 = vmul.f32 %v800, %v800
        %v1143 = vmul.f32 %v991, %v991
        %v1144 = vmul.f32 %v993, %v993
        %v1145 = vmul.f32 %v802, %v802
        %v1146 = vmul.f32 %v804, %v804
        %v1147 = vmul.f32 %v995, %v995
        %v1148 = vmul.f32 %v997, %v997
        %v1149 = vmul.f32 %v808, %v808
        %v1150 = vmul.f32 %v810, %v810
        %v1151 = vmul.f32 %v1001, %v1001
        %v1152 = vmul.f32 %v1003, %v1003
        %v1153 = vmul.f32 %v812, %v812
        %v1154 = vmul.f32 %v814, %v814
        %v1155 = vmul.f32 %v1005, %v1005
        %v1156 = vmul.f32 %v1007, %v1007
        %v1157 = vmul.f32 %v818, %v818
        %v1158 = vmul.f32 %v820, %v820
        %v1159 = vmul.f32 %v1011, %v1011
        %v1160 = vmul.f32 %v1013, %v1013
        %v1161 = vmul.f32 %v822, %v822
        %v1162 = vmul.f32 %v824, %v824
        %v1163 = vmul.f32 %v1015, %v1015
        %v1164 = vmul.f32 %v1017, %v1017
        %v1165 = vmul.f32 %v828, %v828
        %v1166 = vmul.f32 %v830, %v830
        %v1167 = vmul.f32 %v1021, %v1021
        %v1168 = vmul.f32 %v1023, %v1023
        %v1169 = vmul.f32 %v832, %v832
        %v1170 = vmul.f32 %v834, %v834
        %v1171 = vmul.f32 %v1025, %v1025
        %v1172 = vmul.f32 %v1027, %v1027
        %v1173 = vmul.f32 %v838, %v838
        %v1174 = vmul.f32 %v840, %v840
        %v1175 = vmul.f32 %v1031, %v1031
        %v1176 = vmul.f32 %v1033, %v1033
        %v1177 = vmul.f32 %v842, %v842
        %v1178 = vmul.f32 %v844, %v844
        %v1179 = vmul.f32 %v1035, %v1035
        %v1180 = vmul.f32 %v1037, %v1037
        %v1181 = vmul.f32 %v848, %v848
        %v1182 = vmul.f32 %v850, %v850
        %v1183 = vmul.f32 %v1041, %v1041
        %v1184 = vmul.f32 %v1043, %v1043
        %v1185 = vmul.f32 %v852, %v852
        %v1186 = vmul.f32 %v854, %v854
        %v1187 = vmul.f32 %v1045, %v1045
        %v1188 = vmul.f32 %v1047, %v1047
        %v1189 = vmul.f32 %v858, %v858
        %v1190 = vmul.f32 %v860, %v860
        %v1191 = vmul.f32 %v1051, %v1051
        %v1192 = vmul.f32 %v1053, %v1053
        %v1193 = vmul.f32 %v862, %v862
        %v1194 = vmul.f32 %v864, %v864
        %v1195 = vmul.f32 %v1055, %v1055
        %v1196 = vmul.f32 %v1057, %v1057
        %v1197 = vmul.f32 %v868, %v868
        %v1198 = vmul.f32 %v870, %v870
        %v1199 = vmul.f32 %v1061, %v1061
        %v1200 = vmul.f32 %v1063, %v1063
        %v1201 = vmul.f32 %v872, %v872
        %v1202 = vmul.f32 %v874, %v874
        %v1203 = vmul.f32 %v1065, %v1065
        %v1204 = vmul.f32 %v1067, %v1067
        %v1205 = vmul.f32 %v878, %v878
        %v1206 = vmul.f32 %v880, %v880
        %v1207 = vmul.f32 %v1071, %v1071
        %v1208 = vmul.f32 %v1073, %v1073
        %v1209 = vmul.f32 %v882, %v882
        %v1210 = vmul.f32 %v884, %v884
        %v1211 = vmul.f32 %v1075, %v1075
        %v1212 = vmul.f32 %v1077, %v1077
        %v1213 = vmul.f32 %v888, %v888
        %v1214 = vmul.f32 %v890, %v890
        %v1215 = vmul.f32 %v1081, %v1081
        %v1216 = vmul.f32 %v1083, %v1083
        %v1217 = vmul.f32 %v892, %v892
        %v1218 = vmul.f32 %v894, %v894
        %v1219 = vmul.f32 %v1085, %v1085
        %v1220 = vmul.f32 %v1087, %v1087
        %v1221 = vmul.f32 %v898, %v898
        %v1222 = vmul.f32 %v900, %v900
        %v1223 = vmul.f32 %v1091, %v1091
        %v1224 = vmul.f32 %v1093, %v1093
        %v1225 = vmul.f32 %v902, %v902
        %v1226 = vmul.f32 %v904, %v904
        %v1227 = vmul.f32 %v1095, %v1095
        %v1228 = vmul.f32 %v1097, %v1097
        %v1229 = vmul.f32 %v908, %v908
        %v1230 = vmul.f32 %v910, %v910
        %v1231 = vmul.f32 %v1101, %v1101
        %v1232 = vmul.f32 %v1103, %v1103
        %v1233 = vmul.f32 %v912, %v912
        %v1234 = vmul.f32 %v914, %v914
        %v1235 = vmul.f32 %v1105, %v1105
        %v1236 = vmul.f32 %v1107, %v1107
        %v1237 = vmul.f32 %v758, %v1109
        %v1238 = vmul.f32 %v760, %v1110
        %v1239 = vmul.f32 %v951, %v1111
        %v1240 = vmul.f32 %v953, %v1112
        %v1241 = vmul.f32 %v762, %v1113
        %v1242 = vmul.f32 %v764, %v1114
        %v1243 = vmul.f32 %v955, %v1115
        %v1244 = vmul.f32 %v957, %v1116
        %v1245 = vmul.f32 %v768, %v1117
        %v1246 = vmul.f32 %v770, %v1118
        %v1247 = vmul.f32 %v961, %v1119
        %v1248 = vmul.f32 %v963, %v1120
        %v1249 = vmul.f32 %v772, %v1121
        %v1250 = vmul.f32 %v774, %v1122
        %v1251 = vmul.f32 %v965, %v1123
        %v1252 = vmul.f32 %v967, %v1124
        %v1253 = vmul.f32 %v778, %v1125
        %v1254 = vmul.f32 %v780, %v1126
        %v1255 = vmul.f32 %v971, %v1127
        %v1256 = vmul.f32 %v973, %v1128
        %v1257 = vmul.f32 %v782, %v1129
        %v1258 = vmul.f32 %v784, %v1130
        %v1259 = vmul.f32 %v975, %v1131
        %v1260 = vmul.f32 %v977, %v1132
        %v1261 = vmul.f32 %v788, %v1133
        %v1262 = vmul.f32 %v790, %v1134
        %v1263 = vmul.f32 %v981, %v1135
        %v1264 = vmul.f32 %v983, %v1136
        %v1265 = vmul.f32 %v792, %v1137
        %v1266 = vmul.f32 %v794, %v1138
        %v1267 = vmul.f32 %v985, %v1139
        %v1268 = vmul.f32 %v987, %v1140
        %v1269 = vmul.f32 %v798, %v1141
        %v1270 = vmul.f32 %v800, %v1142
        %v1271 = vmul.f32 %v991, %v1143
        %v1272 = vmul.f32 %v993, %v1144
        %v1273 = vmul.f32 %v802, %v1145
        %v1274 = vmul.f32 %v804, %v1146
        %v1275 = vmul.f32 %v995, %v1147
        %v1276 = vmul.f32 %v997, %v1148
        %v1277 = vmul.f32 %v808, %v1149
        %v1278 = vmul.f32 %v810, %v1150
        %v1279 = vmul.f32 %v1001, %v1151
        %v1280 = vmul.f32 %v1003, %v1152
        %v1281 = vmul.f32 %v812, %v1153
        %v1282 = vmul.f32 %v814, %v1154
        %v1283 = vmul.f32 %v1005, %v1155
        %v1284 = vmul.f32 %v1007, %v1156
        %v1285 = vmul.f32 %v818, %v1157
        %v1286 = vmul.f32 %v820, %v1158
        %v1287 = vmul.f32 %v1011, %v1159
        %v1288 = vmul.f32 %v1013, %v1160
        %v1289 = vmul.f32 %v822, %v1161
        %v1290 = vmul.f32 %v824, %v1162
        %v1291 = vmul.f32 %v1015, %v1163
        %v1292 = vmul.f32 %v1017, %v1164
        %v1293 = vmul.f32 %v828, %v1165
        %v1294 = vmul.f32 %v830, %v1166
        %v1295 = vmul.f32 %v1021, %v1167
        %v1296 = vmul.f32 %v1023, %v1168
        %v1297 = vmul.f32 %v832, %v1169
        %v1298 = vmul.f32 %v834, %v1170
        %v1299 = vmul.f32 %v1025, %v1171
        %v1300 = vmul.f32 %v1027, %v1172
        %v1301 = vmul.f32 %v838, %v1173
        %v1302 = vmul.f32 %v840, %v1174
        %v1303 = vmul.f32 %v1031, %v1175
        %v1304 = vmul.f32 %v1033, %v1176
        %v1305 = vmul.f32 %v842, %v1177
        %v1306 = vmul.f32 %v844, %v1178
        %v1307 = vmul.f32 %v1035, %v1179
        %v1308 = vmul.f32 %v1037, %v1180
        %v1309 = vmul.f32 %v848, %v1181
        %v1310 = vmul.f32 %v850, %v1182
        %v1311 = vmul.f32 %v1041, %v1183
        %v1312 = vmul.f32 %v1043, %v1184
        %v1313 = vmul.f32 %v852, %v1185
        %v1314 = vmul.f32 %v854, %v1186
        %v1315 = vmul.f32 %v1045, %v1187
        %v1316 = vmul.f32 %v1047, %v1188
        %v1317 = vmul.f32 %v858, %v1189
        %v1318 = vmul.f32 %v860, %v1190
        %v1319 = vmul.f32 %v1051, %v1191
        %v1320 = vmul.f32 %v1053, %v1192
        %v1321 = vmul.f32 %v862, %v1193
        %v1322 = vmul.f32 %v864, %v1194
        %v1323 = vmul.f32 %v1055, %v1195
        %v1324 = vmul.f32 %v1057, %v1196
        %v1325 = vmul.f32 %v868, %v1197
        %v1326 = vmul.f32 %v870, %v1198
        %v1327 = vmul.f32 %v1061, %v1199
        %v1328 = vmul.f32 %v1063, %v1200
        %v1329 = vmul.f32 %v872, %v1201
        %v1330 = vmul.f32 %v874, %v1202
        %v1331 = vmul.f32 %v1065, %v1203
        %v1332 = vmul.f32 %v1067, %v1204
        %v1333 = vmul.f32 %v878, %v1205
        %v1334 = vmul.f32 %v880, %v1206
        %v1335 = vmul.f32 %v1071, %v1207
        %v1336 = vmul.f32 %v1073, %v1208
        %v1337 = vmul.f32 %v882, %v1209
        %v1338 = vmul.f32 %v884, %v1210
        %v1339 = vmul.f32 %v1075, %v1211
        %v1340 = vmul.f32 %v1077, %v1212
        %v1341 = vmul.f32 %v888, %v1213
        %v1342 = vmul.f32 %v890, %v1214
        %v1343 = vmul.f32 %v1081, %v1215
        %v1344 = vmul.f32 %v1083, %v1216
        %v1345 = vmul.f32 %v892, %v1217
        %v1346 = vmul.f32 %v894, %v1218
        %v1347 = vmul.f32 %v1085, %v1219
        %v1348 = vmul.f32 %v1087, %v1220
        %v1349 = vmul.f32 %v898, %v1221
        %v1350 = vmul.f32 %v900, %v1222
        %v1351 = vmul.f32 %v1091, %v1223
        %v1352 = vmul.f32 %v1093, %v1224
        %v1353 = vmul.f32 %v902, %v1225
        %v1354 = vmul.f32 %v904, %v1226
        %v1355 = vmul.f32 %v1095, %v1227
        %v1356 = vmul.f32 %v1097, %v1228
        %v1357 = vmul.f32 %v908, %v1229
        %v1358 = vmul.f32 %v910, %v1230
        %v1359 = vmul.f32 %v1101, %v1231
        %v1360 = vmul.f32 %v1103, %v1232
        %v1361 = vmul.f32 %v912, %v1233
        %v1362 = vmul.f32 %v914, %v1234
        %v1363 = vmul.f32 %v1105, %v1235
        %v1364 = vmul.f32 %v1107, %v1236
        %v1365 = vmul.f32 %v1237, 0.044715
        %v1366 = vmul.f32 %v1238, 0.044715
        %v1367 = vmul.f32 %v1239, 0.044715
        %v1368 = vmul.f32 %v1240, 0.044715
        %v1369 = vmul.f32 %v1241, 0.044715
        %v1370 = vmul.f32 %v1242, 0.044715
        %v1371 = vmul.f32 %v1243, 0.044715
        %v1372 = vmul.f32 %v1244, 0.044715
        %v1373 = vmul.f32 %v1245, 0.044715
        %v1374 = vmul.f32 %v1246, 0.044715
        %v1375 = vmul.f32 %v1247, 0.044715
        %v1376 = vmul.f32 %v1248, 0.044715
        %v1377 = vmul.f32 %v1249, 0.044715
        %v1378 = vmul.f32 %v1250, 0.044715
        %v1379 = vmul.f32 %v1251, 0.044715
        %v1380 = vmul.f32 %v1252, 0.044715
        %v1381 = vmul.f32 %v1253, 0.044715
        %v1382 = vmul.f32 %v1254, 0.044715
        %v1383 = vmul.f32 %v1255, 0.044715
        %v1384 = vmul.f32 %v1256, 0.044715
        %v1385 = vmul.f32 %v1257, 0.044715
        %v1386 = vmul.f32 %v1258, 0.044715
        %v1387 = vmul.f32 %v1259, 0.044715
        %v1388 = vmul.f32 %v1260, 0.044715
        %v1389 = vmul.f32 %v1261, 0.044715
        %v1390 = vmul.f32 %v1262, 0.044715
        %v1391 = vmul.f32 %v1263, 0.044715
        %v1392 = vmul.f32 %v1264, 0.044715
        %v1393 = vmul.f32 %v1265, 0.044715
        %v1394 = vmul.f32 %v1266, 0.044715
        %v1395 = vmul.f32 %v1267, 0.044715
        %v1396 = vmul.f32 %v1268, 0.044715
        %v1397 = vmul.f32 %v1269, 0.044715
        %v1398 = vmul.f32 %v1270, 0.044715
        %v1399 = vmul.f32 %v1271, 0.044715
        %v1400 = vmul.f32 %v1272, 0.044715
        %v1401 = vmul.f32 %v1273, 0.044715
        %v1402 = vmul.f32 %v1274, 0.044715
        %v1403 = vmul.f32 %v1275, 0.044715
        %v1404 = vmul.f32 %v1276, 0.044715
        %v1405 = vmul.f32 %v1277, 0.044715
        %v1406 = vmul.f32 %v1278, 0.044715
        %v1407 = vmul.f32 %v1279, 0.044715
        %v1408 = vmul.f32 %v1280, 0.044715
        %v1409 = vmul.f32 %v1281, 0.044715
        %v1410 = vmul.f32 %v1282, 0.044715
        %v1411 = vmul.f32 %v1283, 0.044715
        %v1412 = vmul.f32 %v1284, 0.044715
        %v1413 = vmul.f32 %v1285, 0.044715
        %v1414 = vmul.f32 %v1286, 0.044715
        %v1415 = vmul.f32 %v1287, 0.044715
        %v1416 = vmul.f32 %v1288, 0.044715
        %v1417 = vmul.f32 %v1289, 0.044715
        %v1418 = vmul.f32 %v1290, 0.044715
        %v1419 = vmul.f32 %v1291, 0.044715
        %v1420 = vmul.f32 %v1292, 0.044715
        %v1421 = vmul.f32 %v1293, 0.044715
        %v1422 = vmul.f32 %v1294, 0.044715
        %v1423 = vmul.f32 %v1295, 0.044715
        %v1424 = vmul.f32 %v1296, 0.044715
        %v1425 = vmul.f32 %v1297, 0.044715
        %v1426 = vmul.f32 %v1298, 0.044715
        %v1427 = vmul.f32 %v1299, 0.044715
        %v1428 = vmul.f32 %v1300, 0.044715
        %v1429 = vmul.f32 %v1301, 0.044715
        %v1430 = vmul.f32 %v1302, 0.044715
        %v1431 = vmul.f32 %v1303, 0.044715
        %v1432 = vmul.f32 %v1304, 0.044715
        %v1433 = vmul.f32 %v1305, 0.044715
        %v1434 = vmul.f32 %v1306, 0.044715
        %v1435 = vmul.f32 %v1307, 0.044715
        %v1436 = vmul.f32 %v1308, 0.044715
        %v1437 = vmul.f32 %v1309, 0.044715
        %v1438 = vmul.f32 %v1310, 0.044715
        %v1439 = vmul.f32 %v1311, 0.044715
        %v1440 = vmul.f32 %v1312, 0.044715
        %v1441 = vmul.f32 %v1313, 0.044715
        %v1442 = vmul.f32 %v1314, 0.044715
        %v1443 = vmul.f32 %v1315, 0.044715
        %v1444 = vmul.f32 %v1316, 0.044715
        %v1445 = vmul.f32 %v1317, 0.044715
        %v1446 = vmul.f32 %v1318, 0.044715
        %v1447 = vmul.f32 %v1319, 0.044715
        %v1448 = vmul.f32 %v1320, 0.044715
        %v1449 = vmul.f32 %v1321, 0.044715
        %v1450 = vmul.f32 %v1322, 0.044715
        %v1451 = vmul.f32 %v1323, 0.044715
        %v1452 = vmul.f32 %v1324, 0.044715
        %v1453 = vmul.f32 %v1325, 0.044715
        %v1454 = vmul.f32 %v1326, 0.044715
        %v1455 = vmul.f32 %v1327, 0.044715
        %v1456 = vmul.f32 %v1328, 0.044715
        %v1457 = vmul.f32 %v1329, 0.044715
        %v1458 = vmul.f32 %v1330, 0.044715
        %v1459 = vmul.f32 %v1331, 0.044715
        %v1460 = vmul.f32 %v1332, 0.044715
        %v1461 = vmul.f32 %v1333, 0.044715
        %v1462 = vmul.f32 %v1334, 0.044715
        %v1463 = vmul.f32 %v1335, 0.044715
        %v1464 = vmul.f32 %v1336, 0.044715
        %v1465 = vmul.f32 %v1337, 0.044715
        %v1466 = vmul.f32 %v1338, 0.044715
        %v1467 = vmul.f32 %v1339, 0.044715
        %v1468 = vmul.f32 %v1340, 0.044715
        %v1469 = vmul.f32 %v1341, 0.044715
        %v1470 = vmul.f32 %v1342, 0.044715
        %v1471 = vmul.f32 %v1343, 0.044715
        %v1472 = vmul.f32 %v1344, 0.044715
        %v1473 = vmul.f32 %v1345, 0.044715
        %v1474 = vmul.f32 %v1346, 0.044715
        %v1475 = vmul.f32 %v1347, 0.044715
        %v1476 = vmul.f32 %v1348, 0.044715
        %v1477 = vmul.f32 %v1349, 0.044715
        %v1478 = vmul.f32 %v1350, 0.044715
        %v1479 = vmul.f32 %v1351, 0.044715
        %v1480 = vmul.f32 %v1352, 0.044715
        %v1481 = vmul.f32 %v1353, 0.044715
        %v1482 = vmul.f32 %v1354, 0.044715
        %v1483 = vmul.f32 %v1355, 0.044715
        %v1484 = vmul.f32 %v1356, 0.044715
        %v1485 = vmul.f32 %v1357, 0.044715
        %v1486 = vmul.f32 %v1358, 0.044715
        %v1487 = vmul.f32 %v1359, 0.044715
        %v1488 = vmul.f32 %v1360, 0.044715
        %v1489 = vmul.f32 %v1361, 0.044715
        %v1490 = vmul.f32 %v1362, 0.044715
        %v1491 = vmul.f32 %v1363, 0.044715
        %v1492 = vmul.f32 %v1364, 0.044715
        %v1493 = vadd.f32 %v758, %v1365
        %v1494 = vadd.f32 %v760, %v1366
        %v1495 = vadd.f32 %v951, %v1367
        %v1496 = vadd.f32 %v953, %v1368
        %v1497 = vadd.f32 %v762, %v1369
        %v1498 = vadd.f32 %v764, %v1370
        %v1499 = vadd.f32 %v955, %v1371
        %v1500 = vadd.f32 %v957, %v1372
        %v1501 = vadd.f32 %v768, %v1373
        %v1502 = vadd.f32 %v770, %v1374
        %v1503 = vadd.f32 %v961, %v1375
        %v1504 = vadd.f32 %v963, %v1376
        %v1505 = vadd.f32 %v772, %v1377
        %v1506 = vadd.f32 %v774, %v1378
        %v1507 = vadd.f32 %v965, %v1379
        %v1508 = vadd.f32 %v967, %v1380
        %v1509 = vadd.f32 %v778, %v1381
        %v1510 = vadd.f32 %v780, %v1382
        %v1511 = vadd.f32 %v971, %v1383
        %v1512 = vadd.f32 %v973, %v1384
        %v1513 = vadd.f32 %v782, %v1385
        %v1514 = vadd.f32 %v784, %v1386
        %v1515 = vadd.f32 %v975, %v1387
        %v1516 = vadd.f32 %v977, %v1388
        %v1517 = vadd.f32 %v788, %v1389
        %v1518 = vadd.f32 %v790, %v1390
        %v1519 = vadd.f32 %v981, %v1391
        %v1520 = vadd.f32 %v983, %v1392
        %v1521 = vadd.f32 %v792, %v1393
        %v1522 = vadd.f32 %v794, %v1394
        %v1523 = vadd.f32 %v985, %v1395
        %v1524 = vadd.f32 %v987, %v1396
        %v1525 = vadd.f32 %v798, %v1397
        %v1526 = vadd.f32 %v800, %v1398
        %v1527 = vadd.f32 %v991, %v1399
        %v1528 = vadd.f32 %v993, %v1400
        %v1529 = vadd.f32 %v802, %v1401
        %v1530 = vadd.f32 %v804, %v1402
        %v1531 = vadd.f32 %v995, %v1403
        %v1532 = vadd.f32 %v997, %v1404
        %v1533 = vadd.f32 %v808, %v1405
        %v1534 = vadd.f32 %v810, %v1406
        %v1535 = vadd.f32 %v1001, %v1407
        %v1536 = vadd.f32 %v1003, %v1408
        %v1537 = vadd.f32 %v812, %v1409
        %v1538 = vadd.f32 %v814, %v1410
        %v1539 = vadd.f32 %v1005, %v1411
        %v1540 = vadd.f32 %v1007, %v1412
        %v1541 = vadd.f32 %v818, %v1413
        %v1542 = vadd.f32 %v820, %v1414
        %v1543 = vadd.f32 %v1011, %v1415
        %v1544 = vadd.f32 %v1013, %v1416
        %v1545 = vadd.f32 %v822, %v1417
        %v1546 = vadd.f32 %v824, %v1418
        %v1547 = vadd.f32 %v1015, %v1419
        %v1548 = vadd.f32 %v1017, %v1420
        %v1549 = vadd.f32 %v828, %v1421
        %v1550 = vadd.f32 %v830, %v1422
        %v1551 = vadd.f32 %v1021, %v1423
        %v1552 = vadd.f32 %v1023, %v1424
        %v1553 = vadd.f32 %v832, %v1425
        %v1554 = vadd.f32 %v834, %v1426
        %v1555 = vadd.f32 %v1025, %v1427
        %v1556 = vadd.f32 %v1027, %v1428
        %v1557 = vadd.f32 %v838, %v1429
        %v1558 = vadd.f32 %v840, %v1430
        %v1559 = vadd.f32 %v1031, %v1431
        %v1560 = vadd.f32 %v1033, %v1432
        %v1561 = vadd.f32 %v842, %v1433
        %v1562 = vadd.f32 %v844, %v1434
        %v1563 = vadd.f32 %v1035, %v1435
        %v1564 = vadd.f32 %v1037, %v1436
        %v1565 = vadd.f32 %v848, %v1437
        %v1566 = vadd.f32 %v850, %v1438
        %v1567 = vadd.f32 %v1041, %v1439
        %v1568 = vadd.f32 %v1043, %v1440
        %v1569 = vadd.f32 %v852, %v1441
        %v1570 = vadd.f32 %v854, %v1442
        %v1571 = vadd.f32 %v1045, %v1443
        %v1572 = vadd.f32 %v1047, %v1444
        %v1573 = vadd.f32 %v858, %v1445
        %v1574 = vadd.f32 %v860, %v1446
        %v1575 = vadd.f32 %v1051, %v1447
        %v1576 = vadd.f32 %v1053, %v1448
        %v1577 = vadd.f32 %v862, %v1449
        %v1578 = vadd.f32 %v864, %v1450
        %v1579 = vadd.f32 %v1055, %v1451
        %v1580 = vadd.f32 %v1057, %v1452
        %v1581 = vadd.f32 %v868, %v1453
        %v1582 = vadd.f32 %v870, %v1454
        %v1583 = vadd.f32 %v1061, %v1455
        %v1584 = vadd.f32 %v1063, %v1456
        %v1585 = vadd.f32 %v872, %v1457
        %v1586 = vadd.f32 %v874, %v1458
        %v1587 = vadd.f32 %v1065, %v1459
        %v1588 = vadd.f32 %v1067, %v1460
        %v1589 = vadd.f32 %v878, %v1461
        %v1590 = vadd.f32 %v880, %v1462
        %v1591 = vadd.f32 %v1071, %v1463
        %v1592 = vadd.f32 %v1073, %v1464
        %v1593 = vadd.f32 %v882, %v1465
        %v1594 = vadd.f32 %v884, %v1466
        %v1595 = vadd.f32 %v1075, %v1467
        %v1596 = vadd.f32 %v1077, %v1468
        %v1597 = vadd.f32 %v888, %v1469
        %v1598 = vadd.f32 %v890, %v1470
        %v1599 = vadd.f32 %v1081, %v1471
        %v1600 = vadd.f32 %v1083, %v1472
        %v1601 = vadd.f32 %v892, %v1473
        %v1602 = vadd.f32 %v894, %v1474
        %v1603 = vadd.f32 %v1085, %v1475
        %v1604 = vadd.f32 %v1087, %v1476
        %v1605 = vadd.f32 %v898, %v1477
        %v1606 = vadd.f32 %v900, %v1478
        %v1607 = vadd.f32 %v1091, %v1479
        %v1608 = vadd.f32 %v1093, %v1480
        %v1609 = vadd.f32 %v902, %v1481
        %v1610 = vadd.f32 %v904, %v1482
        %v1611 = vadd.f32 %v1095, %v1483
        %v1612 = vadd.f32 %v1097, %v1484
        %v1613 = vadd.f32 %v908, %v1485
        %v1614 = vadd.f32 %v910, %v1486
        %v1615 = vadd.f32 %v1101, %v1487
        %v1616 = vadd.f32 %v1103, %v1488
        %v1617 = vadd.f32 %v912, %v1489
        %v1618 = vadd.f32 %v914, %v1490
        %v1619 = vadd.f32 %v1105, %v1491
        %v1620 = vadd.f32 %v1107, %v1492
        %v1621 = vmul.f32 %v1493, 0.7978846
        %v1622 = vmul.f32 %v1494, 0.7978846
        %v1623 = vmul.f32 %v1495, 0.7978846
        %v1624 = vmul.f32 %v1496, 0.7978846
        %v1625 = vmul.f32 %v1497, 0.7978846
        %v1626 = vmul.f32 %v1498, 0.7978846
        %v1627 = vmul.f32 %v1499, 0.7978846
        %v1628 = vmul.f32 %v1500, 0.7978846
        %v1629 = vmul.f32 %v1501, 0.7978846
        %v1630 = vmul.f32 %v1502, 0.7978846
        %v1631 = vmul.f32 %v1503, 0.7978846
        %v1632 = vmul.f32 %v1504, 0.7978846
        %v1633 = vmul.f32 %v1505, 0.7978846
        %v1634 = vmul.f32 %v1506, 0.7978846
        %v1635 = vmul.f32 %v1507, 0.7978846
        %v1636 = vmul.f32 %v1508, 0.7978846
        %v1637 = vmul.f32 %v1509, 0.7978846
        %v1638 = vmul.f32 %v1510, 0.7978846
        %v1639 = vmul.f32 %v1511, 0.7978846
        %v1640 = vmul.f32 %v1512, 0.7978846
        %v1641 = vmul.f32 %v1513, 0.7978846
        %v1642 = vmul.f32 %v1514, 0.7978846
        %v1643 = vmul.f32 %v1515, 0.7978846
        %v1644 = vmul.f32 %v1516, 0.7978846
        %v1645 = vmul.f32 %v1517, 0.7978846
        %v1646 = vmul.f32 %v1518, 0.7978846
        %v1647 = vmul.f32 %v1519, 0.7978846
        %v1648 = vmul.f32 %v1520, 0.7978846
        %v1649 = vmul.f32 %v1521, 0.7978846
        %v1650 = vmul.f32 %v1522, 0.7978846
        %v1651 = vmul.f32 %v1523, 0.7978846
        %v1652 = vmul.f32 %v1524, 0.7978846
        %v1653 = vmul.f32 %v1525, 0.7978846
        %v1654 = vmul.f32 %v1526, 0.7978846
        %v1655 = vmul.f32 %v1527, 0.7978846
        %v1656 = vmul.f32 %v1528, 0.7978846
        %v1657 = vmul.f32 %v1529, 0.7978846
        %v1658 = vmul.f32 %v1530, 0.7978846
        %v1659 = vmul.f32 %v1531, 0.7978846
        %v1660 = vmul.f32 %v1532, 0.7978846
        %v1661 = vmul.f32 %v1533, 0.7978846
        %v1662 = vmul.f32 %v1534, 0.7978846
        %v1663 = vmul.f32 %v1535, 0.7978846
        %v1664 = vmul.f32 %v1536, 0.7978846
        %v1665 = vmul.f32 %v1537, 0.7978846
        %v1666 = vmul.f32 %v1538, 0.7978846
        %v1667 = vmul.f32 %v1539, 0.7978846
        %v1668 = vmul.f32 %v1540, 0.7978846
        %v1669 = vmul.f32 %v1541, 0.7978846
        %v1670 = vmul.f32 %v1542, 0.7978846
        %v1671 = vmul.f32 %v1543, 0.7978846
        %v1672 = vmul.f32 %v1544, 0.7978846
        %v1673 = vmul.f32 %v1545, 0.7978846
        %v1674 = vmul.f32 %v1546, 0.7978846
        %v1675 = vmul.f32 %v1547, 0.7978846
        %v1676 = vmul.f32 %v1548, 0.7978846
        %v1677 = vmul.f32 %v1549, 0.7978846
        %v1678 = vmul.f32 %v1550, 0.7978846
        %v1679 = vmul.f32 %v1551, 0.7978846
        %v1680 = vmul.f32 %v1552, 0.7978846
        %v1681 = vmul.f32 %v1553, 0.7978846
        %v1682 = vmul.f32 %v1554, 0.7978846
        %v1683 = vmul.f32 %v1555, 0.7978846
        %v1684 = vmul.f32 %v1556, 0.7978846
        %v1685 = vmul.f32 %v1557, 0.7978846
        %v1686 = vmul.f32 %v1558, 0.7978846
        %v1687 = vmul.f32 %v1559, 0.7978846
        %v1688 = vmul.f32 %v1560, 0.7978846
        %v1689 = vmul.f32 %v1561, 0.7978846
        %v1690 = vmul.f32 %v1562, 0.7978846
        %v1691 = vmul.f32 %v1563, 0.7978846
        %v1692 = vmul.f32 %v1564, 0.7978846
        %v1693 = vmul.f32 %v1565, 0.7978846
        %v1694 = vmul.f32 %v1566, 0.7978846
        %v1695 = vmul.f32 %v1567, 0.7978846
        %v1696 = vmul.f32 %v1568, 0.7978846
        %v1697 = vmul.f32 %v1569, 0.7978846
        %v1698 = vmul.f32 %v1570, 0.7978846
        %v1699 = vmul.f32 %v1571, 0.7978846
        %v1700 = vmul.f32 %v1572, 0.7978846
        %v1701 = vmul.f32 %v1573, 0.7978846
        %v1702 = vmul.f32 %v1574, 0.7978846
        %v1703 = vmul.f32 %v1575, 0.7978846
        %v1704 = vmul.f32 %v1576, 0.7978846
        %v1705 = vmul.f32 %v1577, 0.7978846
        %v1706 = vmul.f32 %v1578, 0.7978846
        %v1707 = vmul.f32 %v1579, 0.7978846
        %v1708 = vmul.f32 %v1580, 0.7978846
        %v1709 = vmul.f32 %v1581, 0.7978846
        %v1710 = vmul.f32 %v1582, 0.7978846
        %v1711 = vmul.f32 %v1583, 0.7978846
        %v1712 = vmul.f32 %v1584, 0.7978846
        %v1713 = vmul.f32 %v1585, 0.7978846
        %v1714 = vmul.f32 %v1586, 0.7978846
        %v1715 = vmul.f32 %v1587, 0.7978846
        %v1716 = vmul.f32 %v1588, 0.7978846
        %v1717 = vmul.f32 %v1589, 0.7978846
        %v1718 = vmul.f32 %v1590, 0.7978846
        %v1719 = vmul.f32 %v1591, 0.7978846
        %v1720 = vmul.f32 %v1592, 0.7978846
        %v1721 = vmul.f32 %v1593, 0.7978846
        %v1722 = vmul.f32 %v1594, 0.7978846
        %v1723 = vmul.f32 %v1595, 0.7978846
        %v1724 = vmul.f32 %v1596, 0.7978846
        %v1725 = vmul.f32 %v1597, 0.7978846
        %v1726 = vmul.f32 %v1598, 0.7978846
        %v1727 = vmul.f32 %v1599, 0.7978846
        %v1728 = vmul.f32 %v1600, 0.7978846
        %v1729 = vmul.f32 %v1601, 0.7978846
        %v1730 = vmul.f32 %v1602, 0.7978846
        %v1731 = vmul.f32 %v1603, 0.7978846
        %v1732 = vmul.f32 %v1604, 0.7978846
        %v1733 = vmul.f32 %v1605, 0.7978846
        %v1734 = vmul.f32 %v1606, 0.7978846
        %v1735 = vmul.f32 %v1607, 0.7978846
        %v1736 = vmul.f32 %v1608, 0.7978846
        %v1737 = vmul.f32 %v1609, 0.7978846
        %v1738 = vmul.f32 %v1610, 0.7978846
        %v1739 = vmul.f32 %v1611, 0.7978846
        %v1740 = vmul.f32 %v1612, 0.7978846
        %v1741 = vmul.f32 %v1613, 0.7978846
        %v1742 = vmul.f32 %v1614, 0.7978846
        %v1743 = vmul.f32 %v1615, 0.7978846
        %v1744 = vmul.f32 %v1616, 0.7978846
        %v1745 = vmul.f32 %v1617, 0.7978846
        %v1746 = vmul.f32 %v1618, 0.7978846
        %v1747 = vmul.f32 %v1619, 0.7978846
        %v1748 = vmul.f32 %v1620, 0.7978846
        %v1749 = vtanh.pop %v1621
        %v1750 = vtanh.pop %v1622
        %v1751 = vtanh.pop %v1623
        %v1752 = vtanh.pop %v1624
        %v1753 = vtanh.pop %v1625
        %v1754 = vtanh.pop %v1626
        %v1755 = vtanh.pop %v1627
        %v1756 = vtanh.pop %v1628
        %v1757 = vtanh.pop %v1629
        %v1758 = vtanh.pop %v1630
        %v1759 = vtanh.pop %v1631
        %v1760 = vtanh.pop %v1632
        %v1761 = vtanh.pop %v1633
        %v1762 = vtanh.pop %v1634
        %v1763 = vtanh.pop %v1635
        %v1764 = vtanh.pop %v1636
        %v1765 = vtanh.pop %v1637
        %v1766 = vtanh.pop %v1638
        %v1767 = vtanh.pop %v1639
        %v1768 = vtanh.pop %v1640
        %v1769 = vtanh.pop %v1641
        %v1770 = vtanh.pop %v1642
        %v1771 = vtanh.pop %v1643
        %v1772 = vtanh.pop %v1644
        %v1773 = vtanh.pop %v1645
        %v1774 = vtanh.pop %v1646
        %v1775 = vtanh.pop %v1647
        %v1776 = vtanh.pop %v1648
        %v1777 = vtanh.pop %v1649
        %v1778 = vtanh.pop %v1650
        %v1779 = vtanh.pop %v1651
        %v1780 = vtanh.pop %v1652
        %v1781 = vtanh.pop %v1653
        %v1782 = vtanh.pop %v1654
        %v1783 = vtanh.pop %v1655
        %v1784 = vtanh.pop %v1656
        %v1785 = vtanh.pop %v1657
        %v1786 = vtanh.pop %v1658
        %v1787 = vtanh.pop %v1659
        %v1788 = vtanh.pop %v1660
        %v1789 = vtanh.pop %v1661
        %v1790 = vtanh.pop %v1662
        %v1791 = vtanh.pop %v1663
        %v1792 = vtanh.pop %v1664
        %v1793 = vtanh.pop %v1665
        %v1794 = vtanh.pop %v1666
        %v1795 = vtanh.pop %v1667
        %v1796 = vtanh.pop %v1668
        %v1797 = vtanh.pop %v1669
        %v1798 = vtanh.pop %v1670
        %v1799 = vtanh.pop %v1671
        %v1800 = vtanh.pop %v1672
        %v1801 = vtanh.pop %v1673
        %v1802 = vtanh.pop %v1674
        %v1803 = vtanh.pop %v1675
        %v1804 = vtanh.pop %v1676
        %v1805 = vtanh.pop %v1677
        %v1806 = vtanh.pop %v1678
        %v1807 = vtanh.pop %v1679
        %v1808 = vtanh.pop %v1680
        %v1809 = vtanh.pop %v1681
        %v1810 = vtanh.pop %v1682
        %v1811 = vtanh.pop %v1683
        %v1812 = vtanh.pop %v1684
        %v1813 = vtanh.pop %v1685
        %v1814 = vtanh.pop %v1686
        %v1815 = vtanh.pop %v1687
        %v1816 = vtanh.pop %v1688
        %v1817 = vtanh.pop %v1689
        %v1818 = vtanh.pop %v1690
        %v1819 = vtanh.pop %v1691
        %v1820 = vtanh.pop %v1692
        %v1821 = vtanh.pop %v1693
        %v1822 = vtanh.pop %v1694
        %v1823 = vtanh.pop %v1695
        %v1824 = vtanh.pop %v1696
        %v1825 = vtanh.pop %v1697
        %v1826 = vtanh.pop %v1698
        %v1827 = vtanh.pop %v1699
        %v1828 = vtanh.pop %v1700
        %v1829 = vtanh.pop %v1701
        %v1830 = vtanh.pop %v1702
        %v1831 = vtanh.pop %v1703
        %v1832 = vtanh.pop %v1704
        %v1833 = vtanh.pop %v1705
        %v1834 = vtanh.pop %v1706
        %v1835 = vtanh.pop %v1707
        %v1836 = vtanh.pop %v1708
        %v1837 = vtanh.pop %v1709
        %v1838 = vtanh.pop %v1710
        %v1839 = vtanh.pop %v1711
        %v1840 = vtanh.pop %v1712
        %v1841 = vtanh.pop %v1713
        %v1842 = vtanh.pop %v1714
        %v1843 = vtanh.pop %v1715
        %v1844 = vtanh.pop %v1716
        %v1845 = vtanh.pop %v1717
        %v1846 = vtanh.pop %v1718
        %v1847 = vtanh.pop %v1719
        %v1848 = vtanh.pop %v1720
        %v1849 = vtanh.pop %v1721
        %v1850 = vtanh.pop %v1722
        %v1851 = vtanh.pop %v1723
        %v1852 = vtanh.pop %v1724
        %v1853 = vtanh.pop %v1725
        %v1854 = vtanh.pop %v1726
        %v1855 = vtanh.pop %v1727
        %v1856 = vtanh.pop %v1728
        %v1857 = vtanh.pop %v1729
        %v1858 = vtanh.pop %v1730
        %v1859 = vtanh.pop %v1731
        %v1860 = vtanh.pop %v1732
        %v1861 = vtanh.pop %v1733
        %v1862 = vtanh.pop %v1734
        %v1863 = vtanh.pop %v1735
        %v1864 = vtanh.pop %v1736
        %v1865 = vtanh.pop %v1737
        %v1866 = vtanh.pop %v1738
        %v1867 = vtanh.pop %v1739
        %v1868 = vtanh.pop %v1740
        %v1869 = vtanh.pop %v1741
        %v1870 = vtanh.pop %v1742
        %v1871 = vtanh.pop %v1743
        %v1872 = vtanh.pop %v1744
        %v1873 = vtanh.pop %v1745
        %v1874 = vtanh.pop %v1746
        %v1875 = vtanh.pop %v1747
        %v1876 = vtanh.pop %v1748
        %v1877 = vadd.f32 %v1749, 1.0
        %v1878 = vadd.f32 %v1750, 1.0
        %v1879 = vadd.f32 %v1751, 1.0
        %v1880 = vadd.f32 %v1752, 1.0
        %v1881 = vadd.f32 %v1753, 1.0
        %v1882 = vadd.f32 %v1754, 1.0
        %v1883 = vadd.f32 %v1755, 1.0
        %v1884 = vadd.f32 %v1756, 1.0
        %v1885 = vadd.f32 %v1757, 1.0
        %v1886 = vadd.f32 %v1758, 1.0
        %v1887 = vadd.f32 %v1759, 1.0
        %v1888 = vadd.f32 %v1760, 1.0
        %v1889 = vadd.f32 %v1761, 1.0
        %v1890 = vadd.f32 %v1762, 1.0
        %v1891 = vadd.f32 %v1763, 1.0
        %v1892 = vadd.f32 %v1764, 1.0
        %v1893 = vadd.f32 %v1765, 1.0
        %v1894 = vadd.f32 %v1766, 1.0
        %v1895 = vadd.f32 %v1767, 1.0
        %v1896 = vadd.f32 %v1768, 1.0
        %v1897 = vadd.f32 %v1769, 1.0
        %v1898 = vadd.f32 %v1770, 1.0
        %v1899 = vadd.f32 %v1771, 1.0
        %v1900 = vadd.f32 %v1772, 1.0
        %v1901 = vadd.f32 %v1773, 1.0
        %v1902 = vadd.f32 %v1774, 1.0
        %v1903 = vadd.f32 %v1775, 1.0
        %v1904 = vadd.f32 %v1776, 1.0
        %v1905 = vadd.f32 %v1777, 1.0
        %v1906 = vadd.f32 %v1778, 1.0
        %v1907 = vadd.f32 %v1779, 1.0
        %v1908 = vadd.f32 %v1780, 1.0
        %v1909 = vadd.f32 %v1781, 1.0
        %v1910 = vadd.f32 %v1782, 1.0
        %v1911 = vadd.f32 %v1783, 1.0
        %v1912 = vadd.f32 %v1784, 1.0
        %v1913 = vadd.f32 %v1785, 1.0
        %v1914 = vadd.f32 %v1786, 1.0
        %v1915 = vadd.f32 %v1787, 1.0
        %v1916 = vadd.f32 %v1788, 1.0
        %v1917 = vadd.f32 %v1789, 1.0
        %v1918 = vadd.f32 %v1790, 1.0
        %v1919 = vadd.f32 %v1791, 1.0
        %v1920 = vadd.f32 %v1792, 1.0
        %v1921 = vadd.f32 %v1793, 1.0
        %v1922 = vadd.f32 %v1794, 1.0
        %v1923 = vadd.f32 %v1795, 1.0
        %v1924 = vadd.f32 %v1796, 1.0
        %v1925 = vadd.f32 %v1797, 1.0
        %v1926 = vadd.f32 %v1798, 1.0
        %v1927 = vadd.f32 %v1799, 1.0
        %v1928 = vadd.f32 %v1800, 1.0
        %v1929 = vadd.f32 %v1801, 1.0
        %v1930 = vadd.f32 %v1802, 1.0
        %v1931 = vadd.f32 %v1803, 1.0
        %v1932 = vadd.f32 %v1804, 1.0
        %v1933 = vadd.f32 %v1805, 1.0
        %v1934 = vadd.f32 %v1806, 1.0
        %v1935 = vadd.f32 %v1807, 1.0
        %v1936 = vadd.f32 %v1808, 1.0
        %v1937 = vadd.f32 %v1809, 1.0
        %v1938 = vadd.f32 %v1810, 1.0
        %v1939 = vadd.f32 %v1811, 1.0
        %v1940 = vadd.f32 %v1812, 1.0
        %v1941 = vadd.f32 %v1813, 1.0
        %v1942 = vadd.f32 %v1814, 1.0
        %v1943 = vadd.f32 %v1815, 1.0
        %v1944 = vadd.f32 %v1816, 1.0
        %v1945 = vadd.f32 %v1817, 1.0
        %v1946 = vadd.f32 %v1818, 1.0
        %v1947 = vadd.f32 %v1819, 1.0
        %v1948 = vadd.f32 %v1820, 1.0
        %v1949 = vadd.f32 %v1821, 1.0
        %v1950 = vadd.f32 %v1822, 1.0
        %v1951 = vadd.f32 %v1823, 1.0
        %v1952 = vadd.f32 %v1824, 1.0
        %v1953 = vadd.f32 %v1825, 1.0
        %v1954 = vadd.f32 %v1826, 1.0
        %v1955 = vadd.f32 %v1827, 1.0
        %v1956 = vadd.f32 %v1828, 1.0
        %v1957 = vadd.f32 %v1829, 1.0
        %v1958 = vadd.f32 %v1830, 1.0
        %v1959 = vadd.f32 %v1831, 1.0
        %v1960 = vadd.f32 %v1832, 1.0
        %v1961 = vadd.f32 %v1833, 1.0
        %v1962 = vadd.f32 %v1834, 1.0
        %v1963 = vadd.f32 %v1835, 1.0
        %v1964 = vadd.f32 %v1836, 1.0
        %v1965 = vadd.f32 %v1837, 1.0
        %v1966 = vadd.f32 %v1838, 1.0
        %v1967 = vadd.f32 %v1839, 1.0
        %v1968 = vadd.f32 %v1840, 1.0
        %v1969 = vadd.f32 %v1841, 1.0
        %v1970 = vadd.f32 %v1842, 1.0
        %v1971 = vadd.f32 %v1843, 1.0
        %v1972 = vadd.f32 %v1844, 1.0
        %v1973 = vadd.f32 %v1845, 1.0
        %v1974 = vadd.f32 %v1846, 1.0
        %v1975 = vadd.f32 %v1847, 1.0
        %v1976 = vadd.f32 %v1848, 1.0
        %v1977 = vadd.f32 %v1849, 1.0
        %v1978 = vadd.f32 %v1850, 1.0
        %v1979 = vadd.f32 %v1851, 1.0
        %v1980 = vadd.f32 %v1852, 1.0
        %v1981 = vadd.f32 %v1853, 1.0
        %v1982 = vadd.f32 %v1854, 1.0
        %v1983 = vadd.f32 %v1855, 1.0
        %v1984 = vadd.f32 %v1856, 1.0
        %v1985 = vadd.f32 %v1857, 1.0
        %v1986 = vadd.f32 %v1858, 1.0
        %v1987 = vadd.f32 %v1859, 1.0
        %v1988 = vadd.f32 %v1860, 1.0
        %v1989 = vadd.f32 %v1861, 1.0
        %v1990 = vadd.f32 %v1862, 1.0
        %v1991 = vadd.f32 %v1863, 1.0
        %v1992 = vadd.f32 %v1864, 1.0
        %v1993 = vadd.f32 %v1865, 1.0
        %v1994 = vadd.f32 %v1866, 1.0
        %v1995 = vadd.f32 %v1867, 1.0
        %v1996 = vadd.f32 %v1868, 1.0
        %v1997 = vadd.f32 %v1869, 1.0
        %v1998 = vadd.f32 %v1870, 1.0
        %v1999 = vadd.f32 %v1871, 1.0
        %v2000 = vadd.f32 %v1872, 1.0
        %v2001 = vadd.f32 %v1873, 1.0
        %v2002 = vadd.f32 %v1874, 1.0
        %v2003 = vadd.f32 %v1875, 1.0
        %v2004 = vadd.f32 %v1876, 1.0
        %v2005 = vmul.f32 %v1877, 0.5
        %v2006 = vmul.f32 %v1878, 0.5
        %v2007 = vmul.f32 %v1879, 0.5
        %v2008 = vmul.f32 %v1880, 0.5
        %v2009 = vmul.f32 %v1881, 0.5
        %v2010 = vmul.f32 %v1882, 0.5
        %v2011 = vmul.f32 %v1883, 0.5
        %v2012 = vmul.f32 %v1884, 0.5
        %v2013 = vmul.f32 %v1885, 0.5
        %v2014 = vmul.f32 %v1886, 0.5
        %v2015 = vmul.f32 %v1887, 0.5
        %v2016 = vmul.f32 %v1888, 0.5
        %v2017 = vmul.f32 %v1889, 0.5
        %v2018 = vmul.f32 %v1890, 0.5
        %v2019 = vmul.f32 %v1891, 0.5
        %v2020 = vmul.f32 %v1892, 0.5
        %v2021 = vmul.f32 %v1893, 0.5
        %v2022 = vmul.f32 %v1894, 0.5
        %v2023 = vmul.f32 %v1895, 0.5
        %v2024 = vmul.f32 %v1896, 0.5
        %v2025 = vmul.f32 %v1897, 0.5
        %v2026 = vmul.f32 %v1898, 0.5
        %v2027 = vmul.f32 %v1899, 0.5
        %v2028 = vmul.f32 %v1900, 0.5
        %v2029 = vmul.f32 %v1901, 0.5
        %v2030 = vmul.f32 %v1902, 0.5
        %v2031 = vmul.f32 %v1903, 0.5
        %v2032 = vmul.f32 %v1904, 0.5
        %v2033 = vmul.f32 %v1905, 0.5
        %v2034 = vmul.f32 %v1906, 0.5
        %v2035 = vmul.f32 %v1907, 0.5
        %v2036 = vmul.f32 %v1908, 0.5
        %v2037 = vmul.f32 %v1909, 0.5
        %v2038 = vmul.f32 %v1910, 0.5
        %v2039 = vmul.f32 %v1911, 0.5
        %v2040 = vmul.f32 %v1912, 0.5
        %v2041 = vmul.f32 %v1913, 0.5
        %v2042 = vmul.f32 %v1914, 0.5
        %v2043 = vmul.f32 %v1915, 0.5
        %v2044 = vmul.f32 %v1916, 0.5
        %v2045 = vmul.f32 %v1917, 0.5
        %v2046 = vmul.f32 %v1918, 0.5
        %v2047 = vmul.f32 %v1919, 0.5
        %v2048 = vmul.f32 %v1920, 0.5
        %v2049 = vmul.f32 %v1921, 0.5
        %v2050 = vmul.f32 %v1922, 0.5
        %v2051 = vmul.f32 %v1923, 0.5
        %v2052 = vmul.f32 %v1924, 0.5
        %v2053 = vmul.f32 %v1925, 0.5
        %v2054 = vmul.f32 %v1926, 0.5
        %v2055 = vmul.f32 %v1927, 0.5
        %v2056 = vmul.f32 %v1928, 0.5
        %v2057 = vmul.f32 %v1929, 0.5
        %v2058 = vmul.f32 %v1930, 0.5
        %v2059 = vmul.f32 %v1931, 0.5
        %v2060 = vmul.f32 %v1932, 0.5
        %v2061 = vmul.f32 %v1933, 0.5
        %v2062 = vmul.f32 %v1934, 0.5
        %v2063 = vmul.f32 %v1935, 0.5
        %v2064 = vmul.f32 %v1936, 0.5
        %v2065 = vmul.f32 %v1937, 0.5
        %v2066 = vmul.f32 %v1938, 0.5
        %v2067 = vmul.f32 %v1939, 0.5
        %v2068 = vmul.f32 %v1940, 0.5
        %v2069 = vmul.f32 %v1941, 0.5
        %v2070 = vmul.f32 %v1942, 0.5
        %v2071 = vmul.f32 %v1943, 0.5
        %v2072 = vmul.f32 %v1944, 0.5
        %v2073 = vmul.f32 %v1945, 0.5
        %v2074 = vmul.f32 %v1946, 0.5
        %v2075 = vmul.f32 %v1947, 0.5
        %v2076 = vmul.f32 %v1948, 0.5
        %v2077 = vmul.f32 %v1949, 0.5
        %v2078 = vmul.f32 %v1950, 0.5
        %v2079 = vmul.f32 %v1951, 0.5
        %v2080 = vmul.f32 %v1952, 0.5
        %v2081 = vmul.f32 %v1953, 0.5
        %v2082 = vmul.f32 %v1954, 0.5
        %v2083 = vmul.f32 %v1955, 0.5
        %v2084 = vmul.f32 %v1956, 0.5
        %v2085 = vmul.f32 %v1957, 0.5
        %v2086 = vmul.f32 %v1958, 0.5
        %v2087 = vmul.f32 %v1959, 0.5
        %v2088 = vmul.f32 %v1960, 0.5
        %v2089 = vmul.f32 %v1961, 0.5
        %v2090 = vmul.f32 %v1962, 0.5
        %v2091 = vmul.f32 %v1963, 0.5
        %v2092 = vmul.f32 %v1964, 0.5
        %v2093 = vmul.f32 %v1965, 0.5
        %v2094 = vmul.f32 %v1966, 0.5
        %v2095 = vmul.f32 %v1967, 0.5
        %v2096 = vmul.f32 %v1968, 0.5
        %v2097 = vmul.f32 %v1969, 0.5
        %v2098 = vmul.f32 %v1970, 0.5
        %v2099 = vmul.f32 %v1971, 0.5
        %v2100 = vmul.f32 %v1972, 0.5
        %v2101 = vmul.f32 %v1973, 0.5
        %v2102 = vmul.f32 %v1974, 0.5
        %v2103 = vmul.f32 %v1975, 0.5
        %v2104 = vmul.f32 %v1976, 0.5
        %v2105 = vmul.f32 %v1977, 0.5
        %v2106 = vmul.f32 %v1978, 0.5
        %v2107 = vmul.f32 %v1979, 0.5
        %v2108 = vmul.f32 %v1980, 0.5
        %v2109 = vmul.f32 %v1981, 0.5
        %v2110 = vmul.f32 %v1982, 0.5
        %v2111 = vmul.f32 %v1983, 0.5
        %v2112 = vmul.f32 %v1984, 0.5
        %v2113 = vmul.f32 %v1985, 0.5
        %v2114 = vmul.f32 %v1986, 0.5
        %v2115 = vmul.f32 %v1987, 0.5
        %v2116 = vmul.f32 %v1988, 0.5
        %v2117 = vmul.f32 %v1989, 0.5
        %v2118 = vmul.f32 %v1990, 0.5
        %v2119 = vmul.f32 %v1991, 0.5
        %v2120 = vmul.f32 %v1992, 0.5
        %v2121 = vmul.f32 %v1993, 0.5
        %v2122 = vmul.f32 %v1994, 0.5
        %v2123 = vmul.f32 %v1995, 0.5
        %v2124 = vmul.f32 %v1996, 0.5
        %v2125 = vmul.f32 %v1997, 0.5
        %v2126 = vmul.f32 %v1998, 0.5
        %v2127 = vmul.f32 %v1999, 0.5
        %v2128 = vmul.f32 %v2000, 0.5
        %v2129 = vmul.f32 %v2001, 0.5
        %v2130 = vmul.f32 %v2002, 0.5
        %v2131 = vmul.f32 %v2003, 0.5
        %v2132 = vmul.f32 %v2004, 0.5
        %v2133 = vmul.f32 %v758, %v2005
        %v2134 = vmul.f32 %v760, %v2006
        %v2135 = vmul.f32 %v951, %v2007
        %v2136 = vmul.f32 %v953, %v2008
        %v2137 = vmul.f32 %v762, %v2009
        %v2138 = vmul.f32 %v764, %v2010
        %v2139 = vmul.f32 %v955, %v2011
        %v2140 = vmul.f32 %v957, %v2012
        %v2141 = vmul.f32 %v768, %v2013
        %v2142 = vmul.f32 %v770, %v2014
        %v2143 = vmul.f32 %v961, %v2015
        %v2144 = vmul.f32 %v963, %v2016
        %v2145 = vmul.f32 %v772, %v2017
        %v2146 = vmul.f32 %v774, %v2018
        %v2147 = vmul.f32 %v965, %v2019
        %v2148 = vmul.f32 %v967, %v2020
        %v2149 = vmul.f32 %v778, %v2021
        %v2150 = vmul.f32 %v780, %v2022
        %v2151 = vmul.f32 %v971, %v2023
        %v2152 = vmul.f32 %v973, %v2024
        %v2153 = vmul.f32 %v782, %v2025
        %v2154 = vmul.f32 %v784, %v2026
        %v2155 = vmul.f32 %v975, %v2027
        %v2156 = vmul.f32 %v977, %v2028
        %v2157 = vmul.f32 %v788, %v2029
        %v2158 = vmul.f32 %v790, %v2030
        %v2159 = vmul.f32 %v981, %v2031
        %v2160 = vmul.f32 %v983, %v2032
        %v2161 = vmul.f32 %v792, %v2033
        %v2162 = vmul.f32 %v794, %v2034
        %v2163 = vmul.f32 %v985, %v2035
        %v2164 = vmul.f32 %v987, %v2036
        %v2165 = vmul.f32 %v798, %v2037
        %v2166 = vmul.f32 %v800, %v2038
        %v2167 = vmul.f32 %v991, %v2039
        %v2168 = vmul.f32 %v993, %v2040
        %v2169 = vmul.f32 %v802, %v2041
        %v2170 = vmul.f32 %v804, %v2042
        %v2171 = vmul.f32 %v995, %v2043
        %v2172 = vmul.f32 %v997, %v2044
        %v2173 = vmul.f32 %v808, %v2045
        %v2174 = vmul.f32 %v810, %v2046
        %v2175 = vmul.f32 %v1001, %v2047
        %v2176 = vmul.f32 %v1003, %v2048
        %v2177 = vmul.f32 %v812, %v2049
        %v2178 = vmul.f32 %v814, %v2050
        %v2179 = vmul.f32 %v1005, %v2051
        %v2180 = vmul.f32 %v1007, %v2052
        %v2181 = vmul.f32 %v818, %v2053
        %v2182 = vmul.f32 %v820, %v2054
        %v2183 = vmul.f32 %v1011, %v2055
        %v2184 = vmul.f32 %v1013, %v2056
        %v2185 = vmul.f32 %v822, %v2057
        %v2186 = vmul.f32 %v824, %v2058
        %v2187 = vmul.f32 %v1015, %v2059
        %v2188 = vmul.f32 %v1017, %v2060
        %v2189 = vmul.f32 %v828, %v2061
        %v2190 = vmul.f32 %v830, %v2062
        %v2191 = vmul.f32 %v1021, %v2063
        %v2192 = vmul.f32 %v1023, %v2064
        %v2193 = vmul.f32 %v832, %v2065
        %v2194 = vmul.f32 %v834, %v2066
        %v2195 = vmul.f32 %v1025, %v2067
        %v2196 = vmul.f32 %v1027, %v2068
        %v2197 = vmul.f32 %v838, %v2069
        %v2198 = vmul.f32 %v840, %v2070
        %v2199 = vmul.f32 %v1031, %v2071
        %v2200 = vmul.f32 %v1033, %v2072
        %v2201 = vmul.f32 %v842, %v2073
        %v2202 = vmul.f32 %v844, %v2074
        %v2203 = vmul.f32 %v1035, %v2075
        %v2204 = vmul.f32 %v1037, %v2076
        %v2205 = vmul.f32 %v848, %v2077
        %v2206 = vmul.f32 %v850, %v2078
        %v2207 = vmul.f32 %v1041, %v2079
        %v2208 = vmul.f32 %v1043, %v2080
        %v2209 = vmul.f32 %v852, %v2081
        %v2210 = vmul.f32 %v854, %v2082
        %v2211 = vmul.f32 %v1045, %v2083
        %v2212 = vmul.f32 %v1047, %v2084
        %v2213 = vmul.f32 %v858, %v2085
        %v2214 = vmul.f32 %v860, %v2086
        %v2215 = vmul.f32 %v1051, %v2087
        %v2216 = vmul.f32 %v1053, %v2088
        %v2217 = vmul.f32 %v862, %v2089
        %v2218 = vmul.f32 %v864, %v2090
        %v2219 = vmul.f32 %v1055, %v2091
        %v2220 = vmul.f32 %v1057, %v2092
        %v2221 = vmul.f32 %v868, %v2093
        %v2222 = vmul.f32 %v870, %v2094
        %v2223 = vmul.f32 %v1061, %v2095
        %v2224 = vmul.f32 %v1063, %v2096
        %v2225 = vmul.f32 %v872, %v2097
        %v2226 = vmul.f32 %v874, %v2098
        %v2227 = vmul.f32 %v1065, %v2099
        %v2228 = vmul.f32 %v1067, %v2100
        %v2229 = vmul.f32 %v878, %v2101
        %v2230 = vmul.f32 %v880, %v2102
        %v2231 = vmul.f32 %v1071, %v2103
        %v2232 = vmul.f32 %v1073, %v2104
        %v2233 = vmul.f32 %v882, %v2105
        %v2234 = vmul.f32 %v884, %v2106
        %v2235 = vmul.f32 %v1075, %v2107
        %v2236 = vmul.f32 %v1077, %v2108
        %v2237 = vmul.f32 %v888, %v2109
        %v2238 = vmul.f32 %v890, %v2110
        %v2239 = vmul.f32 %v1081, %v2111
        %v2240 = vmul.f32 %v1083, %v2112
        %v2241 = vmul.f32 %v892, %v2113
        %v2242 = vmul.f32 %v894, %v2114
        %v2243 = vmul.f32 %v1085, %v2115
        %v2244 = vmul.f32 %v1087, %v2116
        %v2245 = vmul.f32 %v898, %v2117
        %v2246 = vmul.f32 %v900, %v2118
        %v2247 = vmul.f32 %v1091, %v2119
        %v2248 = vmul.f32 %v1093, %v2120
        %v2249 = vmul.f32 %v902, %v2121
        %v2250 = vmul.f32 %v904, %v2122
        %v2251 = vmul.f32 %v1095, %v2123
        %v2252 = vmul.f32 %v1097, %v2124
        %v2253 = vmul.f32 %v908, %v2125
        %v2254 = vmul.f32 %v910, %v2126
        %v2255 = vmul.f32 %v1101, %v2127
        %v2256 = vmul.f32 %v1103, %v2128
        %v2257 = vmul.f32 %v912, %v2129
        %v2258 = vmul.f32 %v914, %v2130
        %v2259 = vmul.f32 %v1105, %v2131
        %v2260 = vmul.f32 %v1107, %v2132
        %v2261 = vpack.c.bf16 %v2137, %v2133
        %v2262 = vpack.c.bf16 %v2138, %v2134
        %v2263 = vpack.c.bf16 %v2139, %v2135
        %v2264 = vpack.c.bf16 %v2140, %v2136
        %v2265 = vpack.c.bf16 %v2145, %v2141
        %v2266 = vpack.c.bf16 %v2146, %v2142
        %v2267 = vpack.c.bf16 %v2147, %v2143
        %v2268 = vpack.c.bf16 %v2148, %v2144
        %v2269 = vpack.c.bf16 %v2153, %v2149
        %v2270 = vpack.c.bf16 %v2154, %v2150
        %v2271 = vpack.c.bf16 %v2155, %v2151
        %v2272 = vpack.c.bf16 %v2156, %v2152
        %v2273 = vpack.c.bf16 %v2161, %v2157
        %v2274 = vpack.c.bf16 %v2162, %v2158
        %v2275 = vpack.c.bf16 %v2163, %v2159
        %v2276 = vpack.c.bf16 %v2164, %v2160
        %v2277 = vpack.c.bf16 %v2169, %v2165
        %v2278 = vpack.c.bf16 %v2170, %v2166
        %v2279 = vpack.c.bf16 %v2171, %v2167
        %v2280 = vpack.c.bf16 %v2172, %v2168
        %v2281 = vpack.c.bf16 %v2177, %v2173
        %v2282 = vpack.c.bf16 %v2178, %v2174
        %v2283 = vpack.c.bf16 %v2179, %v2175
        %v2284 = vpack.c.bf16 %v2180, %v2176
        %v2285 = vpack.c.bf16 %v2185, %v2181
        %v2286 = vpack.c.bf16 %v2186, %v2182
        %v2287 = vpack.c.bf16 %v2187, %v2183
        %v2288 = vpack.c.bf16 %v2188, %v2184
        %v2289 = vpack.c.bf16 %v2193, %v2189
        %v2290 = vpack.c.bf16 %v2194, %v2190
        %v2291 = vpack.c.bf16 %v2195, %v2191
        %v2292 = vpack.c.bf16 %v2196, %v2192
        %v2293 = vpack.c.bf16 %v2201, %v2197
        %v2294 = vpack.c.bf16 %v2202, %v2198
        %v2295 = vpack.c.bf16 %v2203, %v2199
        %v2296 = vpack.c.bf16 %v2204, %v2200
        %v2297 = vpack.c.bf16 %v2209, %v2205
        %v2298 = vpack.c.bf16 %v2210, %v2206
        %v2299 = vpack.c.bf16 %v2211, %v2207
        %v2300 = vpack.c.bf16 %v2212, %v2208
        %v2301 = vpack.c.bf16 %v2217, %v2213
        %v2302 = vpack.c.bf16 %v2218, %v2214
        %v2303 = vpack.c.bf16 %v2219, %v2215
        %v2304 = vpack.c.bf16 %v2220, %v2216
        %v2305 = vpack.c.bf16 %v2225, %v2221
        %v2306 = vpack.c.bf16 %v2226, %v2222
        %v2307 = vpack.c.bf16 %v2227, %v2223
        %v2308 = vpack.c.bf16 %v2228, %v2224
        %v2309 = vpack.c.bf16 %v2233, %v2229
        %v2310 = vpack.c.bf16 %v2234, %v2230
        %v2311 = vpack.c.bf16 %v2235, %v2231
        %v2312 = vpack.c.bf16 %v2236, %v2232
        %v2313 = vpack.c.bf16 %v2241, %v2237
        %v2314 = vpack.c.bf16 %v2242, %v2238
        %v2315 = vpack.c.bf16 %v2243, %v2239
        %v2316 = vpack.c.bf16 %v2244, %v2240
        %v2317 = vpack.c.bf16 %v2249, %v2245
        %v2318 = vpack.c.bf16 %v2250, %v2246
        %v2319 = vpack.c.bf16 %v2251, %v2247
        %v2320 = vpack.c.bf16 %v2252, %v2248
        %v2321 = vpack.c.bf16 %v2257, %v2253
        %v2322 = vpack.c.bf16 %v2258, %v2254
        %v2323 = vpack.c.bf16 %v2259, %v2255
        %v2324 = vpack.c.bf16 %v2260, %v2256
        %v2325 = vld [vmem:[#allocation2] sm:$0xff]
        %v2326 = vld [vmem:[#allocation2 + $0x8] sm:$0xff]
        %v2327 = vld [vmem:[#allocation2 + $0x10] sm:$0xff]
        %v2328 = vld [vmem:[#allocation2 + $0x18] sm:$0xff]
        %v2329 = vld [vmem:[#allocation2 + $0x20] sm:$0xff]
        %v2330 = vld [vmem:[#allocation2 + $0x28] sm:$0xff]
        %v2331 = vld [vmem:[#allocation2 + $0x30] sm:$0xff]
        %v2332 = vld [vmem:[#allocation2 + $0x38] sm:$0xff]
        %v2333 = vld [vmem:[#allocation2 + $0x40] sm:$0xff]
        %v2334 = vld [vmem:[#allocation2 + $0x48] sm:$0xff]
        %v2335 = vld [vmem:[#allocation2 + $0x50] sm:$0xff]
        %v2336 = vld [vmem:[#allocation2 + $0x58] sm:$0xff]
        %v2337 = vld [vmem:[#allocation2 + $0x60] sm:$0xff]
        %v2338 = vld [vmem:[#allocation2 + $0x68] sm:$0xff]
        %v2339 = vld [vmem:[#allocation2 + $0x70] sm:$0xff]
        %v2340 = vld [vmem:[#allocation2 + $0x78] sm:$0xff]
        %v2341 = vld [vmem:[#allocation2 + $0x80] sm:$0xff]
        %v2342 = vld [vmem:[#allocation2 + $0x88] sm:$0xff]
        %v2343 = vld [vmem:[#allocation2 + $0x90] sm:$0xff]
        %v2344 = vld [vmem:[#allocation2 + $0x98] sm:$0xff]
        %v2345 = vld [vmem:[#allocation2 + $0xa0] sm:$0xff]
        %v2346 = vld [vmem:[#allocation2 + $0xa8] sm:$0xff]
        %v2347 = vld [vmem:[#allocation2 + $0xb0] sm:$0xff]
        %v2348 = vld [vmem:[#allocation2 + $0xb8] sm:$0xff]
        %v2349 = vld [vmem:[#allocation2 + $0xc0] sm:$0xff]
        %v2350 = vld [vmem:[#allocation2 + $0xc8] sm:$0xff]
        %v2351 = vld [vmem:[#allocation2 + $0xd0] sm:$0xff]
        %v2352 = vld [vmem:[#allocation2 + $0xd8] sm:$0xff]
        %v2353 = vld [vmem:[#allocation2 + $0xe0] sm:$0xff]
        %v2354 = vld [vmem:[#allocation2 + $0xe8] sm:$0xff]
        %v2355 = vld [vmem:[#allocation2 + $0xf0] sm:$0xff]
        %v2356 = vld [vmem:[#allocation2 + $0xf8] sm:$0xff]
        %v2357 = vld [vmem:[%s344] sm:$0xf]
        %v2358 = vld [vmem:[%s344 + $0x4] sm:$0xf]
        %v2359 = vld [vmem:[%s344 + $0x8] sm:$0xf]
        %v2360 = vld [vmem:[%s344 + $0xc] sm:$0xf]
        %v2361 = vld [vmem:[%s344 + $0x10] sm:$0xf]
        %v2362 = vld [vmem:[%s344 + $0x14] sm:$0xf]
        %v2363 = vld [vmem:[%s344 + $0x18] sm:$0xf]
        %v2364 = vld [vmem:[%s344 + $0x1c] sm:$0xf]
        %v2365 = vld [vmem:[%s344 + $0x20] sm:$0xf]
        %v2366 = vld [vmem:[%s344 + $0x24] sm:$0xf]
        %v2367 = vld [vmem:[%s344 + $0x28] sm:$0xf]
        %v2368 = vld [vmem:[%s344 + $0x2c] sm:$0xf]
        %v2369 = vld [vmem:[%s344 + $0x30] sm:$0xf]
        %v2370 = vld [vmem:[%s344 + $0x34] sm:$0xf]
        %v2371 = vld [vmem:[%s344 + $0x38] sm:$0xf]
        %v2372 = vld [vmem:[%s344 + $0x3c] sm:$0xf]
        %v2373 = vld [vmem:[%s344 + $0x40] sm:$0xf]
        %v2374 = vld [vmem:[%s344 + $0x44] sm:$0xf]
        %v2375 = vld [vmem:[%s344 + $0x48] sm:$0xf]
        %v2376 = vld [vmem:[%s344 + $0x4c] sm:$0xf]
        %v2377 = vld [vmem:[%s344 + $0x50] sm:$0xf]
        %v2378 = vld [vmem:[%s344 + $0x54] sm:$0xf]
        %v2379 = vld [vmem:[%s344 + $0x58] sm:$0xf]
        %v2380 = vld [vmem:[%s344 + $0x5c] sm:$0xf]
        %v2381 = vld [vmem:[%s344 + $0x60] sm:$0xf]
        %v2382 = vld [vmem:[%s344 + $0x64] sm:$0xf]
        %v2383 = vld [vmem:[%s344 + $0x68] sm:$0xf]
        %v2384 = vld [vmem:[%s344 + $0x6c] sm:$0xf]
        %v2385 = vld [vmem:[%s344 + $0x70] sm:$0xf]
        %v2386 = vld [vmem:[%s344 + $0x74] sm:$0xf]
        %v2387 = vld [vmem:[%s344 + $0x78] sm:$0xf]
        %v2388 = vld [vmem:[%s344 + $0x7c] sm:$0xf]
        %v2389 = vld [vmem:[%s344 + $0x80] sm:$0xf]
        %v2390 = vld [vmem:[%s344 + $0x84] sm:$0xf]
        %v2391 = vld [vmem:[%s344 + $0x88] sm:$0xf]
        %v2392 = vld [vmem:[%s344 + $0x8c] sm:$0xf]
        %v2393 = vld [vmem:[%s344 + $0x90] sm:$0xf]
        %v2394 = vld [vmem:[%s344 + $0x94] sm:$0xf]
        %v2395 = vld [vmem:[%s344 + $0x98] sm:$0xf]
        %v2396 = vld [vmem:[%s344 + $0x9c] sm:$0xf]
        %v2397 = vld [vmem:[%s344 + $0xa0] sm:$0xf]
        %v2398 = vld [vmem:[%s344 + $0xa4] sm:$0xf]
        %v2399 = vld [vmem:[%s344 + $0xa8] sm:$0xf]
        %v2400 = vld [vmem:[%s344 + $0xac] sm:$0xf]
        %v2401 = vld [vmem:[%s344 + $0xb0] sm:$0xf]
        %v2402 = vld [vmem:[%s344 + $0xb4] sm:$0xf]
        %v2403 = vld [vmem:[%s344 + $0xb8] sm:$0xf]
        %v2404 = vld [vmem:[%s344 + $0xbc] sm:$0xf]
        %v2405 = vld [vmem:[%s344 + $0xc0] sm:$0xf]
        %v2406 = vld [vmem:[%s344 + $0xc4] sm:$0xf]
        %v2407 = vld [vmem:[%s344 + $0xc8] sm:$0xf]
        %v2408 = vld [vmem:[%s344 + $0xcc] sm:$0xf]
        %v2409 = vld [vmem:[%s344 + $0xd0] sm:$0xf]
        %v2410 = vld [vmem:[%s344 + $0xd4] sm:$0xf]
        %v2411 = vld [vmem:[%s344 + $0xd8] sm:$0xf]
        %v2412 = vld [vmem:[%s344 + $0xdc] sm:$0xf]
        %v2413 = vld [vmem:[%s344 + $0xe0] sm:$0xf]
        %v2414 = vld [vmem:[%s344 + $0xe4] sm:$0xf]
        %v2415 = vld [vmem:[%s344 + $0xe8] sm:$0xf]
        %v2416 = vld [vmem:[%s344 + $0xec] sm:$0xf]
        %v2417 = vld [vmem:[%s344 + $0xf0] sm:$0xf]
        %v2418 = vld [vmem:[%s344 + $0xf4] sm:$0xf]
        %v2419 = vld [vmem:[%s344 + $0xf8] sm:$0xf]
        %v2420 = vld [vmem:[%s344 + $0xfc] sm:$0xf]
        %v2485 = vunpack.c.l.b16 %v2357
        %v2486 = vunpack.c.l.b16 %v2358
        %v2487 = vunpack.c.l.b16 %v2359
        %v2488 = vunpack.c.l.b16 %v2360
        %v2489 = vunpack.c.l.b16 %v2361
        %v2490 = vunpack.c.l.b16 %v2362
        %v2491 = vunpack.c.l.b16 %v2363
        %v2492 = vunpack.c.l.b16 %v2364
        %v2493 = vunpack.c.l.b16 %v2365
        %v2494 = vunpack.c.l.b16 %v2366
        %v2495 = vunpack.c.l.b16 %v2367
        %v2496 = vunpack.c.l.b16 %v2368
        %v2497 = vunpack.c.l.b16 %v2369
        %v2498 = vunpack.c.l.b16 %v2370
        %v2499 = vunpack.c.l.b16 %v2371
        %v2500 = vunpack.c.l.b16 %v2372
        %v2501 = vunpack.c.l.b16 %v2373
        %v2502 = vunpack.c.l.b16 %v2374
        %v2503 = vunpack.c.l.b16 %v2375
        %v2504 = vunpack.c.l.b16 %v2376
        %v2505 = vunpack.c.l.b16 %v2377
        %v2506 = vunpack.c.l.b16 %v2378
        %v2507 = vunpack.c.l.b16 %v2379
        %v2508 = vunpack.c.l.b16 %v2380
        %v2509 = vunpack.c.l.b16 %v2381
        %v2510 = vunpack.c.l.b16 %v2382
        %v2511 = vunpack.c.l.b16 %v2383
        %v2512 = vunpack.c.l.b16 %v2384
        %v2513 = vunpack.c.l.b16 %v2385
        %v2514 = vunpack.c.l.b16 %v2386
        %v2515 = vunpack.c.l.b16 %v2387
        %v2516 = vunpack.c.l.b16 %v2388
        %v2517 = vunpack.c.l.b16 %v2389
        %v2518 = vunpack.c.l.b16 %v2390
        %v2519 = vunpack.c.l.b16 %v2391
        %v2520 = vunpack.c.l.b16 %v2392
        %v2521 = vunpack.c.l.b16 %v2393
        %v2522 = vunpack.c.l.b16 %v2394
        %v2523 = vunpack.c.l.b16 %v2395
        %v2524 = vunpack.c.l.b16 %v2396
        %v2525 = vunpack.c.l.b16 %v2397
        %v2526 = vunpack.c.l.b16 %v2398
        %v2527 = vunpack.c.l.b16 %v2399
        %v2528 = vunpack.c.l.b16 %v2400
        %v2529 = vunpack.c.l.b16 %v2401
        %v2530 = vunpack.c.l.b16 %v2402
        %v2531 = vunpack.c.l.b16 %v2403
        %v2532 = vunpack.c.l.b16 %v2404
        %v2533 = vunpack.c.l.b16 %v2405
        %v2534 = vunpack.c.l.b16 %v2406
        %v2535 = vunpack.c.l.b16 %v2407
        %v2536 = vunpack.c.l.b16 %v2408
        %v2537 = vunpack.c.l.b16 %v2409
        %v2538 = vunpack.c.l.b16 %v2410
        %v2539 = vunpack.c.l.b16 %v2411
        %v2540 = vunpack.c.l.b16 %v2412
        %v2541 = vunpack.c.l.b16 %v2413
        %v2542 = vunpack.c.l.b16 %v2414
        %v2543 = vunpack.c.l.b16 %v2415
        %v2544 = vunpack.c.l.b16 %v2416
        %v2545 = vunpack.c.l.b16 %v2417
        %v2546 = vunpack.c.l.b16 %v2418
        %v2547 = vunpack.c.l.b16 %v2419
        %v2548 = vunpack.c.l.b16 %v2420
        %v2549 = vpack.c.b16 %v2486, %v2485
        %v2550 = vpack.c.b16 %v2488, %v2487
        %v2551 = vpack.c.b16 %v2490, %v2489
        %v2552 = vpack.c.b16 %v2492, %v2491
        %v2553 = vpack.c.b16 %v2494, %v2493
        %v2554 = vpack.c.b16 %v2496, %v2495
        %v2555 = vpack.c.b16 %v2498, %v2497
        %v2556 = vpack.c.b16 %v2500, %v2499
        %v2557 = vpack.c.b16 %v2502, %v2501
        %v2558 = vpack.c.b16 %v2504, %v2503
        %v2559 = vpack.c.b16 %v2506, %v2505
        %v2560 = vpack.c.b16 %v2508, %v2507
        %v2561 = vpack.c.b16 %v2510, %v2509
        %v2562 = vpack.c.b16 %v2512, %v2511
        %v2563 = vpack.c.b16 %v2514, %v2513
        %v2564 = vpack.c.b16 %v2516, %v2515
        %v2565 = vpack.c.b16 %v2518, %v2517
        %v2566 = vpack.c.b16 %v2520, %v2519
        %v2567 = vpack.c.b16 %v2522, %v2521
        %v2568 = vpack.c.b16 %v2524, %v2523
        %v2569 = vpack.c.b16 %v2526, %v2525
        %v2570 = vpack.c.b16 %v2528, %v2527
        %v2571 = vpack.c.b16 %v2530, %v2529
        %v2572 = vpack.c.b16 %v2532, %v2531
        %v2573 = vpack.c.b16 %v2534, %v2533
        %v2574 = vpack.c.b16 %v2536, %v2535
        %v2575 = vpack.c.b16 %v2538, %v2537
        %v2576 = vpack.c.b16 %v2540, %v2539
        %v2577 = vpack.c.b16 %v2542, %v2541
        %v2578 = vpack.c.b16 %v2544, %v2543
        %v2579 = vpack.c.b16 %v2546, %v2545
        %v2580 = vpack.c.b16 %v2548, %v2547
        %2613 = vmatprep.subr.bf16.mxu0 0
        %2614 = vmatpush1.bf16.msra.mxu0 %v2549
        %2615 = vmatprep.subr.bf16.mxu0 0
        %2616 = vmatpush1.bf16.msra.mxu0 %v2550
        %2617 = vmatprep.subr.bf16.mxu0 0
        %2618 = vmatpush1.bf16.msra.mxu0 %v2551
        %2619 = vmatprep.subr.bf16.mxu0 0
        %2620 = vmatpush1.bf16.msra.mxu0 %v2552
        %2621 = vmatprep.subr.bf16.mxu0 0
        %2622 = vmatpush1.bf16.msra.mxu0 %v2553
        %2623 = vmatprep.subr.bf16.mxu0 0
        %2624 = vmatpush1.bf16.msra.mxu0 %v2554
        %2625 = vmatprep.subr.bf16.mxu0 0
        %2626 = vmatpush1.bf16.msra.mxu0 %v2555
        %2627 = vmatprep.subr.bf16.mxu0 0
        %2628 = vmatpush1.bf16.msra.mxu0 %v2556
        %2629 = vmatprep.subr.bf16.mxu0 0
        %2630 = vmatpush1.bf16.msra.mxu0 %v2557
        %2631 = vmatprep.subr.bf16.mxu0 0
        %2632 = vmatpush1.bf16.msra.mxu0 %v2558
        %2633 = vmatprep.subr.bf16.mxu0 0
        %2634 = vmatpush1.bf16.msra.mxu0 %v2559
        %2635 = vmatprep.subr.bf16.mxu0 0
        %2636 = vmatpush1.bf16.msra.mxu0 %v2560
        %2637 = vmatprep.subr.bf16.mxu0 0
        %2638 = vmatpush1.bf16.msra.mxu0 %v2561
        %2639 = vmatprep.subr.bf16.mxu0 0
        %2640 = vmatpush1.bf16.msra.mxu0 %v2562
        %2641 = vmatprep.subr.bf16.mxu0 0
        %2642 = vmatpush1.bf16.msra.mxu0 %v2563
        %2643 = vmatprep.subr.bf16.mxu0 0
        %2644 = vmatpush1.bf16.msra.mxu0 %v2564
        %2645 = vmatprep.mubr.bf16.mxu0 %v2262
        %2646 = vmatmul.mubr.bf16.gmra.mrb[0].mxu0 %v2261
        %v2647 = vpop.f32.mrb[0].mxu0
        %v2648 = vadd.f32 0.0, %v2647
        %v2649 = vpop.f32.mrb[0].mxu0
        %v2650 = vpop.f32.mrb[0].mxu0
        %v2651 = vadd.f32 0.0, %v2650
        %v2652 = vpop.f32.mrb[0].mxu0
        %2653 = vmatprep.mubr.bf16.mxu0 %v2266
        %2654 = vmatmul.mubr.bf16.gmra.mrb[0].mxu0 %v2265
        %v2655 = vpop.f32.mrb[0].mxu0
        %v2656 = vadd.f32 0.0, %v2655
        %v2657 = vpop.f32.mrb[0].mxu0
        %v2658 = vpop.f32.mrb[0].mxu0
        %v2659 = vadd.f32 0.0, %v2658
        %v2660 = vpop.f32.mrb[0].mxu0
        %2661 = vmatprep.mubr.bf16.mxu0 %v2270
        %2662 = vmatmul.mubr.bf16.gmra.mrb[0].mxu0 %v2269
        %v2663 = vpop.f32.mrb[0].mxu0
        %v2664 = vadd.f32 0.0, %v2663
        %v2665 = vpop.f32.mrb[0].mxu0
        %v2666 = vpop.f32.mrb[0].mxu0
        %v2667 = vadd.f32 0.0, %v2666
        %v2668 = vpop.f32.mrb[0].mxu0
        %2669 = vmatprep.mubr.bf16.mxu0 %v2274
        %2670 = vmatmul.mubr.bf16.gmra.mrb[0].mxu0 %v2273
        %v2671 = vpop.f32.mrb[0].mxu0
        %v2672 = vadd.f32 0.0, %v2671
        %v2673 = vpop.f32.mrb[0].mxu0
        %v2674 = vpop.f32.mrb[0].mxu0
        %v2675 = vadd.f32 0.0, %v2674
        %v2676 = vpop.f32.mrb[0].mxu0
        %2677 = vmatprep.mubr.bf16.mxu0 %v2278
        %2678 = vmatmul.mubr.bf16.gmra.mrb[0].mxu0 %v2277
        %v2679 = vpop.f32.mrb[0].mxu0
        %v2680 = vadd.f32 0.0, %v2679
        %v2681 = vpop.f32.mrb[0].mxu0
        %v2682 = vpop.f32.mrb[0].mxu0
        %v2683 = vadd.f32 0.0, %v2682
        %v2684 = vpop.f32.mrb[0].mxu0
        %2685 = vmatprep.mubr.bf16.mxu0 %v2282
        %2686 = vmatmul.mubr.bf16.gmra.mrb[0].mxu0 %v2281
        %v2687 = vpop.f32.mrb[0].mxu0
        %v2688 = vadd.f32 0.0, %v2687
        %v2689 = vpop.f32.mrb[0].mxu0
        %v2690 = vpop.f32.mrb[0].mxu0
        %v2691 = vadd.f32 0.0, %v2690
        %v2692 = vpop.f32.mrb[0].mxu0
        %2693 = vmatprep.mubr.bf16.mxu0 %v2286
        %2694 = vmatmul.mubr.bf16.gmra.mrb[0].mxu0 %v2285
        %v2695 = vpop.f32.mrb[0].mxu0
        %v2696 = vadd.f32 0.0, %v2695
        %v2697 = vpop.f32.mrb[0].mxu0
        %v2698 = vpop.f32.mrb[0].mxu0
        %v2699 = vadd.f32 0.0, %v2698
        %v2700 = vpop.f32.mrb[0].mxu0
        %2701 = vmatprep.mubr.bf16.mxu0 %v2290
        %2702 = vmatmul.mubr.bf16.gmra.mrb[0].mxu0 %v2289
        %v2703 = vpop.f32.mrb[0].mxu0
        %v2704 = vadd.f32 0.0, %v2703
        %v2705 = vpop.f32.mrb[0].mxu0
        %v2706 = vpop.f32.mrb[0].mxu0
        %v2707 = vadd.f32 0.0, %v2706
        %v2708 = vpop.f32.mrb[0].mxu0
        %2709 = vmatprep.mubr.bf16.mxu0 %v2294
        %2710 = vmatmul.mubr.bf16.gmra.mrb[0].mxu0 %v2293
        %v2711 = vpop.f32.mrb[0].mxu0
        %v2712 = vadd.f32 0.0, %v2711
        %v2713 = vpop.f32.mrb[0].mxu0
        %v2714 = vpop.f32.mrb[0].mxu0
        %v2715 = vadd.f32 0.0, %v2714
        %v2716 = vpop.f32.mrb[0].mxu0
        %2717 = vmatprep.mubr.bf16.mxu0 %v2298
        %2718 = vmatmul.mubr.bf16.gmra.mrb[0].mxu0 %v2297
        %v2719 = vpop.f32.mrb[0].mxu0
        %v2720 = vadd.f32 0.0, %v2719
        %v2721 = vpop.f32.mrb[0].mxu0
        %v2722 = vpop.f32.mrb[0].mxu0
        %v2723 = vadd.f32 0.0, %v2722
        %v2724 = vpop.f32.mrb[0].mxu0
        %2725 = vmatprep.mubr.bf16.mxu0 %v2302
        %2726 = vmatmul.mubr.bf16.gmra.mrb[0].mxu0 %v2301
        %v2727 = vpop.f32.mrb[0].mxu0
        %v2728 = vadd.f32 0.0, %v2727
        %v2729 = vpop.f32.mrb[0].mxu0
        %v2730 = vpop.f32.mrb[0].mxu0
        %v2731 = vadd.f32 0.0, %v2730
        %v2732 = vpop.f32.mrb[0].mxu0
        %2733 = vmatprep.mubr.bf16.mxu0 %v2306
        %2734 = vmatmul.mubr.bf16.gmra.mrb[0].mxu0 %v2305
        %v2735 = vpop.f32.mrb[0].mxu0
        %v2736 = vadd.f32 0.0, %v2735
        %v2737 = vpop.f32.mrb[0].mxu0
        %v2738 = vpop.f32.mrb[0].mxu0
        %v2739 = vadd.f32 0.0, %v2738
        %v2740 = vpop.f32.mrb[0].mxu0
        %2741 = vmatprep.mubr.bf16.mxu0 %v2310
        %2742 = vmatmul.mubr.bf16.gmra.mrb[0].mxu0 %v2309
        %v2743 = vpop.f32.mrb[0].mxu0
        %v2744 = vadd.f32 0.0, %v2743
        %v2745 = vpop.f32.mrb[0].mxu0
        %v2746 = vpop.f32.mrb[0].mxu0
        %v2747 = vadd.f32 0.0, %v2746
        %v2748 = vpop.f32.mrb[0].mxu0
        %2749 = vmatprep.mubr.bf16.mxu0 %v2314
        %2750 = vmatmul.mubr.bf16.gmra.mrb[0].mxu0 %v2313
        %v2751 = vpop.f32.mrb[0].mxu0
        %v2752 = vadd.f32 0.0, %v2751
        %v2753 = vpop.f32.mrb[0].mxu0
        %v2754 = vpop.f32.mrb[0].mxu0
        %v2755 = vadd.f32 0.0, %v2754
        %v2756 = vpop.f32.mrb[0].mxu0
        %2757 = vmatprep.mubr.bf16.mxu0 %v2318
        %2758 = vmatmul.mubr.bf16.gmra.mrb[0].mxu0 %v2317
        %v2759 = vpop.f32.mrb[0].mxu0
        %v2760 = vadd.f32 0.0, %v2759
        %v2761 = vpop.f32.mrb[0].mxu0
        %v2762 = vpop.f32.mrb[0].mxu0
        %v2763 = vadd.f32 0.0, %v2762
        %v2764 = vpop.f32.mrb[0].mxu0
        %2765 = vmatprep.mubr.bf16.mxu0 %v2322
        %2766 = vmatmul.mubr.bf16.gmra.mrb[0].mxu0 %v2321
        %v2767 = vpop.f32.mrb[0].mxu0
        %v2768 = vadd.f32 0.0, %v2767
        %v2769 = vpop.f32.mrb[0].mxu0
        %v2770 = vpop.f32.mrb[0].mxu0
        %v2771 = vadd.f32 0.0, %v2770
        %v2772 = vpop.f32.mrb[0].mxu0
        %2773 = vdwg.mxu0
        %2774 = vmatprep.subr.bf16.mxu0 0
        %2775 = vmatpush1.bf16.msra.mxu0 %v2565
        %2776 = vmatprep.subr.bf16.mxu0 0
        %2777 = vmatpush1.bf16.msra.mxu0 %v2566
        %2778 = vmatprep.subr.bf16.mxu0 0
        %2779 = vmatpush1.bf16.msra.mxu0 %v2567
        %2780 = vmatprep.subr.bf16.mxu0 0
        %2781 = vmatpush1.bf16.msra.mxu0 %v2568
        %2782 = vmatprep.subr.bf16.mxu0 0
        %2783 = vmatpush1.bf16.msra.mxu0 %v2569
        %2784 = vmatprep.subr.bf16.mxu0 0
        %2785 = vmatpush1.bf16.msra.mxu0 %v2570
        %2786 = vmatprep.subr.bf16.mxu0 0
        %2787 = vmatpush1.bf16.msra.mxu0 %v2571
        %2788 = vmatprep.subr.bf16.mxu0 0
        %2789 = vmatpush1.bf16.msra.mxu0 %v2572
        %2790 = vmatprep.subr.bf16.mxu0 0
        %2791 = vmatpush1.bf16.msra.mxu0 %v2573
        %2792 = vmatprep.subr.bf16.mxu0 0
        %2793 = vmatpush1.bf16.msra.mxu0 %v2574
        %2794 = vmatprep.subr.bf16.mxu0 0
        %2795 = vmatpush1.bf16.msra.mxu0 %v2575
        %2796 = vmatprep.subr.bf16.mxu0 0
        %2797 = vmatpush1.bf16.msra.mxu0 %v2576
        %2798 = vmatprep.subr.bf16.mxu0 0
        %2799 = vmatpush1.bf16.msra.mxu0 %v2577
        %2800 = vmatprep.subr.bf16.mxu0 0
        %2801 = vmatpush1.bf16.msra.mxu0 %v2578
        %2802 = vmatprep.subr.bf16.mxu0 0
        %2803 = vmatpush1.bf16.msra.mxu0 %v2579
        %2804 = vmatprep.subr.bf16.mxu0 0
        %2805 = vmatpush1.bf16.msra.mxu0 %v2580
        %2806 = vmatprep.mubr.bf16.mxu0 %v2264
        %2807 = vmatmul.mubr.bf16.gmra.mrb[0].mxu0 %v2263
        %v2808 = vpop.f32.mrb[0].mxu0
        %v2809 = vadd.f32 %v2648, %v2808
        %v2810 = vpop.f32.mrb[0].mxu0
        %v2811 = vpop.f32.mrb[0].mxu0
        %v2812 = vadd.f32 %v2651, %v2811
        %v2813 = vpop.f32.mrb[0].mxu0
        %2814 = vmatprep.mubr.bf16.mxu0 %v2268
        %2815 = vmatmul.mubr.bf16.gmra.mrb[0].mxu0 %v2267
        %v2816 = vpop.f32.mrb[0].mxu0
        %v2817 = vadd.f32 %v2656, %v2816
        %v2818 = vpop.f32.mrb[0].mxu0
        %v2819 = vpop.f32.mrb[0].mxu0
        %v2820 = vadd.f32 %v2659, %v2819
        %v2821 = vpop.f32.mrb[0].mxu0
        %2822 = vmatprep.mubr.bf16.mxu0 %v2272
        %2823 = vmatmul.mubr.bf16.gmra.mrb[0].mxu0 %v2271
        %v2824 = vpop.f32.mrb[0].mxu0
        %v2825 = vadd.f32 %v2664, %v2824
        %v2826 = vpop.f32.mrb[0].mxu0
        %v2827 = vpop.f32.mrb[0].mxu0
        %v2828 = vadd.f32 %v2667, %v2827
        %v2829 = vpop.f32.mrb[0].mxu0
        %2830 = vmatprep.mubr.bf16.mxu0 %v2276
        %2831 = vmatmul.mubr.bf16.gmra.mrb[0].mxu0 %v2275
        %v2832 = vpop.f32.mrb[0].mxu0
        %v2833 = vadd.f32 %v2672, %v2832
        %v2834 = vpop.f32.mrb[0].mxu0
        %v2835 = vpop.f32.mrb[0].mxu0
        %v2836 = vadd.f32 %v2675, %v2835
        %v2837 = vpop.f32.mrb[0].mxu0
        %2838 = vmatprep.mubr.bf16.mxu0 %v2280
        %2839 = vmatmul.mubr.bf16.gmra.mrb[0].mxu0 %v2279
        %v2840 = vpop.f32.mrb[0].mxu0
        %v2841 = vadd.f32 %v2680, %v2840
        %v2842 = vpop.f32.mrb[0].mxu0
        %v2843 = vpop.f32.mrb[0].mxu0
        %v2844 = vadd.f32 %v2683, %v2843
        %v2845 = vpop.f32.mrb[0].mxu0
        %2846 = vmatprep.mubr.bf16.mxu0 %v2284
        %2847 = vmatmul.mubr.bf16.gmra.mrb[0].mxu0 %v2283
        %v2848 = vpop.f32.mrb[0].mxu0
        %v2849 = vadd.f32 %v2688, %v2848
        %v2850 = vpop.f32.mrb[0].mxu0
        %v2851 = vpop.f32.mrb[0].mxu0
        %v2852 = vadd.f32 %v2691, %v2851
        %v2853 = vpop.f32.mrb[0].mxu0
        %2854 = vmatprep.mubr.bf16.mxu0 %v2288
        %2855 = vmatmul.mubr.bf16.gmra.mrb[0].mxu0 %v2287
        %v2856 = vpop.f32.mrb[0].mxu0
        %v2857 = vadd.f32 %v2696, %v2856
        %v2858 = vpop.f32.mrb[0].mxu0
        %v2859 = vpop.f32.mrb[0].mxu0
        %v2860 = vadd.f32 %v2699, %v2859
        %v2861 = vpop.f32.mrb[0].mxu0
        %2862 = vmatprep.mubr.bf16.mxu0 %v2292
        %2863 = vmatmul.mubr.bf16.gmra.mrb[0].mxu0 %v2291
        %v2864 = vpop.f32.mrb[0].mxu0
        %v2865 = vadd.f32 %v2704, %v2864
        %v2866 = vpop.f32.mrb[0].mxu0
        %v2867 = vpop.f32.mrb[0].mxu0
        %v2868 = vadd.f32 %v2707, %v2867
        %v2869 = vpop.f32.mrb[0].mxu0
        %2870 = vmatprep.mubr.bf16.mxu0 %v2296
        %2871 = vmatmul.mubr.bf16.gmra.mrb[0].mxu0 %v2295
        %v2872 = vpop.f32.mrb[0].mxu0
        %v2873 = vadd.f32 %v2712, %v2872
        %v2874 = vpop.f32.mrb[0].mxu0
        %v2875 = vpop.f32.mrb[0].mxu0
        %v2876 = vadd.f32 %v2715, %v2875
        %v2877 = vpop.f32.mrb[0].mxu0
        %2878 = vmatprep.mubr.bf16.mxu0 %v2300
        %2879 = vmatmul.mubr.bf16.gmra.mrb[0].mxu0 %v2299
        %v2880 = vpop.f32.mrb[0].mxu0
        %v2881 = vadd.f32 %v2720, %v2880
        %v2882 = vpop.f32.mrb[0].mxu0
        %v2883 = vpop.f32.mrb[0].mxu0
        %v2884 = vadd.f32 %v2723, %v2883
        %v2885 = vpop.f32.mrb[0].mxu0
        %2886 = vmatprep.mubr.bf16.mxu0 %v2304
        %2887 = vmatmul.mubr.bf16.gmra.mrb[0].mxu0 %v2303
        %v2888 = vpop.f32.mrb[0].mxu0
        %v2889 = vadd.f32 %v2728, %v2888
        %v2890 = vpop.f32.mrb[0].mxu0
        %v2891 = vpop.f32.mrb[0].mxu0
        %v2892 = vadd.f32 %v2731, %v2891
        %v2893 = vpop.f32.mrb[0].mxu0
        %2894 = vmatprep.mubr.bf16.mxu0 %v2308
        %2895 = vmatmul.mubr.bf16.gmra.mrb[0].mxu0 %v2307
        %v2896 = vpop.f32.mrb[0].mxu0
        %v2897 = vadd.f32 %v2736, %v2896
        %v2898 = vpop.f32.mrb[0].mxu0
        %v2899 = vpop.f32.mrb[0].mxu0
        %v2900 = vadd.f32 %v2739, %v2899
        %v2901 = vpop.f32.mrb[0].mxu0
        %2902 = vmatprep.mubr.bf16.mxu0 %v2312
        %2903 = vmatmul.mubr.bf16.gmra.mrb[0].mxu0 %v2311
        %v2904 = vpop.f32.mrb[0].mxu0
        %v2905 = vadd.f32 %v2744, %v2904
        %v2906 = vpop.f32.mrb[0].mxu0
        %v2907 = vpop.f32.mrb[0].mxu0
        %v2908 = vadd.f32 %v2747, %v2907
        %v2909 = vpop.f32.mrb[0].mxu0
        %2910 = vmatprep.mubr.bf16.mxu0 %v2316
        %2911 = vmatmul.mubr.bf16.gmra.mrb[0].mxu0 %v2315
        %v2912 = vpop.f32.mrb[0].mxu0
        %v2913 = vadd.f32 %v2752, %v2912
        %v2914 = vpop.f32.mrb[0].mxu0
        %v2915 = vpop.f32.mrb[0].mxu0
        %v2916 = vadd.f32 %v2755, %v2915
        %v2917 = vpop.f32.mrb[0].mxu0
        %2918 = vmatprep.mubr.bf16.mxu0 %v2320
        %2919 = vmatmul.mubr.bf16.gmra.mrb[0].mxu0 %v2319
        %v2920 = vpop.f32.mrb[0].mxu0
        %v2921 = vadd.f32 %v2760, %v2920
        %v2922 = vpop.f32.mrb[0].mxu0
        %v2923 = vpop.f32.mrb[0].mxu0
        %v2924 = vadd.f32 %v2763, %v2923
        %v2925 = vpop.f32.mrb[0].mxu0
        %2926 = vmatprep.mubr.bf16.mxu0 %v2324
        %2927 = vmatmul.mubr.bf16.gmra.mrb[0].mxu0 %v2323
        %v2928 = vpop.f32.mrb[0].mxu0
        %v2929 = vadd.f32 %v2768, %v2928
        %v2930 = vpop.f32.mrb[0].mxu0
        %v2931 = vpop.f32.mrb[0].mxu0
        %v2932 = vadd.f32 %v2771, %v2931
        %v2933 = vpop.f32.mrb[0].mxu0
        %2934 = vdwg.mxu0
        %v2935 = vadd.f32 %v2325, %v2809
        %v2936 = vadd.f32 %v2326, %v2812
        %v2937 = vadd.f32 %v2327, %v2817
        %v2938 = vadd.f32 %v2328, %v2820
        %v2939 = vadd.f32 %v2329, %v2825
        %v2940 = vadd.f32 %v2330, %v2828
        %v2941 = vadd.f32 %v2331, %v2833
        %v2942 = vadd.f32 %v2332, %v2836
        %v2943 = vadd.f32 %v2333, %v2841
        %v2944 = vadd.f32 %v2334, %v2844
        %v2945 = vadd.f32 %v2335, %v2849
        %v2946 = vadd.f32 %v2336, %v2852
        %v2947 = vadd.f32 %v2337, %v2857
        %v2948 = vadd.f32 %v2338, %v2860
        %v2949 = vadd.f32 %v2339, %v2865
        %v2950 = vadd.f32 %v2340, %v2868
        %v2951 = vadd.f32 %v2341, %v2873
        %v2952 = vadd.f32 %v2342, %v2876
        %v2953 = vadd.f32 %v2343, %v2881
        %v2954 = vadd.f32 %v2344, %v2884
        %v2955 = vadd.f32 %v2345, %v2889
        %v2956 = vadd.f32 %v2346, %v2892
        %v2957 = vadd.f32 %v2347, %v2897
        %v2958 = vadd.f32 %v2348, %v2900
        %v2959 = vadd.f32 %v2349, %v2905
        %v2960 = vadd.f32 %v2350, %v2908
        %v2961 = vadd.f32 %v2351, %v2913
        %v2962 = vadd.f32 %v2352, %v2916
        %v2963 = vadd.f32 %v2353, %v2921
        %v2964 = vadd.f32 %v2354, %v2924
        %v2965 = vadd.f32 %v2355, %v2929
        %v2966 = vadd.f32 %v2356, %v2932
        %2967 = vst [vmem:[#allocation2] sm:$0xff] %v2935
        %2968 = vst [vmem:[#allocation2 + $0x8] sm:$0xff] %v2936
        %2969 = vst [vmem:[#allocation2 + $0x10] sm:$0xff] %v2937
        %2970 = vst [vmem:[#allocation2 + $0x18] sm:$0xff] %v2938
        %2971 = vst [vmem:[#allocation2 + $0x20] sm:$0xff] %v2939
        %2972 = vst [vmem:[#allocation2 + $0x28] sm:$0xff] %v2940
        %2973 = vst [vmem:[#allocation2 + $0x30] sm:$0xff] %v2941
        %2974 = vst [vmem:[#allocation2 + $0x38] sm:$0xff] %v2942
        %2975 = vst [vmem:[#allocation2 + $0x40] sm:$0xff] %v2943
        %2976 = vst [vmem:[#allocation2 + $0x48] sm:$0xff] %v2944
        %2977 = vst [vmem:[#allocation2 + $0x50] sm:$0xff] %v2945
        %2978 = vst [vmem:[#allocation2 + $0x58] sm:$0xff] %v2946
        %2979 = vst [vmem:[#allocation2 + $0x60] sm:$0xff] %v2947
        %2980 = vst [vmem:[#allocation2 + $0x68] sm:$0xff] %v2948
        %2981 = vst [vmem:[#allocation2 + $0x70] sm:$0xff] %v2949
        %2982 = vst [vmem:[#allocation2 + $0x78] sm:$0xff] %v2950
        %2983 = vst [vmem:[#allocation2 + $0x80] sm:$0xff] %v2951
        %2984 = vst [vmem:[#allocation2 + $0x88] sm:$0xff] %v2952
        %2985 = vst [vmem:[#allocation2 + $0x90] sm:$0xff] %v2953
        %2986 = vst [vmem:[#allocation2 + $0x98] sm:$0xff] %v2954
        %2987 = vst [vmem:[#allocation2 + $0xa0] sm:$0xff] %v2955
        %2988 = vst [vmem:[#allocation2 + $0xa8] sm:$0xff] %v2956
        %2989 = vst [vmem:[#allocation2 + $0xb0] sm:$0xff] %v2957
        %2990 = vst [vmem:[#allocation2 + $0xb8] sm:$0xff] %v2958
        %2991 = vst [vmem:[#allocation2 + $0xc0] sm:$0xff] %v2959
        %2992 = vst [vmem:[#allocation2 + $0xc8] sm:$0xff] %v2960
        %2993 = vst [vmem:[#allocation2 + $0xd0] sm:$0xff] %v2961
        %2994 = vst [vmem:[#allocation2 + $0xd8] sm:$0xff] %v2962
        %2995 = vst [vmem:[#allocation2 + $0xe0] sm:$0xff] %v2963
        %2996 = vst [vmem:[#allocation2 + $0xe8] sm:$0xff] %v2964
        %2997 = vst [vmem:[#allocation2 + $0xf0] sm:$0xff] %v2965
        %2998 = vst [vmem:[#allocation2 + $0xf8] sm:$0xff] %v2966
      $region44: #{parallel_dropless_mlp_forward.1} parent=35 // pred_fallthru
        _
      // Predicated region
      $region45: #{parallel_dropless_mlp_forward.1} parent=35 // pred_check
        %p2999 = pneg %p364
      $region46: #{parallel_dropless_mlp_forward.1} parent=35 // pred_check_branch
        %3001 = sbr.rel (%p2999) target = $region48
      $region47: #{parallel_dropless_mlp_forward.1} parent=35 // pred_region
        %v3002 = vld [vmem:[#allocation2] sm:$0xff]
        %v3003 = vld [vmem:[#allocation2 + $0x8] sm:$0xff]
        %v3004 = vld [vmem:[#allocation2 + $0x10] sm:$0xff]
        %v3005 = vld [vmem:[#allocation2 + $0x18] sm:$0xff]
        %v3006 = vld [vmem:[#allocation2 + $0x20] sm:$0xff]
        %v3007 = vld [vmem:[#allocation2 + $0x28] sm:$0xff]
        %v3008 = vld [vmem:[#allocation2 + $0x30] sm:$0xff]
        %v3009 = vld [vmem:[#allocation2 + $0x38] sm:$0xff]
        %v3010 = vld [vmem:[#allocation2 + $0x40] sm:$0xff]
        %v3011 = vld [vmem:[#allocation2 + $0x48] sm:$0xff]
        %v3012 = vld [vmem:[#allocation2 + $0x50] sm:$0xff]
        %v3013 = vld [vmem:[#allocation2 + $0x58] sm:$0xff]
        %v3014 = vld [vmem:[#allocation2 + $0x60] sm:$0xff]
        %v3015 = vld [vmem:[#allocation2 + $0x68] sm:$0xff]
        %v3016 = vld [vmem:[#allocation2 + $0x70] sm:$0xff]
        %v3017 = vld [vmem:[#allocation2 + $0x78] sm:$0xff]
        %v3018 = vld [vmem:[#allocation2 + $0x80] sm:$0xff]
        %v3019 = vld [vmem:[#allocation2 + $0x88] sm:$0xff]
        %v3020 = vld [vmem:[#allocation2 + $0x90] sm:$0xff]
        %v3021 = vld [vmem:[#allocation2 + $0x98] sm:$0xff]
        %v3022 = vld [vmem:[#allocation2 + $0xa0] sm:$0xff]
        %v3023 = vld [vmem:[#allocation2 + $0xa8] sm:$0xff]
        %v3024 = vld [vmem:[#allocation2 + $0xb0] sm:$0xff]
        %v3025 = vld [vmem:[#allocation2 + $0xb8] sm:$0xff]
        %v3026 = vld [vmem:[#allocation2 + $0xc0] sm:$0xff]
        %v3027 = vld [vmem:[#allocation2 + $0xc8] sm:$0xff]
        %v3028 = vld [vmem:[#allocation2 + $0xd0] sm:$0xff]
        %v3029 = vld [vmem:[#allocation2 + $0xd8] sm:$0xff]
        %v3030 = vld [vmem:[#allocation2 + $0xe0] sm:$0xff]
        %v3031 = vld [vmem:[#allocation2 + $0xe8] sm:$0xff]
        %v3032 = vld [vmem:[#allocation2 + $0xf0] sm:$0xff]
        %v3033 = vld [vmem:[#allocation2 + $0xf8] sm:$0xff]
        %v3034 = vld [vmem:[%s353] sm:$0xff]
        %v3035 = vld [vmem:[%s353 + $0x8] sm:$0xff]
        %v3036 = vld [vmem:[%s353 + $0x10] sm:$0xff]
        %v3037 = vld [vmem:[%s353 + $0x18] sm:$0xff]
        %v3038 = vld [vmem:[%s353 + $0x20] sm:$0xff]
        %v3039 = vld [vmem:[%s353 + $0x28] sm:$0xff]
        %v3040 = vld [vmem:[%s353 + $0x30] sm:$0xff]
        %v3041 = vld [vmem:[%s353 + $0x38] sm:$0xff]
        %v3042 = vld [vmem:[%s353 + $0x40] sm:$0xff]
        %v3043 = vld [vmem:[%s353 + $0x48] sm:$0xff]
        %v3044 = vld [vmem:[%s353 + $0x50] sm:$0xff]
        %v3045 = vld [vmem:[%s353 + $0x58] sm:$0xff]
        %v3046 = vld [vmem:[%s353 + $0x60] sm:$0xff]
        %v3047 = vld [vmem:[%s353 + $0x68] sm:$0xff]
        %v3048 = vld [vmem:[%s353 + $0x70] sm:$0xff]
        %v3049 = vld [vmem:[%s353 + $0x78] sm:$0xff]
        %v3050 = vld [vmem:[%s353 + $0x80] sm:$0xff]
        %v3051 = vld [vmem:[%s353 + $0x88] sm:$0xff]
        %v3052 = vld [vmem:[%s353 + $0x90] sm:$0xff]
        %v3053 = vld [vmem:[%s353 + $0x98] sm:$0xff]
        %v3054 = vld [vmem:[%s353 + $0xa0] sm:$0xff]
        %v3055 = vld [vmem:[%s353 + $0xa8] sm:$0xff]
        %v3056 = vld [vmem:[%s353 + $0xb0] sm:$0xff]
        %v3057 = vld [vmem:[%s353 + $0xb8] sm:$0xff]
        %v3058 = vld [vmem:[%s353 + $0xc0] sm:$0xff]
        %v3059 = vld [vmem:[%s353 + $0xc8] sm:$0xff]
        %v3060 = vld [vmem:[%s353 + $0xd0] sm:$0xff]
        %v3061 = vld [vmem:[%s353 + $0xd8] sm:$0xff]
        %v3062 = vld [vmem:[%s353 + $0xe0] sm:$0xff]
        %v3063 = vld [vmem:[%s353 + $0xe8] sm:$0xff]
        %v3064 = vld [vmem:[%s353 + $0xf0] sm:$0xff]
        %v3065 = vld [vmem:[%s353 + $0xf8] sm:$0xff]
        %3067 = vset.pattern.permute.xlu0 0
        %3068 = vperm.xlu0 %3067, %v3034
        %v3069 = vpop.permute.xlu0 %3068
        %3072 = vset.pattern.permute.xlu0 0
        %3073 = vperm.xlu0 %3072, %v3035
        %v3074 = vpop.permute.xlu0 %3073
        %3077 = vset.pattern.permute.xlu0 0
        %3078 = vperm.xlu0 %3077, %v3036
        %v3079 = vpop.permute.xlu0 %3078
        %3082 = vset.pattern.permute.xlu0 0
        %3083 = vperm.xlu0 %3082, %v3037
        %v3084 = vpop.permute.xlu0 %3083
        %3087 = vset.pattern.permute.xlu0 0
        %3088 = vperm.xlu0 %3087, %v3038
        %v3089 = vpop.permute.xlu0 %3088
        %3092 = vset.pattern.permute.xlu0 0
        %3093 = vperm.xlu0 %3092, %v3039
        %v3094 = vpop.permute.xlu0 %3093
        %3097 = vset.pattern.permute.xlu0 0
        %3098 = vperm.xlu0 %3097, %v3040
        %v3099 = vpop.permute.xlu0 %3098
        %3102 = vset.pattern.permute.xlu0 0
        %3103 = vperm.xlu0 %3102, %v3041
        %v3104 = vpop.permute.xlu0 %3103
        %3107 = vset.pattern.permute.xlu0 0
        %3108 = vperm.xlu0 %3107, %v3042
        %v3109 = vpop.permute.xlu0 %3108
        %3112 = vset.pattern.permute.xlu0 0
        %3113 = vperm.xlu0 %3112, %v3043
        %v3114 = vpop.permute.xlu0 %3113
        %3117 = vset.pattern.permute.xlu0 0
        %3118 = vperm.xlu0 %3117, %v3044
        %v3119 = vpop.permute.xlu0 %3118
        %3122 = vset.pattern.permute.xlu0 0
        %3123 = vperm.xlu0 %3122, %v3045
        %v3124 = vpop.permute.xlu0 %3123
        %3127 = vset.pattern.permute.xlu0 0
        %3128 = vperm.xlu0 %3127, %v3046
        %v3129 = vpop.permute.xlu0 %3128
        %3132 = vset.pattern.permute.xlu0 0
        %3133 = vperm.xlu0 %3132, %v3047
        %v3134 = vpop.permute.xlu0 %3133
        %3137 = vset.pattern.permute.xlu0 0
        %3138 = vperm.xlu0 %3137, %v3048
        %v3139 = vpop.permute.xlu0 %3138
        %3142 = vset.pattern.permute.xlu0 0
        %3143 = vperm.xlu0 %3142, %v3049
        %v3144 = vpop.permute.xlu0 %3143
        %3147 = vset.pattern.permute.xlu0 0
        %3148 = vperm.xlu0 %3147, %v3050
        %v3149 = vpop.permute.xlu0 %3148
        %3152 = vset.pattern.permute.xlu0 0
        %3153 = vperm.xlu0 %3152, %v3051
        %v3154 = vpop.permute.xlu0 %3153
        %3157 = vset.pattern.permute.xlu0 0
        %3158 = vperm.xlu0 %3157, %v3052
        %v3159 = vpop.permute.xlu0 %3158
        %3162 = vset.pattern.permute.xlu0 0
        %3163 = vperm.xlu0 %3162, %v3053
        %v3164 = vpop.permute.xlu0 %3163
        %3167 = vset.pattern.permute.xlu0 0
        %3168 = vperm.xlu0 %3167, %v3054
        %v3169 = vpop.permute.xlu0 %3168
        %3172 = vset.pattern.permute.xlu0 0
        %3173 = vperm.xlu0 %3172, %v3055
        %v3174 = vpop.permute.xlu0 %3173
        %3177 = vset.pattern.permute.xlu0 0
        %3178 = vperm.xlu0 %3177, %v3056
        %v3179 = vpop.permute.xlu0 %3178
        %3182 = vset.pattern.permute.xlu0 0
        %3183 = vperm.xlu0 %3182, %v3057
        %v3184 = vpop.permute.xlu0 %3183
        %3187 = vset.pattern.permute.xlu0 0
        %3188 = vperm.xlu0 %3187, %v3058
        %v3189 = vpop.permute.xlu0 %3188
        %3192 = vset.pattern.permute.xlu0 0
        %3193 = vperm.xlu0 %3192, %v3059
        %v3194 = vpop.permute.xlu0 %3193
        %3197 = vset.pattern.permute.xlu0 0
        %3198 = vperm.xlu0 %3197, %v3060
        %v3199 = vpop.permute.xlu0 %3198
        %3202 = vset.pattern.permute.xlu0 0
        %3203 = vperm.xlu0 %3202, %v3061
        %v3204 = vpop.permute.xlu0 %3203
        %3207 = vset.pattern.permute.xlu0 0
        %3208 = vperm.xlu0 %3207, %v3062
        %v3209 = vpop.permute.xlu0 %3208
        %3212 = vset.pattern.permute.xlu0 0
        %3213 = vperm.xlu0 %3212, %v3063
        %v3214 = vpop.permute.xlu0 %3213
        %3217 = vset.pattern.permute.xlu0 0
        %3218 = vperm.xlu0 %3217, %v3064
        %v3219 = vpop.permute.xlu0 %3218
        %3222 = vset.pattern.permute.xlu0 0
        %3223 = vperm.xlu0 %3222, %v3065
        %v3224 = vpop.permute.xlu0 %3223
        %v3226 = vmul.f32 %v3002, %v3069
        %v3227 = vmul.f32 %v3003, %v3074
        %v3228 = vmul.f32 %v3004, %v3079
        %v3229 = vmul.f32 %v3005, %v3084
        %v3230 = vmul.f32 %v3006, %v3089
        %v3231 = vmul.f32 %v3007, %v3094
        %v3232 = vmul.f32 %v3008, %v3099
        %v3233 = vmul.f32 %v3009, %v3104
        %v3234 = vmul.f32 %v3010, %v3109
        %v3235 = vmul.f32 %v3011, %v3114
        %v3236 = vmul.f32 %v3012, %v3119
        %v3237 = vmul.f32 %v3013, %v3124
        %v3238 = vmul.f32 %v3014, %v3129
        %v3239 = vmul.f32 %v3015, %v3134
        %v3240 = vmul.f32 %v3016, %v3139
        %v3241 = vmul.f32 %v3017, %v3144
        %v3242 = vmul.f32 %v3018, %v3149
        %v3243 = vmul.f32 %v3019, %v3154
        %v3244 = vmul.f32 %v3020, %v3159
        %v3245 = vmul.f32 %v3021, %v3164
        %v3246 = vmul.f32 %v3022, %v3169
        %v3247 = vmul.f32 %v3023, %v3174
        %v3248 = vmul.f32 %v3024, %v3179
        %v3249 = vmul.f32 %v3025, %v3184
        %v3250 = vmul.f32 %v3026, %v3189
        %v3251 = vmul.f32 %v3027, %v3194
        %v3252 = vmul.f32 %v3028, %v3199
        %v3253 = vmul.f32 %v3029, %v3204
        %v3254 = vmul.f32 %v3030, %v3209
        %v3255 = vmul.f32 %v3031, %v3214
        %v3256 = vmul.f32 %v3032, %v3219
        %v3257 = vmul.f32 %v3033, %v3224
        %v3258 = vpack.c.bf16 %v3227, %v3226
        %v3259 = vpack.c.bf16 %v3229, %v3228
        %v3260 = vpack.c.bf16 %v3231, %v3230
        %v3261 = vpack.c.bf16 %v3233, %v3232
        %v3262 = vpack.c.bf16 %v3235, %v3234
        %v3263 = vpack.c.bf16 %v3237, %v3236
        %v3264 = vpack.c.bf16 %v3239, %v3238
        %v3265 = vpack.c.bf16 %v3241, %v3240
        %v3266 = vpack.c.bf16 %v3243, %v3242
        %v3267 = vpack.c.bf16 %v3245, %v3244
        %v3268 = vpack.c.bf16 %v3247, %v3246
        %v3269 = vpack.c.bf16 %v3249, %v3248
        %v3270 = vpack.c.bf16 %v3251, %v3250
        %v3271 = vpack.c.bf16 %v3253, %v3252
        %v3272 = vpack.c.bf16 %v3255, %v3254
        %v3273 = vpack.c.bf16 %v3257, %v3256
        %v3290 = vunpack.c.l.b16 %v3258
        %v3291 = vunpack.c.h.b16 %v3258
        %v3292 = vunpack.c.l.b16 %v3259
        %v3293 = vunpack.c.h.b16 %v3259
        %v3294 = vunpack.c.l.b16 %v3260
        %v3295 = vunpack.c.h.b16 %v3260
        %v3296 = vunpack.c.l.b16 %v3261
        %v3297 = vunpack.c.h.b16 %v3261
        %v3298 = vunpack.c.l.b16 %v3262
        %v3299 = vunpack.c.h.b16 %v3262
        %v3300 = vunpack.c.l.b16 %v3263
        %v3301 = vunpack.c.h.b16 %v3263
        %v3302 = vunpack.c.l.b16 %v3264
        %v3303 = vunpack.c.h.b16 %v3264
        %v3304 = vunpack.c.l.b16 %v3265
        %v3305 = vunpack.c.h.b16 %v3265
        %v3306 = vunpack.c.l.b16 %v3266
        %v3307 = vunpack.c.h.b16 %v3266
        %v3308 = vunpack.c.l.b16 %v3267
        %v3309 = vunpack.c.h.b16 %v3267
        %v3310 = vunpack.c.l.b16 %v3268
        %v3311 = vunpack.c.h.b16 %v3268
        %v3312 = vunpack.c.l.b16 %v3269
        %v3313 = vunpack.c.h.b16 %v3269
        %v3314 = vunpack.c.l.b16 %v3270
        %v3315 = vunpack.c.h.b16 %v3270
        %v3316 = vunpack.c.l.b16 %v3271
        %v3317 = vunpack.c.h.b16 %v3271
        %v3318 = vunpack.c.l.b16 %v3272
        %v3319 = vunpack.c.h.b16 %v3272
        %v3320 = vunpack.c.l.b16 %v3273
        %v3321 = vunpack.c.h.b16 %v3273
        %v3322 = vpack.c.b16 %v3290, %v3290
        %v3323 = vpack.c.b16 %v3291, %v3291
        %v3324 = vpack.c.b16 %v3292, %v3292
        %v3325 = vpack.c.b16 %v3293, %v3293
        %v3326 = vpack.c.b16 %v3294, %v3294
        %v3327 = vpack.c.b16 %v3295, %v3295
        %v3328 = vpack.c.b16 %v3296, %v3296
        %v3329 = vpack.c.b16 %v3297, %v3297
        %v3330 = vpack.c.b16 %v3298, %v3298
        %v3331 = vpack.c.b16 %v3299, %v3299
        %v3332 = vpack.c.b16 %v3300, %v3300
        %v3333 = vpack.c.b16 %v3301, %v3301
        %v3334 = vpack.c.b16 %v3302, %v3302
        %v3335 = vpack.c.b16 %v3303, %v3303
        %v3336 = vpack.c.b16 %v3304, %v3304
        %v3337 = vpack.c.b16 %v3305, %v3305
        %v3338 = vpack.c.b16 %v3306, %v3306
        %v3339 = vpack.c.b16 %v3307, %v3307
        %v3340 = vpack.c.b16 %v3308, %v3308
        %v3341 = vpack.c.b16 %v3309, %v3309
        %v3342 = vpack.c.b16 %v3310, %v3310
        %v3343 = vpack.c.b16 %v3311, %v3311
        %v3344 = vpack.c.b16 %v3312, %v3312
        %v3345 = vpack.c.b16 %v3313, %v3313
        %v3346 = vpack.c.b16 %v3314, %v3314
        %v3347 = vpack.c.b16 %v3315, %v3315
        %v3348 = vpack.c.b16 %v3316, %v3316
        %v3349 = vpack.c.b16 %v3317, %v3317
        %v3350 = vpack.c.b16 %v3318, %v3318
        %v3351 = vpack.c.b16 %v3319, %v3319
        %v3352 = vpack.c.b16 %v3320, %v3320
        %v3353 = vpack.c.b16 %v3321, %v3321
        %3386 = vst [vmem:[%s359] sm:$0xf] %v3322
        %3387 = vst [vmem:[%s359 + $0x4] sm:$0xf] %v3323
        %3388 = vst [vmem:[%s359 + $0x8] sm:$0xf] %v3324
        %3389 = vst [vmem:[%s359 + $0xc] sm:$0xf] %v3325
        %3390 = vst [vmem:[%s359 + $0x10] sm:$0xf] %v3326
        %3391 = vst [vmem:[%s359 + $0x14] sm:$0xf] %v3327
        %3392 = vst [vmem:[%s359 + $0x18] sm:$0xf] %v3328
        %3393 = vst [vmem:[%s359 + $0x1c] sm:$0xf] %v3329
        %3394 = vst [vmem:[%s359 + $0x20] sm:$0xf] %v3330
        %3395 = vst [vmem:[%s359 + $0x24] sm:$0xf] %v3331
        %3396 = vst [vmem:[%s359 + $0x28] sm:$0xf] %v3332
        %3397 = vst [vmem:[%s359 + $0x2c] sm:$0xf] %v3333
        %3398 = vst [vmem:[%s359 + $0x30] sm:$0xf] %v3334
        %3399 = vst [vmem:[%s359 + $0x34] sm:$0xf] %v3335
        %3400 = vst [vmem:[%s359 + $0x38] sm:$0xf] %v3336
        %3401 = vst [vmem:[%s359 + $0x3c] sm:$0xf] %v3337
        %3402 = vst [vmem:[%s359 + $0x40] sm:$0xf] %v3338
        %3403 = vst [vmem:[%s359 + $0x44] sm:$0xf] %v3339
        %3404 = vst [vmem:[%s359 + $0x48] sm:$0xf] %v3340
        %3405 = vst [vmem:[%s359 + $0x4c] sm:$0xf] %v3341
        %3406 = vst [vmem:[%s359 + $0x50] sm:$0xf] %v3342
        %3407 = vst [vmem:[%s359 + $0x54] sm:$0xf] %v3343
        %3408 = vst [vmem:[%s359 + $0x58] sm:$0xf] %v3344
        %3409 = vst [vmem:[%s359 + $0x5c] sm:$0xf] %v3345
        %3410 = vst [vmem:[%s359 + $0x60] sm:$0xf] %v3346
        %3411 = vst [vmem:[%s359 + $0x64] sm:$0xf] %v3347
        %3412 = vst [vmem:[%s359 + $0x68] sm:$0xf] %v3348
        %3413 = vst [vmem:[%s359 + $0x6c] sm:$0xf] %v3349
        %3414 = vst [vmem:[%s359 + $0x70] sm:$0xf] %v3350
        %3415 = vst [vmem:[%s359 + $0x74] sm:$0xf] %v3351
        %3416 = vst [vmem:[%s359 + $0x78] sm:$0xf] %v3352
        %3417 = vst [vmem:[%s359 + $0x7c] sm:$0xf] %v3353
      $region48: #{parallel_dropless_mlp_forward.1} parent=35 // pred_fallthru
        _
      %s3418 = smul.u32 32, %s31
      %p3419 = scmp.lt.s32.totalorder %s3418, 159
      %s3420 = scalar_select %p3419, %s3418, 159
      %s3421 = smul.addr %s3420, 4
      %s3422 = scalar_lea.vmem %s6, %s3421
      // Predicated region
      $region49: #{parallel_dropless_mlp_forward.1} parent=35 // pred_check
        %p3423 = pneg %p177
      $region50: #{parallel_dropless_mlp_forward.1} parent=35 // pred_check_branch
        %3425 = sbr.rel (%p3423) target = $region52
      $region51: #{parallel_dropless_mlp_forward.1} parent=35 // pred_region
        %s3426 = smul.u32 32, %s31
      $region52: #{parallel_dropless_mlp_forward.1} parent=35 // pred_fallthru
        _
    $region36: #{parallel_dropless_mlp_forward.1} parent=5 // pred_fallthru
      _
    %p3427 = scmp.le.s32.totalorder 2, %s22
    // Predicated region
    $region53: #{parallel_dropless_mlp_forward.1} parent=5 // pred_check
      %p3428 = pneg %p3427
    $region54: #{parallel_dropless_mlp_forward.1} parent=5 // pred_check_branch
      %3430 = sbr.rel (%p3428) target = $region56
    $region55: #{parallel_dropless_mlp_forward.1} parent=5 // pred_region
      %s3431 = ssub.s32 %s22, 2
      // Predicated region
      $region57: #{parallel_dropless_mlp_forward.1} parent=55 // pred_check
        %p3432 = pneg %p183
      $region58: #{parallel_dropless_mlp_forward.1} parent=55 // pred_check_branch
        %3434 = sbr.rel (%p3432) target = $region60
      $region59: #{parallel_dropless_mlp_forward.1} parent=55 // pred_region
        %s3435 = smul.u32 32, %s33
        %p3436 = scmp.lt.s32.totalorder %s3435, 159
        %s3437 = scalar_select %p3436, %s3435, 159
        %s3438 = smul.addr %s3437, 4
        %s3439 = scalar_lea.vmem %s6, %s3438
      $region60: #{parallel_dropless_mlp_forward.1} parent=55 // pred_fallthru
        _
    $region56: #{parallel_dropless_mlp_forward.1} parent=5 // pred_fallthru
      _
  $region6: #{parallel_dropless_mlp_forward.1} parent=0 // loop_footer
    %s26 = sadd.s32 1, %s22
  $region7: #{parallel_dropless_mlp_forward.1} parent=0 // loop_footer_branch
    %21 = sbr.rel target = $region3
  $region8: #{parallel_dropless_mlp_forward.1} parent=0 // loop_exit
    _

</llo_original>
